<compile_context>
chip_gen: v5e
topology: v5e:2x2
jax: 0.10.0
libtpu: 0.0.40
codegen_flags: <defaults>
</compile_context>

<pallas_src>
import jax
import jax.numpy as jnp
from jax import lax
from jax.experimental import pallas as pl
from jax.experimental.pallas import tpu as pltpu

LANE = 128

# cnn geometry (fixed by the PyTorch module)
_C_IN, _L_IN = 50, 76
_C1, _K1, _L1 = 250, 10, 67          # conv1: Conv1d(50, 250, 10) -> L=67
_C2, _K2, _L2 = 10, 5, 63            # conv2: Conv1d(250, 10, 5)  -> L=63
_K1C = 512                           # im2col depth 10*50=500 padded to 512
_C1P = 256                           # conv1 out channels 250 padded to 256
_CNN_TB = 64                         # samples per cnn grid step (multiple of 16)

# fcn geometry
_FCN_IN = 25 * 76                    # 1900
_FCN_H = 512
_FCN_TB = 128                        # rows per fcn grid step (multiple of 16)


def _round_up(x, m):
    return (x + m - 1) // m * m


# ----------------------------------------------------------------------------
# Pallas kernels
# ----------------------------------------------------------------------------
def _fcn_fused_kernel(x_ref, w1_ref, b1_ref, w2_ref, b2_ref, o_ref):
    """Fused Linear(1900->512) -> ReLU -> Linear(512->out_pad) for one row tile.

    x_ref : (tb, 1920) bf16   w1_ref : (1920, 512) bf16 (resident)
    b1_ref: (1, 512)   f32    w2_ref : (512, out_pad) bf16 (resident)
    b2_ref: (1, out_pad) f32  o_ref  : (tb, out_pad) f32
    """
    h = jnp.dot(x_ref[...], w1_ref[...], preferred_element_type=jnp.float32)
    h = jnp.maximum(h + b1_ref[...], 0.0).astype(jnp.bfloat16)
    o_ref[...] = (jnp.dot(h, w2_ref[...], preferred_element_type=jnp.float32)
                  + b2_ref[...]).astype(o_ref.dtype)


def _cnn_fused_kernel(xcol_ref, w1_ref, weff_ref, c_ref, o_ref):
    """Fused conv1 (im2col matmul) + folded conv2/Linear for a TB-sample tile.

    xcol_ref: (67*TB, 512) bf16   rows are l-major: row = l1*TB + b_local
    w1_ref  : (512, 256)   bf16   conv1 as a matmul (zero-padded)
    weff_ref: (67, 256, 128) bf16 conv2 and final Linear folded per l1
    c_ref   : (1, 128) f32        all biases folded into one constant row
    o_ref   : (TB, 128) f32
    """
    tb, out_pad = o_ref.shape

    def body(l, acc):
        r0 = pl.multiple_of(l * tb, tb)                       # sublane-aligned
        x_l = xcol_ref[pl.ds(r0, tb), :]                      # (TB, 512) bf16
        h1 = jnp.dot(x_l, w1_ref[...],
                     preferred_element_type=jnp.float32)      # (TB, 256) f32
        return acc + jnp.dot(h1.astype(jnp.bfloat16), weff_ref[l],
                             preferred_element_type=jnp.float32)

    acc = lax.fori_loop(0, _L1, body, jnp.zeros((tb, out_pad), jnp.float32))
    o_ref[...] = (acc + c_ref[...]).astype(o_ref.dtype)


# ----------------------------------------------------------------------------
# Wrappers (pallas_call + thin layout glue)
# ----------------------------------------------------------------------------
def fcn_forward(x, kp, out_features):
    B, K = x.shape
    k_pad = kp["fcn1_w"].shape[0]                     # 1920
    H = kp["fcn1_w"].shape[1]                         # 512
    out_pad = kp["fcn2_w"].shape[1]
    tb = max(16, min(_FCN_TB, _round_up(B, 16)))
    b_pad = _round_up(B, tb)

    xk = jnp.pad(x.astype(jnp.bfloat16), ((0, b_pad - B), (0, k_pad - K)))

    flops = 2 * b_pad * (k_pad * H + H * out_pad)
    bytes_accessed = (xk.size * 2 + kp["fcn1_w"].size * 2
                      + kp["fcn2_w"].size * 2 + (H + out_pad) * 4
                      + b_pad * out_pad * 4)

    out = pl.pallas_call(
        _fcn_fused_kernel,
        out_shape=jax.ShapeDtypeStruct((b_pad, out_pad), jnp.float32),
        grid=(b_pad // tb,),
        in_specs=[
            pl.BlockSpec((tb, k_pad), lambda i: (i, 0)),       # x row tile
            pl.BlockSpec((k_pad, H), lambda i: (0, 0)),        # w1 (resident)
            pl.BlockSpec((1, H), lambda i: (0, 0)),            # b1
            pl.BlockSpec((H, out_pad), lambda i: (0, 0)),      # w2 (resident)
            pl.BlockSpec((1, out_pad), lambda i: (0, 0)),      # b2
        ],
        out_specs=pl.BlockSpec((tb, out_pad), lambda i: (i, 0)),
        compiler_params=pltpu.CompilerParams(
            dimension_semantics=("parallel",)),
        cost_estimate=pl.CostEstimate(flops=flops, transcendentals=0,
                                      bytes_accessed=bytes_accessed),
    )(xk, kp["fcn1_w"], kp["fcn1_b"], kp["fcn2_w"], kp["fcn2_b"])
    return out[:B, :out_features]


def cnn_forward(x, kp, out_features):
    x = x.reshape(-1, _C_IN, _L_IN)                   # torch NCL view
    B = x.shape[0]
    out_pad = kp["w_eff"].shape[2]
    tb = max(16, min(_CNN_TB, _round_up(B, 16)))
    b_pad = _round_up(B, tb)
    nb = b_pad // tb

    # (B, C, L) -> (B, L, C), bf16, zero-pad batch.
    xt = jnp.transpose(x, (0, 2, 1)).astype(jnp.bfloat16)
    xt = jnp.pad(xt, ((0, b_pad - B), (0, 0), (0, 0)))
    # Host-side im2col for conv1: col[b, l, k*50+cin] = x[b, cin, l+k].
    xcol = jnp.concatenate([xt[:, k:k + _L1, :] for k in range(_K1)], axis=2)
    xcol = jnp.pad(xcol, ((0, 0), (0, 0), (0, _K1C - _K1 * _C_IN)))
    # l-major per tile: row = tile*(67*tb) + l1*tb + b_local.
    xcol = (xcol.reshape(nb, tb, _L1, _K1C)
                .transpose(0, 2, 1, 3)
                .reshape(nb * _L1 * tb, _K1C))

    flops = 2 * b_pad * _L1 * (_K1C * _C1P + _C1P * out_pad)
    bytes_accessed = (xcol.size * 2 + kp["conv1_wm"].size * 2
                      + kp["w_eff"].size * 2 + out_pad * 4
                      + b_pad * out_pad * 4)

    out = pl.pallas_call(
        _cnn_fused_kernel,
        out_shape=jax.ShapeDtypeStruct((b_pad, out_pad), jnp.float32),
        grid=(nb,),
        in_specs=[
            pl.BlockSpec((_L1 * tb, _K1C), lambda i: (i, 0)),       # im2col x
            pl.BlockSpec((_K1C, _C1P), lambda i: (0, 0)),           # W1
            pl.BlockSpec((_L1, _C1P, out_pad), lambda i: (0, 0, 0)),  # W_eff
            pl.BlockSpec((1, out_pad), lambda i: (0, 0)),           # const
        ],
        out_specs=pl.BlockSpec((tb, out_pad), lambda i: (i, 0)),
        compiler_params=pltpu.CompilerParams(
            dimension_semantics=("parallel",),
            vmem_limit_bytes=48 * 1024 * 1024),
        cost_estimate=pl.CostEstimate(flops=flops, transcendentals=0,
                                      bytes_accessed=bytes_accessed),
    )(xcol, kp["conv1_wm"], kp["w_eff"], kp["cnn_const"])
    return out[:B, :out_features]


def kinematics_parser_forward(x, kernel_params, out_features, parser="fcn"):
    if parser == "fcn":
        return fcn_forward(x, kernel_params, out_features)
    elif parser == "cnn":
        return cnn_forward(x, kernel_params, out_features)
    raise ValueError(parser)


# ----------------------------------------------------------------------------
# Parameter init (reference f32 / torch layout) + kernel-layout preparation
# ----------------------------------------------------------------------------
def init_params(out_features, key):
    def u(k, shape, fan_in):
        bound = 1.0 / jnp.sqrt(jnp.float32(fan_in))
        return jax.random.uniform(k, shape, jnp.float32, -bound, bound)

    ks = jax.random.split(key, 10)
    p = {}
    p["fcn1_w"] = u(ks[0], (_FCN_IN, _FCN_H), _FCN_IN)        # (in, out)
    p["fcn1_b"] = u(ks[1], (_FCN_H,), _FCN_IN)
    p["fcn2_w"] = u(ks[2], (_FCN_H, out_features), _FCN_H)
    p["fcn2_b"] = u(ks[3], (out_features,), _FCN_H)
    p["conv1_w"] = u(ks[4], (_C1, _C_IN, _K1), _C_IN * _K1)   # (Cout, Cin, K)
    p["conv1_b"] = u(ks[5], (_C1,), _C_IN * _K1)
    p["conv2_w"] = u(ks[6], (_C2, _C1, _K2), _C1 * _K2)
    p["conv2_b"] = u(ks[7], (_C2,), _C1 * _K2)
    p["fcn_w"] = u(ks[8], (_C2 * _L2, out_features), _C2 * _L2)  # (in, out)
    p["fcn_b"] = u(ks[9], (out_features,), _C2 * _L2)
    return p


def prepare_params(p, out_features):
    """f32/torch-layout params -> kernel layout.

    fcn : bf16 weights, 128-lane padded outputs, K padded to 1920.
    cnn : conv1 as a (512, 256) bf16 im2col matmul weight; conv2 + final
          Linear folded into W_eff[67, 256, 128] bf16; all three biases
          folded into one constant output row.
    """
    out_pad = _round_up(max(out_features, LANE), LANE)
    kp = {}

    # ---- fcn branch -------------------------------------------------------
    k_pad = _round_up(_FCN_IN, LANE)                          # 1920
    kp["fcn1_w"] = jnp.pad(p["fcn1_w"],
                           ((0, k_pad - _FCN_IN), (0, 0))).astype(jnp.bfloat16)
    kp["fcn1_b"] = p["fcn1_b"].reshape(1, -1).astype(jnp.float32)
    kp["fcn2_w"] = jnp.pad(
        p["fcn2_w"], ((0, 0), (0, out_pad - out_features))).astype(jnp.bfloat16)
    kp["fcn2_b"] = jnp.pad(
        p["fcn2_b"], (0, out_pad - out_features)).reshape(1, -1).astype(jnp.float32)

    # ---- cnn branch -------------------------------------------------------
    # conv1 taps as an im2col matmul weight: row (k*Cin + cin) -> col c1.
    w1m = jnp.transpose(p["conv1_w"], (2, 1, 0)).reshape(_K1 * _C_IN, _C1)
    kp["conv1_wm"] = jnp.pad(
        w1m, ((0, _K1C - _K1 * _C_IN), (0, _C1P - _C1))).astype(jnp.bfloat16)

    # Fold conv2 + final Linear:
    #   out[o] = const[o] + sum_{l1,c1} h1[l1, c1] * W_eff[l1, c1, o]
    #   W_eff[l1, c1, o] = sum_{c2, l2+k2=l1} w2[c2, c1, k2] * w3[c2, l2, o]
    # (torch flatten order of the fc input is channel-major: row = c2*63+l2.)
    w2 = p["conv2_w"]                                   # (10, 250, 5)
    w3 = p["fcn_w"].reshape(_C2, _L2, out_features)     # (10, 63, out)
    contrib = jnp.einsum("cik,clo->klio", w2, w3)       # (5, 63, 250, out)
    weff = jnp.zeros((_L1, _C1, out_features), jnp.float32)
    for k2 in range(_K2):
        weff = weff.at[k2:k2 + _L2].add(contrib[k2])
    kp["w_eff"] = jnp.pad(
        weff, ((0, 0), (0, _C1P - _C1),
               (0, out_pad - out_features))).astype(jnp.bfloat16)

    # All biases collapse into one constant output row:
    #   fc_b + conv2_b . w3 (over c2,l2) + conv1_b . W_eff (over l1,c1)
    const = (p["fcn_b"]
             + jnp.einsum("c,clo->o", p["conv2_b"], w3)
             + jnp.einsum("i,lio->o", p["conv1_b"], weff))
    kp["cnn_const"] = jnp.pad(
        const, (0, out_pad - out_features)).reshape(1, -1).astype(jnp.float32)
    return kp


# ----------------------------------------------------------------------------
# Pure-JAX f32 references
# ----------------------------------------------------------------------------
def _ref_fcn(x, p):
    h = jnp.maximum(x @ p["fcn1_w"] + p["fcn1_b"], 0.0)
    return h @ p["fcn2_w"] + p["fcn2_b"]


def _ref_cnn(x, p):
    x = x.reshape(-1, _C_IN, _L_IN)
    y = lax.conv_general_dilated(x, p["conv1_w"], (1,), "VALID",
                                 dimension_numbers=("NCH", "OIH", "NCH"))
    y = y + p["conv1_b"][None, :, None]
    y = lax.conv_general_dilated(y, p["conv2_w"], (1,), "VALID",
                                 dimension_numbers=("NCH", "OIH", "NCH"))
    y = y + p["conv2_b"][None, :, None]
    y = y.reshape(-1, _C2 * _L2)
    return y @ p["fcn_w"] + p["fcn_b"]


# ----------------------------------------------------------------------------
if __name__ == "__main__":
    out_features = 32
    key = jax.random.PRNGKey(0)
    k_param, k_fcn, k_cnn = jax.random.split(key, 3)

    params = init_params(out_features, k_param)
    kparams = prepare_params(params, out_features)

    # fcn path expects (..., 25*76 = 1900); cnn path is viewable as (-1, 50, 76).
    x_fcn = jax.random.normal(k_fcn, (2, 25 * 76), jnp.float32)
    x_cnn = jax.random.normal(k_cnn, (2, 50 * 76), jnp.float32)

    y_fcn = jax.block_until_ready(
        kinematics_parser_forward(x_fcn, kparams, out_features, parser="fcn"))
    y_cnn = jax.block_until_ready(
        kinematics_parser_forward(x_cnn, kparams, out_features, parser="cnn"))

    ref_fcn = _ref_fcn(x_fcn, params)
    ref_cnn = _ref_cnn(x_cnn, params)

    assert y_fcn.shape == (2, out_features)
    assert y_cnn.shape == (2, out_features)
    # Kernels use bf16 MXU weights/activations with f32 accumulation, so
    # compare against the full-f32 reference at bf16-level tolerance.
    assert jnp.allclose(y_fcn, ref_fcn, rtol=2e-2, atol=2e-2), \
        float(jnp.max(jnp.abs(y_fcn - ref_fcn)))
    assert jnp.allclose(y_cnn, ref_cnn, rtol=2e-2, atol=2e-2), \
        float(jnp.max(jnp.abs(y_cnn - ref_cnn)))

    print("KERNEL_OK")
</pallas_src>

<mosaic_0001>
module attributes {stable_mosaic.version = 11 : i64} {
  func.func @_fcn_fused_kernel(%arg0: i32, %arg1: memref<16x1920xbf16, #tpu.memory_space<vmem>>, %arg2: memref<1920x512xbf16, #tpu.memory_space<vmem>>, %arg3: memref<1x512xf32, #tpu.memory_space<vmem>>, %arg4: memref<512x128xbf16, #tpu.memory_space<vmem>>, %arg5: memref<1x128xf32, #tpu.memory_space<vmem>>, %arg6: memref<16x128xf32, #tpu.memory_space<vmem>>) attributes {dimension_semantics = [#tpu.dimension_semantics<parallel>], iteration_bounds = array<i64: 1>, scalar_prefetch = 0 : i64, scratch_operands = 0 : i64, tpu.core_type = #tpu.core_type<tc>, window_params = [{transform_indices = @transform_0, window_bounds = array<i64: 16, 1920>}, {pipeline_mode = #tpu.pipeline_mode<synchronous>, transform_indices = @transform_1, window_bounds = array<i64: 1920, 512>}, {pipeline_mode = #tpu.pipeline_mode<synchronous>, transform_indices = @transform_2, window_bounds = array<i64: 1, 512>}, {pipeline_mode = #tpu.pipeline_mode<synchronous>, transform_indices = @transform_3, window_bounds = array<i64: 512, 128>}, {pipeline_mode = #tpu.pipeline_mode<synchronous>, transform_indices = @transform_4, window_bounds = array<i64: 1, 128>}, {transform_indices = @transform_5, window_bounds = array<i64: 16, 128>}]} {
    %c0 = arith.constant 0 : index
    %c0_0 = arith.constant 0 : index
    %0 = vector.load %arg1[%c0, %c0_0] : memref<16x1920xbf16, #tpu.memory_space<vmem>>, vector<16x1920xbf16>
    %c0_1 = arith.constant 0 : index
    %c0_2 = arith.constant 0 : index
    %1 = vector.load %arg2[%c0_1, %c0_2] : memref<1920x512xbf16, #tpu.memory_space<vmem>>, vector<1920x512xbf16>
    %cst = arith.constant dense<0.000000e+00> : vector<16x512xf32>
    %2 = tpu.matmul %0, %1, %cst {dimension_numbers = #tpu.dot_dimension_numbers<[1], [0], [0], [1], [0, 0, 1, 1], [], []>} : vector<16x1920xbf16>, vector<1920x512xbf16>, vector<16x512xf32> -> vector<16x512xf32>
    %c0_3 = arith.constant 0 : index
    %c0_4 = arith.constant 0 : index
    %3 = vector.load %arg3[%c0_3, %c0_4] : memref<1x512xf32, #tpu.memory_space<vmem>>, vector<1x512xf32>
    %4 = vector.broadcast %3 : vector<1x512xf32> to vector<16x512xf32>
    %5 = arith.addf %2, %4 : vector<16x512xf32>
    %cst_5 = arith.constant 0.000000e+00 : f32
    %6 = vector.broadcast %cst_5 : f32 to vector<16x512xf32>
    %7 = arith.maximumf %5, %6 : vector<16x512xf32>
    %8 = arith.truncf %7 : vector<16x512xf32> to vector<16x512xbf16>
    %c0_6 = arith.constant 0 : index
    %c0_7 = arith.constant 0 : index
    %9 = vector.load %arg4[%c0_6, %c0_7] : memref<512x128xbf16, #tpu.memory_space<vmem>>, vector<512x128xbf16>
    %cst_8 = arith.constant dense<0.000000e+00> : vector<16x128xf32>
    %10 = tpu.matmul %8, %9, %cst_8 {dimension_numbers = #tpu.dot_dimension_numbers<[1], [0], [0], [1], [0, 0, 1, 1], [], []>} : vector<16x512xbf16>, vector<512x128xbf16>, vector<16x128xf32> -> vector<16x128xf32>
    %c0_9 = arith.constant 0 : index
    %c0_10 = arith.constant 0 : index
    %11 = vector.load %arg5[%c0_9, %c0_10] : memref<1x128xf32, #tpu.memory_space<vmem>>, vector<1x128xf32>
    %12 = vector.broadcast %11 : vector<1x128xf32> to vector<16x128xf32>
    %13 = arith.addf %10, %12 : vector<16x128xf32>
    %c0_11 = arith.constant 0 : index
    %c0_12 = arith.constant 0 : index
    %14 = vector.load %arg6[%c0_11, %c0_12] : memref<16x128xf32, #tpu.memory_space<vmem>>, vector<16x128xf32>
    tpu.vector_store %arg6[%c0_11, %c0_12], %13 {strides = array<i32>} : memref<16x128xf32, #tpu.memory_space<vmem>>, vector<16x128xf32>,
    return
  }
  func.func @transform_0(%arg0: i32) -> (i32, i32) {
    %c0_i32 = arith.constant 0 : i32
    %c0_i32_0 = arith.constant 0 : i32
    return %arg0, %c0_i32 : i32, i32
  }
  func.func @transform_1(%arg0: i32) -> (i32, i32) {
    %c0_i32 = arith.constant 0 : i32
    %c0_i32_0 = arith.constant 0 : i32
    %c0_i32_1 = arith.constant 0 : i32
    return %c0_i32, %c0_i32_0 : i32, i32
  }
  func.func @transform_2(%arg0: i32) -> (i32, i32) {
    %c0_i32 = arith.constant 0 : i32
    %c0_i32_0 = arith.constant 0 : i32
    %c0_i32_1 = arith.constant 0 : i32
    return %c0_i32, %c0_i32_0 : i32, i32
  }
  func.func @transform_3(%arg0: i32) -> (i32, i32) {
    %c0_i32 = arith.constant 0 : i32
    %c0_i32_0 = arith.constant 0 : i32
    %c0_i32_1 = arith.constant 0 : i32
    return %c0_i32, %c0_i32_0 : i32, i32
  }
  func.func @transform_4(%arg0: i32) -> (i32, i32) {
    %c0_i32 = arith.constant 0 : i32
    %c0_i32_0 = arith.constant 0 : i32
    %c0_i32_1 = arith.constant 0 : i32
    return %c0_i32, %c0_i32_0 : i32, i32
  }
  func.func @transform_5(%arg0: i32) -> (i32, i32) {
    %c0_i32 = arith.constant 0 : i32
    %c0_i32_0 = arith.constant 0 : i32
    return %arg0, %c0_i32 : i32, i32
  }
}

</mosaic_0001>

<llo_original>
// kernel: tpu_custom_call.1
$region0: #{tpu_custom_call.1}
  #allocation0 [shape = 'u32[]', space=smem, size = 0x4, offset = 0x4, fixed_abs, tag = 'smem constant byte address 0x4 - core index']
  #allocation1 [shape = 'u32[72,128]{1,0:T(1,128)}', space=vmem, size = 0x9000, scoped, tag = 'internal scratch']
  %s0 = inlined_call_operand.hbm [shape: bf16[16,1920], index: 0, kind: input, shape index: {}]
  %s1 = inlined_call_operand.hbm [shape: bf16[1920,512], index: 1, kind: input, shape index: {}]
  %s2 = inlined_call_operand.hbm [shape: f32[1,512], index: 2, kind: input, shape index: {}]
  %s3 = inlined_call_operand.hbm [shape: bf16[512,128], index: 3, kind: input, shape index: {}]
  %s4 = inlined_call_operand.hbm [shape: f32[1,128], index: 4, kind: input, shape index: {}]
  %s5 = inlined_call_operand.hbm [shape: f32[16,128], index: 5, kind: output, shape index: {}]
  %s6 = sld [smem:[#allocation0]]
  $region50: #{tpu_custom_call.1} parent=0
    _
  %s8 = ssub.s32 1, %s6
  %s9 = scalar_select 0, %s8, %s6
  $region1: #{tpu_custom_call.1} parent=0
    #allocation2 [shape = 'u8[61440]{0}', space=vmem, size = 0xf000, scoped, tag = 'input window, operand 0, single buffered']
    #allocation3 [shape = 's32[1]{0}', space=sflag, size = 0x4, scoped, tag = 'scoped memory for tpu_custom_call.1']
    #allocation4 [shape = 's32[1]{0}', space=sflag, size = 0x4, scoped, tag = 'scoped memory for tpu_custom_call.1']
    #allocation5 [shape = 'u8[1966080]{0}', space=vmem, size = 0x1e0000, scoped, tag = 'input window, operand 1, single buffered']
    #allocation6 [shape = 's32[1]{0}', space=sflag, size = 0x4, scoped, tag = 'scoped memory for tpu_custom_call.1']
    #allocation7 [shape = 'u8[2048]{0}', space=vmem, size = 0x800, scoped, tag = 'input window, operand 2, single buffered']
    #allocation8 [shape = 'u8[131072]{0}', space=vmem, size = 0x20000, scoped, tag = 'input window, operand 3, single buffered']
    #allocation9 [shape = 's32[1]{0}', space=sflag, size = 0x4, scoped, tag = 'scoped memory for tpu_custom_call.1']
    #allocation10 [shape = 'u8[512]{0}', space=vmem, size = 0x400, scoped, tag = 'input window, operand 4, single buffered']
    #allocation11 [shape = 'u8[8192]{0}', space=vmem, size = 0x2000, scoped, tag = 'output window, operand 0, single buffered']
    %10 = vsyncpa [#allocation3], 0
    %11 = vsyncpa [#allocation6], 0
    %12 = vsyncpa [#allocation9], 0
    %13 = vsyncpa [#allocation4], 0
    // Predicated region
    $region2: #{tpu_custom_call.1} parent=1 // pred_check
      _
    $region3: #{tpu_custom_call.1} parent=1 // pred_check_branch
      %15 = sbr.rel (0) target = $region5
    $region4: #{tpu_custom_call.1} parent=1 // pred_region
      %17 = vsyncadd [#allocation3], 0
      %s18 = sshll.u32 %s0, 4
      %s19 = int_to_ptr.hbm [resolvable:$true] %s18
      %s20 = sshll.u32 [#allocation2], 4
      %s21 = int_to_ptr.vmem [resolvable:$true] %s20
      %26 = dma.hbm_to_vmem [thread:$0]  %s19, 1920, %s21, [#allocation3], 960, 960, 60
    $region5: #{tpu_custom_call.1} parent=1 // pred_fallthru
      _
    // Predicated region
    $region6: #{tpu_custom_call.1} parent=1 // pred_check
      _
    $region7: #{tpu_custom_call.1} parent=1 // pred_check_branch
      %28 = sbr.rel (0) target = $region9
    $region8: #{tpu_custom_call.1} parent=1 // pred_region
      %30 = vsyncadd [#allocation6], 0
      %s31 = sshll.u32 %s1, 4
      %s32 = int_to_ptr.hbm [resolvable:$true] %s31
      %s33 = sshll.u32 [#allocation5], 4
      %s34 = int_to_ptr.vmem [resolvable:$true] %s33
      %39 = dma.hbm_to_vmem [thread:$0]  %s32, 61440, %s34, [#allocation6], 256, 256, 16
    $region9: #{tpu_custom_call.1} parent=1 // pred_fallthru
      _
    // Predicated region
    $region10: #{tpu_custom_call.1} parent=1 // pred_check
      _
    $region11: #{tpu_custom_call.1} parent=1 // pred_check_branch
      %41 = sbr.rel (0) target = $region13
    $region12: #{tpu_custom_call.1} parent=1 // pred_region
      %43 = vsyncadd [#allocation6], 0
      %s45 = sshll.u32 %s2, 4
      %s46 = int_to_ptr.hbm [resolvable:$true] %s45
      %s47 = sshll.u32 [#allocation7], 4
      %s48 = int_to_ptr.vmem [resolvable:$true] %s47
      %50 = dma.hbm_to_vmem [thread:$0]  %s46, 64, %s48, [#allocation6]
    $region13: #{tpu_custom_call.1} parent=1 // pred_fallthru
      _
    // Predicated region
    $region14: #{tpu_custom_call.1} parent=1 // pred_check
      _
    $region15: #{tpu_custom_call.1} parent=1 // pred_check_branch
      %52 = sbr.rel (0) target = $region17
    $region16: #{tpu_custom_call.1} parent=1 // pred_region
      %54 = vsyncadd [#allocation9], 0
      %s55 = sshll.u32 %s3, 4
      %s56 = int_to_ptr.hbm [resolvable:$true] %s55
      %s57 = sshll.u32 [#allocation8], 4
      %s58 = int_to_ptr.vmem [resolvable:$true] %s57
      %63 = dma.hbm_to_vmem [thread:$0]  %s56, 4096, %s58, [#allocation9], 64, 64, 4
    $region17: #{tpu_custom_call.1} parent=1 // pred_fallthru
      _
    // Predicated region
    $region18: #{tpu_custom_call.1} parent=1 // pred_check
      _
    $region19: #{tpu_custom_call.1} parent=1 // pred_check_branch
      %65 = sbr.rel (0) target = $region21
    $region20: #{tpu_custom_call.1} parent=1 // pred_region
      %67 = vsyncadd [#allocation9], 0
      %s69 = sshll.u32 %s4, 4
      %s70 = int_to_ptr.hbm [resolvable:$true] %s69
      %s71 = sshll.u32 [#allocation10], 4
      %s72 = int_to_ptr.vmem [resolvable:$true] %s71
      %74 = dma.hbm_to_vmem [thread:$0]  %s70, 16, %s72, [#allocation9]
    $region21: #{tpu_custom_call.1} parent=1 // pred_fallthru
      _
    // Predicated region
    $region22: #{tpu_custom_call.1} parent=1 // pred_check
      _
    $region23: #{tpu_custom_call.1} parent=1 // pred_check_branch
      %76 = sbr.rel (0) target = $region25
    $region24: #{tpu_custom_call.1} parent=1 // pred_region
      %78 = dma.done [#allocation3], 1920
    $region25: #{tpu_custom_call.1} parent=1 // pred_fallthru
      _
    // Predicated region
    $region26: #{tpu_custom_call.1} parent=1 // pred_check
      _
    $region27: #{tpu_custom_call.1} parent=1 // pred_check_branch
      %80 = sbr.rel (0) target = $region29
    $region28: #{tpu_custom_call.1} parent=1 // pred_region
      %82 = dma.done [#allocation6], 61440
    $region29: #{tpu_custom_call.1} parent=1 // pred_fallthru
      _
    // Predicated region
    $region30: #{tpu_custom_call.1} parent=1 // pred_check
      _
    $region31: #{tpu_custom_call.1} parent=1 // pred_check_branch
      %84 = sbr.rel (0) target = $region33
    $region32: #{tpu_custom_call.1} parent=1 // pred_region
      %86 = dma.done [#allocation6], 64
    $region33: #{tpu_custom_call.1} parent=1 // pred_fallthru
      _
    // Predicated region
    $region34: #{tpu_custom_call.1} parent=1 // pred_check
      _
    $region35: #{tpu_custom_call.1} parent=1 // pred_check_branch
      %88 = sbr.rel (0) target = $region37
    $region36: #{tpu_custom_call.1} parent=1 // pred_region
      %90 = dma.done [#allocation9], 4096
    $region37: #{tpu_custom_call.1} parent=1 // pred_fallthru
      _
    // Predicated region
    $region38: #{tpu_custom_call.1} parent=1 // pred_check
      _
    $region39: #{tpu_custom_call.1} parent=1 // pred_check_branch
      %92 = sbr.rel (0) target = $region41
    $region40: #{tpu_custom_call.1} parent=1 // pred_region
      %94 = dma.done [#allocation9], 16
    $region41: #{tpu_custom_call.1} parent=1 // pred_fallthru
      _
    %v95 = vld [vmem:[#allocation2] sm:$0xff]
    %v96 = vld [vmem:[#allocation2 + $0x8] sm:$0xff]
    %v97 = vld [vmem:[#allocation2 + $0x10] sm:$0xff]
    %v98 = vld [vmem:[#allocation2 + $0x18] sm:$0xff]
    %v99 = vld [vmem:[#allocation2 + $0x20] sm:$0xff]
    %v100 = vld [vmem:[#allocation2 + $0x28] sm:$0xff]
    %v101 = vld [vmem:[#allocation2 + $0x30] sm:$0xff]
    %v102 = vld [vmem:[#allocation2 + $0x38] sm:$0xf]
    %v103 = vld [vmem:[#allocation2 + $0x3c] sm:$0xff]
    %v104 = vld [vmem:[#allocation2 + $0x44] sm:$0xff]
    %v105 = vld [vmem:[#allocation2 + $0x4c] sm:$0xff]
    %v106 = vld [vmem:[#allocation2 + $0x54] sm:$0xff]
    %v107 = vld [vmem:[#allocation2 + $0x5c] sm:$0xff]
    %v108 = vld [vmem:[#allocation2 + $0x64] sm:$0xff]
    %v109 = vld [vmem:[#allocation2 + $0x6c] sm:$0xff]
    %v110 = vld [vmem:[#allocation2 + $0x74] sm:$0xf]
    %v111 = vld [vmem:[#allocation5] sm:$0xff]
    %v112 = vld [vmem:[#allocation5 + $0x8] sm:$0xff]
    %v113 = vld [vmem:[#allocation5 + $0x10] sm:$0xff]
    %v114 = vld [vmem:[#allocation5 + $0x18] sm:$0xff]
    %v115 = vld [vmem:[#allocation5 + $0x20] sm:$0xff]
    %v116 = vld [vmem:[#allocation5 + $0x28] sm:$0xff]
    %v117 = vld [vmem:[#allocation5 + $0x30] sm:$0xff]
    %v118 = vld [vmem:[#allocation5 + $0x38] sm:$0xff]
    %v119 = vld [vmem:[#allocation5 + $0x40] sm:$0xff]
    %v120 = vld [vmem:[#allocation5 + $0x48] sm:$0xff]
    %v121 = vld [vmem:[#allocation5 + $0x50] sm:$0xff]
    %v122 = vld [vmem:[#allocation5 + $0x58] sm:$0xff]
    %v123 = vld [vmem:[#allocation5 + $0x60] sm:$0xff]
    %v124 = vld [vmem:[#allocation5 + $0x68] sm:$0xff]
    %v125 = vld [vmem:[#allocation5 + $0x70] sm:$0xff]
    %v126 = vld [vmem:[#allocation5 + $0x78] sm:$0xff]
    %v127 = vld [vmem:[#allocation5 + $0x80] sm:$0xff]
    %v128 = vld [vmem:[#allocation5 + $0x88] sm:$0xff]
    %v129 = vld [vmem:[#allocation5 + $0x90] sm:$0xff]
    %v130 = vld [vmem:[#allocation5 + $0x98] sm:$0xff]
    %v131 = vld [vmem:[#allocation5 + $0xa0] sm:$0xff]
    %v132 = vld [vmem:[#allocation5 + $0xa8] sm:$0xff]
    %v133 = vld [vmem:[#allocation5 + $0xb0] sm:$0xff]
    %v134 = vld [vmem:[#allocation5 + $0xb8] sm:$0xff]
    %v135 = vld [vmem:[#allocation5 + $0xc0] sm:$0xff]
    %v136 = vld [vmem:[#allocation5 + $0xc8] sm:$0xff]
    %v137 = vld [vmem:[#allocation5 + $0xd0] sm:$0xff]
    %v138 = vld [vmem:[#allocation5 + $0xd8] sm:$0xff]
    %v139 = vld [vmem:[#allocation5 + $0xe0] sm:$0xff]
    %v140 = vld [vmem:[#allocation5 + $0xe8] sm:$0xff]
    %v141 = vld [vmem:[#allocation5 + $0xf0] sm:$0xff]
    %v142 = vld [vmem:[#allocation5 + $0xf8] sm:$0xff]
    %v143 = vld [vmem:[#allocation5 + $0x100] sm:$0xff]
    %v144 = vld [vmem:[#allocation5 + $0x108] sm:$0xff]
    %v145 = vld [vmem:[#allocation5 + $0x110] sm:$0xff]
    %v146 = vld [vmem:[#allocation5 + $0x118] sm:$0xff]
    %v147 = vld [vmem:[#allocation5 + $0x120] sm:$0xff]
    %v148 = vld [vmem:[#allocation5 + $0x128] sm:$0xff]
    %v149 = vld [vmem:[#allocation5 + $0x130] sm:$0xff]
    %v150 = vld [vmem:[#allocation5 + $0x138] sm:$0xff]
    %v151 = vld [vmem:[#allocation5 + $0x140] sm:$0xff]
    %v152 = vld [vmem:[#allocation5 + $0x148] sm:$0xff]
    %v153 = vld [vmem:[#allocation5 + $0x150] sm:$0xff]
    %v154 = vld [vmem:[#allocation5 + $0x158] sm:$0xff]
    %v155 = vld [vmem:[#allocation5 + $0x160] sm:$0xff]
    %v156 = vld [vmem:[#allocation5 + $0x168] sm:$0xff]
    %v157 = vld [vmem:[#allocation5 + $0x170] sm:$0xff]
    %v158 = vld [vmem:[#allocation5 + $0x178] sm:$0xff]
    %v159 = vld [vmem:[#allocation5 + $0x180] sm:$0xff]
    %v160 = vld [vmem:[#allocation5 + $0x188] sm:$0xff]
    %v161 = vld [vmem:[#allocation5 + $0x190] sm:$0xff]
    %v162 = vld [vmem:[#allocation5 + $0x198] sm:$0xff]
    %v163 = vld [vmem:[#allocation5 + $0x1a0] sm:$0xff]
    %v164 = vld [vmem:[#allocation5 + $0x1a8] sm:$0xff]
    %v165 = vld [vmem:[#allocation5 + $0x1b0] sm:$0xff]
    %v166 = vld [vmem:[#allocation5 + $0x1b8] sm:$0xff]
    %v167 = vld [vmem:[#allocation5 + $0x1c0] sm:$0xff]
    %v168 = vld [vmem:[#allocation5 + $0x1c8] sm:$0xff]
    %v169 = vld [vmem:[#allocation5 + $0x1d0] sm:$0xff]
    %v170 = vld [vmem:[#allocation5 + $0x1d8] sm:$0xff]
    %v171 = vld [vmem:[#allocation5 + $0x1e0] sm:$0xff]
    %v172 = vld [vmem:[#allocation5 + $0x1e8] sm:$0xff]
    %v173 = vld [vmem:[#allocation5 + $0x1f0] sm:$0xff]
    %v174 = vld [vmem:[#allocation5 + $0x1f8] sm:$0xff]
    %v175 = vld [vmem:[#allocation5 + $0x200] sm:$0xff]
    %v176 = vld [vmem:[#allocation5 + $0x208] sm:$0xff]
    %v177 = vld [vmem:[#allocation5 + $0x210] sm:$0xff]
    %v178 = vld [vmem:[#allocation5 + $0x218] sm:$0xff]
    %v179 = vld [vmem:[#allocation5 + $0x220] sm:$0xff]
    %v180 = vld [vmem:[#allocation5 + $0x228] sm:$0xff]
    %v181 = vld [vmem:[#allocation5 + $0x230] sm:$0xff]
    %v182 = vld [vmem:[#allocation5 + $0x238] sm:$0xff]
    %v183 = vld [vmem:[#allocation5 + $0x240] sm:$0xff]
    %v184 = vld [vmem:[#allocation5 + $0x248] sm:$0xff]
    %v185 = vld [vmem:[#allocation5 + $0x250] sm:$0xff]
    %v186 = vld [vmem:[#allocation5 + $0x258] sm:$0xff]
    %v187 = vld [vmem:[#allocation5 + $0x260] sm:$0xff]
    %v188 = vld [vmem:[#allocation5 + $0x268] sm:$0xff]
    %v189 = vld [vmem:[#allocation5 + $0x270] sm:$0xff]
    %v190 = vld [vmem:[#allocation5 + $0x278] sm:$0xff]
    %v191 = vld [vmem:[#allocation5 + $0x280] sm:$0xff]
    %v192 = vld [vmem:[#allocation5 + $0x288] sm:$0xff]
    %v193 = vld [vmem:[#allocation5 + $0x290] sm:$0xff]
    %v194 = vld [vmem:[#allocation5 + $0x298] sm:$0xff]
    %v195 = vld [vmem:[#allocation5 + $0x2a0] sm:$0xff]
    %v196 = vld [vmem:[#allocation5 + $0x2a8] sm:$0xff]
    %v197 = vld [vmem:[#allocation5 + $0x2b0] sm:$0xff]
    %v198 = vld [vmem:[#allocation5 + $0x2b8] sm:$0xff]
    %v199 = vld [vmem:[#allocation5 + $0x2c0] sm:$0xff]
    %v200 = vld [vmem:[#allocation5 + $0x2c8] sm:$0xff]
    %v201 = vld [vmem:[#allocation5 + $0x2d0] sm:$0xff]
    %v202 = vld [vmem:[#allocation5 + $0x2d8] sm:$0xff]
    %v203 = vld [vmem:[#allocation5 + $0x2e0] sm:$0xff]
    %v204 = vld [vmem:[#allocation5 + $0x2e8] sm:$0xff]
    %v205 = vld [vmem:[#allocation5 + $0x2f0] sm:$0xff]
    %v206 = vld [vmem:[#allocation5 + $0x2f8] sm:$0xff]
    %v207 = vld [vmem:[#allocation5 + $0x300] sm:$0xff]
    %v208 = vld [vmem:[#allocation5 + $0x308] sm:$0xff]
    %v209 = vld [vmem:[#allocation5 + $0x310] sm:$0xff]
    %v210 = vld [vmem:[#allocation5 + $0x318] sm:$0xff]
    %v211 = vld [vmem:[#allocation5 + $0x320] sm:$0xff]
    %v212 = vld [vmem:[#allocation5 + $0x328] sm:$0xff]
    %v213 = vld [vmem:[#allocation5 + $0x330] sm:$0xff]
    %v214 = vld [vmem:[#allocation5 + $0x338] sm:$0xff]
    %v215 = vld [vmem:[#allocation5 + $0x340] sm:$0xff]
    %v216 = vld [vmem:[#allocation5 + $0x348] sm:$0xff]
    %v217 = vld [vmem:[#allocation5 + $0x350] sm:$0xff]
    %v218 = vld [vmem:[#allocation5 + $0x358] sm:$0xff]
    %v219 = vld [vmem:[#allocation5 + $0x360] sm:$0xff]
    %v220 = vld [vmem:[#allocation5 + $0x368] sm:$0xff]
    %v221 = vld [vmem:[#allocation5 + $0x370] sm:$0xff]
    %v222 = vld [vmem:[#allocation5 + $0x378] sm:$0xff]
    %v223 = vld [vmem:[#allocation5 + $0x380] sm:$0xff]
    %v224 = vld [vmem:[#allocation5 + $0x388] sm:$0xff]
    %v225 = vld [vmem:[#allocation5 + $0x390] sm:$0xff]
    %v226 = vld [vmem:[#allocation5 + $0x398] sm:$0xff]
    %v227 = vld [vmem:[#allocation5 + $0x3a0] sm:$0xff]
    %v228 = vld [vmem:[#allocation5 + $0x3a8] sm:$0xff]
    %v229 = vld [vmem:[#allocation5 + $0x3b0] sm:$0xff]
    %v230 = vld [vmem:[#allocation5 + $0x3b8] sm:$0xff]
    %v231 = vld [vmem:[#allocation5 + $0x3c0] sm:$0xff]
    %v232 = vld [vmem:[#allocation5 + $0x3c8] sm:$0xff]
    %v233 = vld [vmem:[#allocation5 + $0x3d0] sm:$0xff]
    %v234 = vld [vmem:[#allocation5 + $0x3d8] sm:$0xff]
    %v235 = vld [vmem:[#allocation5 + $0x3e0] sm:$0xff]
    %v236 = vld [vmem:[#allocation5 + $0x3e8] sm:$0xff]
    %v237 = vld [vmem:[#allocation5 + $0x3f0] sm:$0xff]
    %v238 = vld [vmem:[#allocation5 + $0x3f8] sm:$0xff]
    %v239 = vld [vmem:[#allocation5 + $0x400] sm:$0xff]
    %v240 = vld [vmem:[#allocation5 + $0x408] sm:$0xff]
    %v241 = vld [vmem:[#allocation5 + $0x410] sm:$0xff]
    %v242 = vld [vmem:[#allocation5 + $0x418] sm:$0xff]
    %v243 = vld [vmem:[#allocation5 + $0x420] sm:$0xff]
    %v244 = vld [vmem:[#allocation5 + $0x428] sm:$0xff]
    %v245 = vld [vmem:[#allocation5 + $0x430] sm:$0xff]
    %v246 = vld [vmem:[#allocation5 + $0x438] sm:$0xff]
    %v247 = vld [vmem:[#allocation5 + $0x440] sm:$0xff]
    %v248 = vld [vmem:[#allocation5 + $0x448] sm:$0xff]
    %v249 = vld [vmem:[#allocation5 + $0x450] sm:$0xff]
    %v250 = vld [vmem:[#allocation5 + $0x458] sm:$0xff]
    %v251 = vld [vmem:[#allocation5 + $0x460] sm:$0xff]
    %v252 = vld [vmem:[#allocation5 + $0x468] sm:$0xff]
    %v253 = vld [vmem:[#allocation5 + $0x470] sm:$0xff]
    %v254 = vld [vmem:[#allocation5 + $0x478] sm:$0xff]
    %v255 = vld [vmem:[#allocation5 + $0x480] sm:$0xff]
    %v256 = vld [vmem:[#allocation5 + $0x488] sm:$0xff]
    %v257 = vld [vmem:[#allocation5 + $0x490] sm:$0xff]
    %v258 = vld [vmem:[#allocation5 + $0x498] sm:$0xff]
    %v259 = vld [vmem:[#allocation5 + $0x4a0] sm:$0xff]
    %v260 = vld [vmem:[#allocation5 + $0x4a8] sm:$0xff]
    %v261 = vld [vmem:[#allocation5 + $0x4b0] sm:$0xff]
    %v262 = vld [vmem:[#allocation5 + $0x4b8] sm:$0xff]
    %v263 = vld [vmem:[#allocation5 + $0x4c0] sm:$0xff]
    %v264 = vld [vmem:[#allocation5 + $0x4c8] sm:$0xff]
    %v265 = vld [vmem:[#allocation5 + $0x4d0] sm:$0xff]
    %v266 = vld [vmem:[#allocation5 + $0x4d8] sm:$0xff]
    %v267 = vld [vmem:[#allocation5 + $0x4e0] sm:$0xff]
    %v268 = vld [vmem:[#allocation5 + $0x4e8] sm:$0xff]
    %v269 = vld [vmem:[#allocation5 + $0x4f0] sm:$0xff]
    %v270 = vld [vmem:[#allocation5 + $0x4f8] sm:$0xff]
    %v271 = vld [vmem:[#allocation5 + $0x500] sm:$0xff]
    %v272 = vld [vmem:[#allocation5 + $0x508] sm:$0xff]
    %v273 = vld [vmem:[#allocation5 + $0x510] sm:$0xff]
    %v274 = vld [vmem:[#allocation5 + $0x518] sm:$0xff]
    %v275 = vld [vmem:[#allocation5 + $0x520] sm:$0xff]
    %v276 = vld [vmem:[#allocation5 + $0x528] sm:$0xff]
    %v277 = vld [vmem:[#allocation5 + $0x530] sm:$0xff]
    %v278 = vld [vmem:[#allocation5 + $0x538] sm:$0xff]
    %v279 = vld [vmem:[#allocation5 + $0x540] sm:$0xff]
    %v280 = vld [vmem:[#allocation5 + $0x548] sm:$0xff]
    %v281 = vld [vmem:[#allocation5 + $0x550] sm:$0xff]
    %v282 = vld [vmem:[#allocation5 + $0x558] sm:$0xff]
    %v283 = vld [vmem:[#allocation5 + $0x560] sm:$0xff]
    %v284 = vld [vmem:[#allocation5 + $0x568] sm:$0xff]
    %v285 = vld [vmem:[#allocation5 + $0x570] sm:$0xff]
    %v286 = vld [vmem:[#allocation5 + $0x578] sm:$0xff]
    %v287 = vld [vmem:[#allocation5 + $0x580] sm:$0xff]
    %v288 = vld [vmem:[#allocation5 + $0x588] sm:$0xff]
    %v289 = vld [vmem:[#allocation5 + $0x590] sm:$0xff]
    %v290 = vld [vmem:[#allocation5 + $0x598] sm:$0xff]
    %v291 = vld [vmem:[#allocation5 + $0x5a0] sm:$0xff]
    %v292 = vld [vmem:[#allocation5 + $0x5a8] sm:$0xff]
    %v293 = vld [vmem:[#allocation5 + $0x5b0] sm:$0xff]
    %v294 = vld [vmem:[#allocation5 + $0x5b8] sm:$0xff]
    %v295 = vld [vmem:[#allocation5 + $0x5c0] sm:$0xff]
    %v296 = vld [vmem:[#allocation5 + $0x5c8] sm:$0xff]
    %v297 = vld [vmem:[#allocation5 + $0x5d0] sm:$0xff]
    %v298 = vld [vmem:[#allocation5 + $0x5d8] sm:$0xff]
    %v299 = vld [vmem:[#allocation5 + $0x5e0] sm:$0xff]
    %v300 = vld [vmem:[#allocation5 + $0x5e8] sm:$0xff]
    %v301 = vld [vmem:[#allocation5 + $0x5f0] sm:$0xff]
    %v302 = vld [vmem:[#allocation5 + $0x5f8] sm:$0xff]
    %v303 = vld [vmem:[#allocation5 + $0x600] sm:$0xff]
    %v304 = vld [vmem:[#allocation5 + $0x608] sm:$0xff]
    %v305 = vld [vmem:[#allocation5 + $0x610] sm:$0xff]
    %v306 = vld [vmem:[#allocation5 + $0x618] sm:$0xff]
    %v307 = vld [vmem:[#allocation5 + $0x620] sm:$0xff]
    %v308 = vld [vmem:[#allocation5 + $0x628] sm:$0xff]
    %v309 = vld [vmem:[#allocation5 + $0x630] sm:$0xff]
    %v310 = vld [vmem:[#allocation5 + $0x638] sm:$0xff]
    %v311 = vld [vmem:[#allocation5 + $0x640] sm:$0xff]
    %v312 = vld [vmem:[#allocation5 + $0x648] sm:$0xff]
    %v313 = vld [vmem:[#allocation5 + $0x650] sm:$0xff]
    %v314 = vld [vmem:[#allocation5 + $0x658] sm:$0xff]
    %v315 = vld [vmem:[#allocation5 + $0x660] sm:$0xff]
    %v316 = vld [vmem:[#allocation5 + $0x668] sm:$0xff]
    %v317 = vld [vmem:[#allocation5 + $0x670] sm:$0xff]
    %v318 = vld [vmem:[#allocation5 + $0x678] sm:$0xff]
    %v319 = vld [vmem:[#allocation5 + $0x680] sm:$0xff]
    %v320 = vld [vmem:[#allocation5 + $0x688] sm:$0xff]
    %v321 = vld [vmem:[#allocation5 + $0x690] sm:$0xff]
    %v322 = vld [vmem:[#allocation5 + $0x698] sm:$0xff]
    %v323 = vld [vmem:[#allocation5 + $0x6a0] sm:$0xff]
    %v324 = vld [vmem:[#allocation5 + $0x6a8] sm:$0xff]
    %v325 = vld [vmem:[#allocation5 + $0x6b0] sm:$0xff]
    %v326 = vld [vmem:[#allocation5 + $0x6b8] sm:$0xff]
    %v327 = vld [vmem:[#allocation5 + $0x6c0] sm:$0xff]
    %v328 = vld [vmem:[#allocation5 + $0x6c8] sm:$0xff]
    %v329 = vld [vmem:[#allocation5 + $0x6d0] sm:$0xff]
    %v330 = vld [vmem:[#allocation5 + $0x6d8] sm:$0xff]
    %v331 = vld [vmem:[#allocation5 + $0x6e0] sm:$0xff]
    %v332 = vld [vmem:[#allocation5 + $0x6e8] sm:$0xff]
    %v333 = vld [vmem:[#allocation5 + $0x6f0] sm:$0xff]
    %v334 = vld [vmem:[#allocation5 + $0x6f8] sm:$0xff]
    %v335 = vld [vmem:[#allocation5 + $0x700] sm:$0xff]
    %v336 = vld [vmem:[#allocation5 + $0x708] sm:$0xff]
    %v337 = vld [vmem:[#allocation5 + $0x710] sm:$0xff]
    %v338 = vld [vmem:[#allocation5 + $0x718] sm:$0xff]
    %v339 = vld [vmem:[#allocation5 + $0x720] sm:$0xff]
    %v340 = vld [vmem:[#allocation5 + $0x728] sm:$0xff]
    %v341 = vld [vmem:[#allocation5 + $0x730] sm:$0xff]
    %v342 = vld [vmem:[#allocation5 + $0x738] sm:$0xff]
    %v343 = vld [vmem:[#allocation5 + $0x740] sm:$0xff]
    %v344 = vld [vmem:[#allocation5 + $0x748] sm:$0xff]
    %v345 = vld [vmem:[#allocation5 + $0x750] sm:$0xff]
    %v346 = vld [vmem:[#allocation5 + $0x758] sm:$0xff]
    %v347 = vld [vmem:[#allocation5 + $0x760] sm:$0xff]
    %v348 = vld [vmem:[#allocation5 + $0x768] sm:$0xff]
    %v349 = vld [vmem:[#allocation5 + $0x770] sm:$0xff]
    %v350 = vld [vmem:[#allocation5 + $0x778] sm:$0xff]
    %v351 = vld [vmem:[#allocation5 + $0x780] sm:$0xff]
    %v352 = vld [vmem:[#allocation5 + $0x788] sm:$0xff]
    %v353 = vld [vmem:[#allocation5 + $0x790] sm:$0xff]
    %v354 = vld [vmem:[#allocation5 + $0x798] sm:$0xff]
    %v355 = vld [vmem:[#allocation5 + $0x7a0] sm:$0xff]
    %v356 = vld [vmem:[#allocation5 + $0x7a8] sm:$0xff]
    %v357 = vld [vmem:[#allocation5 + $0x7b0] sm:$0xff]
    %v358 = vld [vmem:[#allocation5 + $0x7b8] sm:$0xff]
    %v359 = vld [vmem:[#allocation5 + $0x7c0] sm:$0xff]
    %v360 = vld [vmem:[#allocation5 + $0x7c8] sm:$0xff]
    %v361 = vld [vmem:[#allocation5 + $0x7d0] sm:$0xff]
    %v362 = vld [vmem:[#allocation5 + $0x7d8] sm:$0xff]
    %v363 = vld [vmem:[#allocation5 + $0x7e0] sm:$0xff]
    %v364 = vld [vmem:[#allocation5 + $0x7e8] sm:$0xff]
    %v365 = vld [vmem:[#allocation5 + $0x7f0] sm:$0xff]
    %v366 = vld [vmem:[#allocation5 + $0x7f8] sm:$0xff]
    %v367 = vld [vmem:[#allocation5 + $0x800] sm:$0xff]
    %v368 = vld [vmem:[#allocation5 + $0x808] sm:$0xff]
    %v369 = vld [vmem:[#allocation5 + $0x810] sm:$0xff]
    %v370 = vld [vmem:[#allocation5 + $0x818] sm:$0xff]
    %v371 = vld [vmem:[#allocation5 + $0x820] sm:$0xff]
    %v372 = vld [vmem:[#allocation5 + $0x828] sm:$0xff]
    %v373 = vld [vmem:[#allocation5 + $0x830] sm:$0xff]
    %v374 = vld [vmem:[#allocation5 + $0x838] sm:$0xff]
    %v375 = vld [vmem:[#allocation5 + $0x840] sm:$0xff]
    %v376 = vld [vmem:[#allocation5 + $0x848] sm:$0xff]
    %v377 = vld [vmem:[#allocation5 + $0x850] sm:$0xff]
    %v378 = vld [vmem:[#allocation5 + $0x858] sm:$0xff]
    %v379 = vld [vmem:[#allocation5 + $0x860] sm:$0xff]
    %v380 = vld [vmem:[#allocation5 + $0x868] sm:$0xff]
    %v381 = vld [vmem:[#allocation5 + $0x870] sm:$0xff]
    %v382 = vld [vmem:[#allocation5 + $0x878] sm:$0xff]
    %v383 = vld [vmem:[#allocation5 + $0x880] sm:$0xff]
    %v384 = vld [vmem:[#allocation5 + $0x888] sm:$0xff]
    %v385 = vld [vmem:[#allocation5 + $0x890] sm:$0xff]
    %v386 = vld [vmem:[#allocation5 + $0x898] sm:$0xff]
    %v387 = vld [vmem:[#allocation5 + $0x8a0] sm:$0xff]
    %v388 = vld [vmem:[#allocation5 + $0x8a8] sm:$0xff]
    %v389 = vld [vmem:[#allocation5 + $0x8b0] sm:$0xff]
    %v390 = vld [vmem:[#allocation5 + $0x8b8] sm:$0xff]
    %v391 = vld [vmem:[#allocation5 + $0x8c0] sm:$0xff]
    %v392 = vld [vmem:[#allocation5 + $0x8c8] sm:$0xff]
    %v393 = vld [vmem:[#allocation5 + $0x8d0] sm:$0xff]
    %v394 = vld [vmem:[#allocation5 + $0x8d8] sm:$0xff]
    %v395 = vld [vmem:[#allocation5 + $0x8e0] sm:$0xff]
    %v396 = vld [vmem:[#allocation5 + $0x8e8] sm:$0xff]
    %v397 = vld [vmem:[#allocation5 + $0x8f0] sm:$0xff]
    %v398 = vld [vmem:[#allocation5 + $0x8f8] sm:$0xff]
    %v399 = vld [vmem:[#allocation5 + $0x900] sm:$0xff]
    %v400 = vld [vmem:[#allocation5 + $0x908] sm:$0xff]
    %v401 = vld [vmem:[#allocation5 + $0x910] sm:$0xff]
    %v402 = vld [vmem:[#allocation5 + $0x918] sm:$0xff]
    %v403 = vld [vmem:[#allocation5 + $0x920] sm:$0xff]
    %v404 = vld [vmem:[#allocation5 + $0x928] sm:$0xff]
    %v405 = vld [vmem:[#allocation5 + $0x930] sm:$0xff]
    %v406 = vld [vmem:[#allocation5 + $0x938] sm:$0xff]
    %v407 = vld [vmem:[#allocation5 + $0x940] sm:$0xff]
    %v408 = vld [vmem:[#allocation5 + $0x948] sm:$0xff]
    %v409 = vld [vmem:[#allocation5 + $0x950] sm:$0xff]
    %v410 = vld [vmem:[#allocation5 + $0x958] sm:$0xff]
    %v411 = vld [vmem:[#allocation5 + $0x960] sm:$0xff]
    %v412 = vld [vmem:[#allocation5 + $0x968] sm:$0xff]
    %v413 = vld [vmem:[#allocation5 + $0x970] sm:$0xff]
    %v414 = vld [vmem:[#allocation5 + $0x978] sm:$0xff]
    %v415 = vld [vmem:[#allocation5 + $0x980] sm:$0xff]
    %v416 = vld [vmem:[#allocation5 + $0x988] sm:$0xff]
    %v417 = vld [vmem:[#allocation5 + $0x990] sm:$0xff]
    %v418 = vld [vmem:[#allocation5 + $0x998] sm:$0xff]
    %v419 = vld [vmem:[#allocation5 + $0x9a0] sm:$0xff]
    %v420 = vld [vmem:[#allocation5 + $0x9a8] sm:$0xff]
    %v421 = vld [vmem:[#allocation5 + $0x9b0] sm:$0xff]
    %v422 = vld [vmem:[#allocation5 + $0x9b8] sm:$0xff]
    %v423 = vld [vmem:[#allocation5 + $0x9c0] sm:$0xff]
    %v424 = vld [vmem:[#allocation5 + $0x9c8] sm:$0xff]
    %v425 = vld [vmem:[#allocation5 + $0x9d0] sm:$0xff]
    %v426 = vld [vmem:[#allocation5 + $0x9d8] sm:$0xff]
    %v427 = vld [vmem:[#allocation5 + $0x9e0] sm:$0xff]
    %v428 = vld [vmem:[#allocation5 + $0x9e8] sm:$0xff]
    %v429 = vld [vmem:[#allocation5 + $0x9f0] sm:$0xff]
    %v430 = vld [vmem:[#allocation5 + $0x9f8] sm:$0xff]
    %v431 = vld [vmem:[#allocation5 + $0xa00] sm:$0xff]
    %v432 = vld [vmem:[#allocation5 + $0xa08] sm:$0xff]
    %v433 = vld [vmem:[#allocation5 + $0xa10] sm:$0xff]
    %v434 = vld [vmem:[#allocation5 + $0xa18] sm:$0xff]
    %v435 = vld [vmem:[#allocation5 + $0xa20] sm:$0xff]
    %v436 = vld [vmem:[#allocation5 + $0xa28] sm:$0xff]
    %v437 = vld [vmem:[#allocation5 + $0xa30] sm:$0xff]
    %v438 = vld [vmem:[#allocation5 + $0xa38] sm:$0xff]
    %v439 = vld [vmem:[#allocation5 + $0xa40] sm:$0xff]
    %v440 = vld [vmem:[#allocation5 + $0xa48] sm:$0xff]
    %v441 = vld [vmem:[#allocation5 + $0xa50] sm:$0xff]
    %v442 = vld [vmem:[#allocation5 + $0xa58] sm:$0xff]
    %v443 = vld [vmem:[#allocation5 + $0xa60] sm:$0xff]
    %v444 = vld [vmem:[#allocation5 + $0xa68] sm:$0xff]
    %v445 = vld [vmem:[#allocation5 + $0xa70] sm:$0xff]
    %v446 = vld [vmem:[#allocation5 + $0xa78] sm:$0xff]
    %v447 = vld [vmem:[#allocation5 + $0xa80] sm:$0xff]
    %v448 = vld [vmem:[#allocation5 + $0xa88] sm:$0xff]
    %v449 = vld [vmem:[#allocation5 + $0xa90] sm:$0xff]
    %v450 = vld [vmem:[#allocation5 + $0xa98] sm:$0xff]
    %v451 = vld [vmem:[#allocation5 + $0xaa0] sm:$0xff]
    %v452 = vld [vmem:[#allocation5 + $0xaa8] sm:$0xff]
    %v453 = vld [vmem:[#allocation5 + $0xab0] sm:$0xff]
    %v454 = vld [vmem:[#allocation5 + $0xab8] sm:$0xff]
    %v455 = vld [vmem:[#allocation5 + $0xac0] sm:$0xff]
    %v456 = vld [vmem:[#allocation5 + $0xac8] sm:$0xff]
    %v457 = vld [vmem:[#allocation5 + $0xad0] sm:$0xff]
    %v458 = vld [vmem:[#allocation5 + $0xad8] sm:$0xff]
    %v459 = vld [vmem:[#allocation5 + $0xae0] sm:$0xff]
    %v460 = vld [vmem:[#allocation5 + $0xae8] sm:$0xff]
    %v461 = vld [vmem:[#allocation5 + $0xaf0] sm:$0xff]
    %v462 = vld [vmem:[#allocation5 + $0xaf8] sm:$0xff]
    %v463 = vld [vmem:[#allocation5 + $0xb00] sm:$0xff]
    %v464 = vld [vmem:[#allocation5 + $0xb08] sm:$0xff]
    %v465 = vld [vmem:[#allocation5 + $0xb10] sm:$0xff]
    %v466 = vld [vmem:[#allocation5 + $0xb18] sm:$0xff]
    %v467 = vld [vmem:[#allocation5 + $0xb20] sm:$0xff]
    %v468 = vld [vmem:[#allocation5 + $0xb28] sm:$0xff]
    %v469 = vld [vmem:[#allocation5 + $0xb30] sm:$0xff]
    %v470 = vld [vmem:[#allocation5 + $0xb38] sm:$0xff]
    %v471 = vld [vmem:[#allocation5 + $0xb40] sm:$0xff]
    %v472 = vld [vmem:[#allocation5 + $0xb48] sm:$0xff]
    %v473 = vld [vmem:[#allocation5 + $0xb50] sm:$0xff]
    %v474 = vld [vmem:[#allocation5 + $0xb58] sm:$0xff]
    %v475 = vld [vmem:[#allocation5 + $0xb60] sm:$0xff]
    %v476 = vld [vmem:[#allocation5 + $0xb68] sm:$0xff]
    %v477 = vld [vmem:[#allocation5 + $0xb70] sm:$0xff]
    %v478 = vld [vmem:[#allocation5 + $0xb78] sm:$0xff]
    %v479 = vld [vmem:[#allocation5 + $0xb80] sm:$0xff]
    %v480 = vld [vmem:[#allocation5 + $0xb88] sm:$0xff]
    %v481 = vld [vmem:[#allocation5 + $0xb90] sm:$0xff]
    %v482 = vld [vmem:[#allocation5 + $0xb98] sm:$0xff]
    %v483 = vld [vmem:[#allocation5 + $0xba0] sm:$0xff]
    %v484 = vld [vmem:[#allocation5 + $0xba8] sm:$0xff]
    %v485 = vld [vmem:[#allocation5 + $0xbb0] sm:$0xff]
    %v486 = vld [vmem:[#allocation5 + $0xbb8] sm:$0xff]
    %v487 = vld [vmem:[#allocation5 + $0xbc0] sm:$0xff]
    %v488 = vld [vmem:[#allocation5 + $0xbc8] sm:$0xff]
    %v489 = vld [vmem:[#allocation5 + $0xbd0] sm:$0xff]
    %v490 = vld [vmem:[#allocation5 + $0xbd8] sm:$0xff]
    %v491 = vld [vmem:[#allocation5 + $0xbe0] sm:$0xff]
    %v492 = vld [vmem:[#allocation5 + $0xbe8] sm:$0xff]
    %v493 = vld [vmem:[#allocation5 + $0xbf0] sm:$0xff]
    %v494 = vld [vmem:[#allocation5 + $0xbf8] sm:$0xff]
    %v495 = vld [vmem:[#allocation5 + $0xc00] sm:$0xff]
    %v496 = vld [vmem:[#allocation5 + $0xc08] sm:$0xff]
    %v497 = vld [vmem:[#allocation5 + $0xc10] sm:$0xff]
    %v498 = vld [vmem:[#allocation5 + $0xc18] sm:$0xff]
    %v499 = vld [vmem:[#allocation5 + $0xc20] sm:$0xff]
    %v500 = vld [vmem:[#allocation5 + $0xc28] sm:$0xff]
    %v501 = vld [vmem:[#allocation5 + $0xc30] sm:$0xff]
    %v502 = vld [vmem:[#allocation5 + $0xc38] sm:$0xff]
    %v503 = vld [vmem:[#allocation5 + $0xc40] sm:$0xff]
    %v504 = vld [vmem:[#allocation5 + $0xc48] sm:$0xff]
    %v505 = vld [vmem:[#allocation5 + $0xc50] sm:$0xff]
    %v506 = vld [vmem:[#allocation5 + $0xc58] sm:$0xff]
    %v507 = vld [vmem:[#allocation5 + $0xc60] sm:$0xff]
    %v508 = vld [vmem:[#allocation5 + $0xc68] sm:$0xff]
    %v509 = vld [vmem:[#allocation5 + $0xc70] sm:$0xff]
    %v510 = vld [vmem:[#allocation5 + $0xc78] sm:$0xff]
    %v511 = vld [vmem:[#allocation5 + $0xc80] sm:$0xff]
    %v512 = vld [vmem:[#allocation5 + $0xc88] sm:$0xff]
    %v513 = vld [vmem:[#allocation5 + $0xc90] sm:$0xff]
    %v514 = vld [vmem:[#allocation5 + $0xc98] sm:$0xff]
    %v515 = vld [vmem:[#allocation5 + $0xca0] sm:$0xff]
    %v516 = vld [vmem:[#allocation5 + $0xca8] sm:$0xff]
    %v517 = vld [vmem:[#allocation5 + $0xcb0] sm:$0xff]
    %v518 = vld [vmem:[#allocation5 + $0xcb8] sm:$0xff]
    %v519 = vld [vmem:[#allocation5 + $0xcc0] sm:$0xff]
    %v520 = vld [vmem:[#allocation5 + $0xcc8] sm:$0xff]
    %v521 = vld [vmem:[#allocation5 + $0xcd0] sm:$0xff]
    %v522 = vld [vmem:[#allocation5 + $0xcd8] sm:$0xff]
    %v523 = vld [vmem:[#allocation5 + $0xce0] sm:$0xff]
    %v524 = vld [vmem:[#allocation5 + $0xce8] sm:$0xff]
    %v525 = vld [vmem:[#allocation5 + $0xcf0] sm:$0xff]
    %v526 = vld [vmem:[#allocation5 + $0xcf8] sm:$0xff]
    %v527 = vld [vmem:[#allocation5 + $0xd00] sm:$0xff]
    %v528 = vld [vmem:[#allocation5 + $0xd08] sm:$0xff]
    %v529 = vld [vmem:[#allocation5 + $0xd10] sm:$0xff]
    %v530 = vld [vmem:[#allocation5 + $0xd18] sm:$0xff]
    %v531 = vld [vmem:[#allocation5 + $0xd20] sm:$0xff]
    %v532 = vld [vmem:[#allocation5 + $0xd28] sm:$0xff]
    %v533 = vld [vmem:[#allocation5 + $0xd30] sm:$0xff]
    %v534 = vld [vmem:[#allocation5 + $0xd38] sm:$0xff]
    %v535 = vld [vmem:[#allocation5 + $0xd40] sm:$0xff]
    %v536 = vld [vmem:[#allocation5 + $0xd48] sm:$0xff]
    %v537 = vld [vmem:[#allocation5 + $0xd50] sm:$0xff]
    %v538 = vld [vmem:[#allocation5 + $0xd58] sm:$0xff]
    %v539 = vld [vmem:[#allocation5 + $0xd60] sm:$0xff]
    %v540 = vld [vmem:[#allocation5 + $0xd68] sm:$0xff]
    %v541 = vld [vmem:[#allocation5 + $0xd70] sm:$0xff]
    %v542 = vld [vmem:[#allocation5 + $0xd78] sm:$0xff]
    %v543 = vld [vmem:[#allocation5 + $0xd80] sm:$0xff]
    %v544 = vld [vmem:[#allocation5 + $0xd88] sm:$0xff]
    %v545 = vld [vmem:[#allocation5 + $0xd90] sm:$0xff]
    %v546 = vld [vmem:[#allocation5 + $0xd98] sm:$0xff]
    %v547 = vld [vmem:[#allocation5 + $0xda0] sm:$0xff]
    %v548 = vld [vmem:[#allocation5 + $0xda8] sm:$0xff]
    %v549 = vld [vmem:[#allocation5 + $0xdb0] sm:$0xff]
    %v550 = vld [vmem:[#allocation5 + $0xdb8] sm:$0xff]
    %v551 = vld [vmem:[#allocation5 + $0xdc0] sm:$0xff]
    %v552 = vld [vmem:[#allocation5 + $0xdc8] sm:$0xff]
    %v553 = vld [vmem:[#allocation5 + $0xdd0] sm:$0xff]
    %v554 = vld [vmem:[#allocation5 + $0xdd8] sm:$0xff]
    %v555 = vld [vmem:[#allocation5 + $0xde0] sm:$0xff]
    %v556 = vld [vmem:[#allocation5 + $0xde8] sm:$0xff]
    %v557 = vld [vmem:[#allocation5 + $0xdf0] sm:$0xff]
    %v558 = vld [vmem:[#allocation5 + $0xdf8] sm:$0xff]
    %v559 = vld [vmem:[#allocation5 + $0xe00] sm:$0xff]
    %v560 = vld [vmem:[#allocation5 + $0xe08] sm:$0xff]
    %v561 = vld [vmem:[#allocation5 + $0xe10] sm:$0xff]
    %v562 = vld [vmem:[#allocation5 + $0xe18] sm:$0xff]
    %v563 = vld [vmem:[#allocation5 + $0xe20] sm:$0xff]
    %v564 = vld [vmem:[#allocation5 + $0xe28] sm:$0xff]
    %v565 = vld [vmem:[#allocation5 + $0xe30] sm:$0xff]
    %v566 = vld [vmem:[#allocation5 + $0xe38] sm:$0xff]
    %v567 = vld [vmem:[#allocation5 + $0xe40] sm:$0xff]
    %v568 = vld [vmem:[#allocation5 + $0xe48] sm:$0xff]
    %v569 = vld [vmem:[#allocation5 + $0xe50] sm:$0xff]
    %v570 = vld [vmem:[#allocation5 + $0xe58] sm:$0xff]
    %v571 = vld [vmem:[#allocation5 + $0xe60] sm:$0xff]
    %v572 = vld [vmem:[#allocation5 + $0xe68] sm:$0xff]
    %v573 = vld [vmem:[#allocation5 + $0xe70] sm:$0xff]
    %v574 = vld [vmem:[#allocation5 + $0xe78] sm:$0xff]
    %v575 = vld [vmem:[#allocation5 + $0xe80] sm:$0xff]
    %v576 = vld [vmem:[#allocation5 + $0xe88] sm:$0xff]
    %v577 = vld [vmem:[#allocation5 + $0xe90] sm:$0xff]
    %v578 = vld [vmem:[#allocation5 + $0xe98] sm:$0xff]
    %v579 = vld [vmem:[#allocation5 + $0xea0] sm:$0xff]
    %v580 = vld [vmem:[#allocation5 + $0xea8] sm:$0xff]
    %v581 = vld [vmem:[#allocation5 + $0xeb0] sm:$0xff]
    %v582 = vld [vmem:[#allocation5 + $0xeb8] sm:$0xff]
    %v583 = vld [vmem:[#allocation5 + $0xec0] sm:$0xff]
    %v584 = vld [vmem:[#allocation5 + $0xec8] sm:$0xff]
    %v585 = vld [vmem:[#allocation5 + $0xed0] sm:$0xff]
    %v586 = vld [vmem:[#allocation5 + $0xed8] sm:$0xff]
    %v587 = vld [vmem:[#allocation5 + $0xee0] sm:$0xff]
    %v588 = vld [vmem:[#allocation5 + $0xee8] sm:$0xff]
    %v589 = vld [vmem:[#allocation5 + $0xef0] sm:$0xff]
    %v590 = vld [vmem:[#allocation5 + $0xef8] sm:$0xff]
    %v591 = vld [vmem:[#allocation7] sm:$0xf]
    %v593 = vperm.slane %v591, 0
    %v594 = vperm.slane %v591, 1
    %v595 = vperm.slane %v591, 2
    %v596 = vperm.slane %v591, 3
    %v617 = vunpack.c.l.b16 %v95
    %v618 = vunpack.c.h.b16 %v95
    %v619 = vunpack.c.l.b16 %v96
    %v620 = vunpack.c.h.b16 %v96
    %v621 = vunpack.c.l.b16 %v97
    %v622 = vunpack.c.h.b16 %v97
    %v623 = vunpack.c.l.b16 %v98
    %v624 = vunpack.c.h.b16 %v98
    %v625 = vunpack.c.l.b16 %v99
    %v626 = vunpack.c.h.b16 %v99
    %v627 = vunpack.c.l.b16 %v100
    %v628 = vunpack.c.h.b16 %v100
    %v629 = vunpack.c.l.b16 %v101
    %v630 = vunpack.c.h.b16 %v101
    %v631 = vunpack.c.l.b16 %v102
    %v632 = vunpack.c.l.b16 %v103
    %v633 = vunpack.c.h.b16 %v103
    %v634 = vunpack.c.l.b16 %v104
    %v635 = vunpack.c.h.b16 %v104
    %v636 = vunpack.c.l.b16 %v105
    %v637 = vunpack.c.h.b16 %v105
    %v638 = vunpack.c.l.b16 %v106
    %v639 = vunpack.c.h.b16 %v106
    %v640 = vunpack.c.l.b16 %v107
    %v641 = vunpack.c.h.b16 %v107
    %v642 = vunpack.c.l.b16 %v108
    %v643 = vunpack.c.h.b16 %v108
    %v644 = vunpack.c.l.b16 %v109
    %v645 = vunpack.c.h.b16 %v109
    %v646 = vunpack.c.l.b16 %v110
    %v647 = vpack.c.b16 %v632, %v617
    %v648 = vpack.c.b16 %v633, %v618
    %v649 = vpack.c.b16 %v634, %v619
    %v650 = vpack.c.b16 %v635, %v620
    %v651 = vpack.c.b16 %v636, %v621
    %v652 = vpack.c.b16 %v637, %v622
    %v653 = vpack.c.b16 %v638, %v623
    %v654 = vpack.c.b16 %v639, %v624
    %v655 = vpack.c.b16 %v640, %v625
    %v656 = vpack.c.b16 %v641, %v626
    %v657 = vpack.c.b16 %v642, %v627
    %v658 = vpack.c.b16 %v643, %v628
    %v659 = vpack.c.b16 %v644, %v629
    %v660 = vpack.c.b16 %v645, %v630
    %v661 = vpack.c.b16 %v646, %v631
    %v1157 = vunpack.c.l.b16 %v111
    %v1158 = vunpack.c.h.b16 %v111
    %v1159 = vunpack.c.l.b16 %v112
    %v1160 = vunpack.c.h.b16 %v112
    %v1161 = vunpack.c.l.b16 %v113
    %v1162 = vunpack.c.h.b16 %v113
    %v1163 = vunpack.c.l.b16 %v114
    %v1164 = vunpack.c.h.b16 %v114
    %v1165 = vunpack.c.l.b16 %v115
    %v1166 = vunpack.c.h.b16 %v115
    %v1167 = vunpack.c.l.b16 %v116
    %v1168 = vunpack.c.h.b16 %v116
    %v1169 = vunpack.c.l.b16 %v117
    %v1170 = vunpack.c.h.b16 %v117
    %v1171 = vunpack.c.l.b16 %v118
    %v1172 = vunpack.c.h.b16 %v118
    %v1173 = vunpack.c.l.b16 %v119
    %v1174 = vunpack.c.h.b16 %v119
    %v1175 = vunpack.c.l.b16 %v120
    %v1176 = vunpack.c.h.b16 %v120
    %v1177 = vunpack.c.l.b16 %v121
    %v1178 = vunpack.c.h.b16 %v121
    %v1179 = vunpack.c.l.b16 %v122
    %v1180 = vunpack.c.h.b16 %v122
    %v1181 = vunpack.c.l.b16 %v123
    %v1182 = vunpack.c.h.b16 %v123
    %v1183 = vunpack.c.l.b16 %v124
    %v1184 = vunpack.c.h.b16 %v124
    %v1185 = vunpack.c.l.b16 %v125
    %v1186 = vunpack.c.h.b16 %v125
    %v1187 = vunpack.c.l.b16 %v126
    %v1188 = vunpack.c.h.b16 %v126
    %v1189 = vunpack.c.l.b16 %v127
    %v1190 = vunpack.c.h.b16 %v127
    %v1191 = vunpack.c.l.b16 %v128
    %v1192 = vunpack.c.h.b16 %v128
    %v1193 = vunpack.c.l.b16 %v129
    %v1194 = vunpack.c.h.b16 %v129
    %v1195 = vunpack.c.l.b16 %v130
    %v1196 = vunpack.c.h.b16 %v130
    %v1197 = vunpack.c.l.b16 %v131
    %v1198 = vunpack.c.h.b16 %v131
    %v1199 = vunpack.c.l.b16 %v132
    %v1200 = vunpack.c.h.b16 %v132
    %v1201 = vunpack.c.l.b16 %v133
    %v1202 = vunpack.c.h.b16 %v133
    %v1203 = vunpack.c.l.b16 %v134
    %v1204 = vunpack.c.h.b16 %v134
    %v1205 = vunpack.c.l.b16 %v135
    %v1206 = vunpack.c.h.b16 %v135
    %v1207 = vunpack.c.l.b16 %v136
    %v1208 = vunpack.c.h.b16 %v136
    %v1209 = vunpack.c.l.b16 %v137
    %v1210 = vunpack.c.h.b16 %v137
    %v1211 = vunpack.c.l.b16 %v138
    %v1212 = vunpack.c.h.b16 %v138
    %v1213 = vunpack.c.l.b16 %v139
    %v1214 = vunpack.c.h.b16 %v139
    %v1215 = vunpack.c.l.b16 %v140
    %v1216 = vunpack.c.h.b16 %v140
    %v1217 = vunpack.c.l.b16 %v141
    %v1218 = vunpack.c.h.b16 %v141
    %v1219 = vunpack.c.l.b16 %v142
    %v1220 = vunpack.c.h.b16 %v142
    %v1221 = vunpack.c.l.b16 %v143
    %v1222 = vunpack.c.h.b16 %v143
    %v1223 = vunpack.c.l.b16 %v144
    %v1224 = vunpack.c.h.b16 %v144
    %v1225 = vunpack.c.l.b16 %v145
    %v1226 = vunpack.c.h.b16 %v145
    %v1227 = vunpack.c.l.b16 %v146
    %v1228 = vunpack.c.h.b16 %v146
    %v1229 = vunpack.c.l.b16 %v147
    %v1230 = vunpack.c.h.b16 %v147
    %v1231 = vunpack.c.l.b16 %v148
    %v1232 = vunpack.c.h.b16 %v148
    %v1233 = vunpack.c.l.b16 %v149
    %v1234 = vunpack.c.h.b16 %v149
    %v1235 = vunpack.c.l.b16 %v150
    %v1236 = vunpack.c.h.b16 %v150
    %v1237 = vunpack.c.l.b16 %v151
    %v1238 = vunpack.c.h.b16 %v151
    %v1239 = vunpack.c.l.b16 %v152
    %v1240 = vunpack.c.h.b16 %v152
    %v1241 = vunpack.c.l.b16 %v153
    %v1242 = vunpack.c.h.b16 %v153
    %v1243 = vunpack.c.l.b16 %v154
    %v1244 = vunpack.c.h.b16 %v154
    %v1245 = vunpack.c.l.b16 %v155
    %v1246 = vunpack.c.h.b16 %v155
    %v1247 = vunpack.c.l.b16 %v156
    %v1248 = vunpack.c.h.b16 %v156
    %v1249 = vunpack.c.l.b16 %v157
    %v1250 = vunpack.c.h.b16 %v157
    %v1251 = vunpack.c.l.b16 %v158
    %v1252 = vunpack.c.h.b16 %v158
    %v1253 = vunpack.c.l.b16 %v159
    %v1254 = vunpack.c.h.b16 %v159
    %v1255 = vunpack.c.l.b16 %v160
    %v1256 = vunpack.c.h.b16 %v160
    %v1257 = vunpack.c.l.b16 %v161
    %v1258 = vunpack.c.h.b16 %v161
    %v1259 = vunpack.c.l.b16 %v162
    %v1260 = vunpack.c.h.b16 %v162
    %v1261 = vunpack.c.l.b16 %v163
    %v1262 = vunpack.c.h.b16 %v163
    %v1263 = vunpack.c.l.b16 %v164
    %v1264 = vunpack.c.h.b16 %v164
    %v1265 = vunpack.c.l.b16 %v165
    %v1266 = vunpack.c.h.b16 %v165
    %v1267 = vunpack.c.l.b16 %v166
    %v1268 = vunpack.c.h.b16 %v166
    %v1269 = vunpack.c.l.b16 %v167
    %v1270 = vunpack.c.h.b16 %v167
    %v1271 = vunpack.c.l.b16 %v168
    %v1272 = vunpack.c.h.b16 %v168
    %v1273 = vunpack.c.l.b16 %v169
    %v1274 = vunpack.c.h.b16 %v169
    %v1275 = vunpack.c.l.b16 %v170
    %v1276 = vunpack.c.h.b16 %v170
    %v1277 = vunpack.c.l.b16 %v171
    %v1278 = vunpack.c.h.b16 %v171
    %v1279 = vunpack.c.l.b16 %v172
    %v1280 = vunpack.c.h.b16 %v172
    %v1281 = vunpack.c.l.b16 %v173
    %v1282 = vunpack.c.h.b16 %v173
    %v1283 = vunpack.c.l.b16 %v174
    %v1284 = vunpack.c.h.b16 %v174
    %v1285 = vunpack.c.l.b16 %v175
    %v1286 = vunpack.c.h.b16 %v175
    %v1287 = vunpack.c.l.b16 %v176
    %v1288 = vunpack.c.h.b16 %v176
    %v1289 = vunpack.c.l.b16 %v177
    %v1290 = vunpack.c.h.b16 %v177
    %v1291 = vunpack.c.l.b16 %v178
    %v1292 = vunpack.c.h.b16 %v178
    %v1293 = vunpack.c.l.b16 %v179
    %v1294 = vunpack.c.h.b16 %v179
    %v1295 = vunpack.c.l.b16 %v180
    %v1296 = vunpack.c.h.b16 %v180
    %v1297 = vunpack.c.l.b16 %v181
    %v1298 = vunpack.c.h.b16 %v181
    %v1299 = vunpack.c.l.b16 %v182
    %v1300 = vunpack.c.h.b16 %v182
    %v1301 = vunpack.c.l.b16 %v183
    %v1302 = vunpack.c.h.b16 %v183
    %v1303 = vunpack.c.l.b16 %v184
    %v1304 = vunpack.c.h.b16 %v184
    %v1305 = vunpack.c.l.b16 %v185
    %v1306 = vunpack.c.h.b16 %v185
    %v1307 = vunpack.c.l.b16 %v186
    %v1308 = vunpack.c.h.b16 %v186
    %v1309 = vunpack.c.l.b16 %v187
    %v1310 = vunpack.c.h.b16 %v187
    %v1311 = vunpack.c.l.b16 %v188
    %v1312 = vunpack.c.h.b16 %v188
    %v1313 = vunpack.c.l.b16 %v189
    %v1314 = vunpack.c.h.b16 %v189
    %v1315 = vunpack.c.l.b16 %v190
    %v1316 = vunpack.c.h.b16 %v190
    %v1317 = vunpack.c.l.b16 %v191
    %v1318 = vunpack.c.h.b16 %v191
    %v1319 = vunpack.c.l.b16 %v192
    %v1320 = vunpack.c.h.b16 %v192
    %v1321 = vunpack.c.l.b16 %v193
    %v1322 = vunpack.c.h.b16 %v193
    %v1323 = vunpack.c.l.b16 %v194
    %v1324 = vunpack.c.h.b16 %v194
    %v1325 = vunpack.c.l.b16 %v195
    %v1326 = vunpack.c.h.b16 %v195
    %v1327 = vunpack.c.l.b16 %v196
    %v1328 = vunpack.c.h.b16 %v196
    %v1329 = vunpack.c.l.b16 %v197
    %v1330 = vunpack.c.h.b16 %v197
    %v1331 = vunpack.c.l.b16 %v198
    %v1332 = vunpack.c.h.b16 %v198
    %v1333 = vunpack.c.l.b16 %v199
    %v1334 = vunpack.c.h.b16 %v199
    %v1335 = vunpack.c.l.b16 %v200
    %v1336 = vunpack.c.h.b16 %v200
    %v1337 = vunpack.c.l.b16 %v201
    %v1338 = vunpack.c.h.b16 %v201
    %v1339 = vunpack.c.l.b16 %v202
    %v1340 = vunpack.c.h.b16 %v202
    %v1341 = vunpack.c.l.b16 %v203
    %v1342 = vunpack.c.h.b16 %v203
    %v1343 = vunpack.c.l.b16 %v204
    %v1344 = vunpack.c.h.b16 %v204
    %v1345 = vunpack.c.l.b16 %v205
    %v1346 = vunpack.c.h.b16 %v205
    %v1347 = vunpack.c.l.b16 %v206
    %v1348 = vunpack.c.h.b16 %v206
    %v1349 = vunpack.c.l.b16 %v207
    %v1350 = vunpack.c.h.b16 %v207
    %v1351 = vunpack.c.l.b16 %v208
    %v1352 = vunpack.c.h.b16 %v208
    %v1353 = vunpack.c.l.b16 %v209
    %v1354 = vunpack.c.h.b16 %v209
    %v1355 = vunpack.c.l.b16 %v210
    %v1356 = vunpack.c.h.b16 %v210
    %v1357 = vunpack.c.l.b16 %v211
    %v1358 = vunpack.c.h.b16 %v211
    %v1359 = vunpack.c.l.b16 %v212
    %v1360 = vunpack.c.h.b16 %v212
    %v1361 = vunpack.c.l.b16 %v213
    %v1362 = vunpack.c.h.b16 %v213
    %v1363 = vunpack.c.l.b16 %v214
    %v1364 = vunpack.c.h.b16 %v214
    %v1365 = vunpack.c.l.b16 %v215
    %v1366 = vunpack.c.h.b16 %v215
    %v1367 = vunpack.c.l.b16 %v216
    %v1368 = vunpack.c.h.b16 %v216
    %v1369 = vunpack.c.l.b16 %v217
    %v1370 = vunpack.c.h.b16 %v217
    %v1371 = vunpack.c.l.b16 %v218
    %v1372 = vunpack.c.h.b16 %v218
    %v1373 = vunpack.c.l.b16 %v219
    %v1374 = vunpack.c.h.b16 %v219
    %v1375 = vunpack.c.l.b16 %v220
    %v1376 = vunpack.c.h.b16 %v220
    %v1377 = vunpack.c.l.b16 %v221
    %v1378 = vunpack.c.h.b16 %v221
    %v1379 = vunpack.c.l.b16 %v222
    %v1380 = vunpack.c.h.b16 %v222
    %v1381 = vunpack.c.l.b16 %v223
    %v1382 = vunpack.c.h.b16 %v223
    %v1383 = vunpack.c.l.b16 %v224
    %v1384 = vunpack.c.h.b16 %v224
    %v1385 = vunpack.c.l.b16 %v225
    %v1386 = vunpack.c.h.b16 %v225
    %v1387 = vunpack.c.l.b16 %v226
    %v1388 = vunpack.c.h.b16 %v226
    %v1389 = vunpack.c.l.b16 %v227
    %v1390 = vunpack.c.h.b16 %v227
    %v1391 = vunpack.c.l.b16 %v228
    %v1392 = vunpack.c.h.b16 %v228
    %v1393 = vunpack.c.l.b16 %v229
    %v1394 = vunpack.c.h.b16 %v229
    %v1395 = vunpack.c.l.b16 %v230
    %v1396 = vunpack.c.h.b16 %v230
    %v1397 = vunpack.c.l.b16 %v231
    %v1398 = vunpack.c.h.b16 %v231
    %v1399 = vunpack.c.l.b16 %v232
    %v1400 = vunpack.c.h.b16 %v232
    %v1401 = vunpack.c.l.b16 %v233
    %v1402 = vunpack.c.h.b16 %v233
    %v1403 = vunpack.c.l.b16 %v234
    %v1404 = vunpack.c.h.b16 %v234
    %v1405 = vunpack.c.l.b16 %v235
    %v1406 = vunpack.c.h.b16 %v235
    %v1407 = vunpack.c.l.b16 %v236
    %v1408 = vunpack.c.h.b16 %v236
    %v1409 = vunpack.c.l.b16 %v237
    %v1410 = vunpack.c.h.b16 %v237
    %v1411 = vunpack.c.l.b16 %v238
    %v1412 = vunpack.c.h.b16 %v238
    %v1413 = vunpack.c.l.b16 %v239
    %v1414 = vunpack.c.h.b16 %v239
    %v1415 = vunpack.c.l.b16 %v240
    %v1416 = vunpack.c.h.b16 %v240
    %v1417 = vunpack.c.l.b16 %v241
    %v1418 = vunpack.c.h.b16 %v241
    %v1419 = vunpack.c.l.b16 %v242
    %v1420 = vunpack.c.h.b16 %v242
    %v1421 = vunpack.c.l.b16 %v243
    %v1422 = vunpack.c.h.b16 %v243
    %v1423 = vunpack.c.l.b16 %v244
    %v1424 = vunpack.c.h.b16 %v244
    %v1425 = vunpack.c.l.b16 %v245
    %v1426 = vunpack.c.h.b16 %v245
    %v1427 = vunpack.c.l.b16 %v246
    %v1428 = vunpack.c.h.b16 %v246
    %v1429 = vunpack.c.l.b16 %v247
    %v1430 = vunpack.c.h.b16 %v247
    %v1431 = vunpack.c.l.b16 %v248
    %v1432 = vunpack.c.h.b16 %v248
    %v1433 = vunpack.c.l.b16 %v249
    %v1434 = vunpack.c.h.b16 %v249
    %v1435 = vunpack.c.l.b16 %v250
    %v1436 = vunpack.c.h.b16 %v250
    %v1437 = vunpack.c.l.b16 %v251
    %v1438 = vunpack.c.h.b16 %v251
    %v1439 = vunpack.c.l.b16 %v252
    %v1440 = vunpack.c.h.b16 %v252
    %v1441 = vunpack.c.l.b16 %v253
    %v1442 = vunpack.c.h.b16 %v253
    %v1443 = vunpack.c.l.b16 %v254
    %v1444 = vunpack.c.h.b16 %v254
    %v1445 = vunpack.c.l.b16 %v255
    %v1446 = vunpack.c.h.b16 %v255
    %v1447 = vunpack.c.l.b16 %v256
    %v1448 = vunpack.c.h.b16 %v256
    %v1449 = vunpack.c.l.b16 %v257
    %v1450 = vunpack.c.h.b16 %v257
    %v1451 = vunpack.c.l.b16 %v258
    %v1452 = vunpack.c.h.b16 %v258
    %v1453 = vunpack.c.l.b16 %v259
    %v1454 = vunpack.c.h.b16 %v259
    %v1455 = vunpack.c.l.b16 %v260
    %v1456 = vunpack.c.h.b16 %v260
    %v1457 = vunpack.c.l.b16 %v261
    %v1458 = vunpack.c.h.b16 %v261
    %v1459 = vunpack.c.l.b16 %v262
    %v1460 = vunpack.c.h.b16 %v262
    %v1461 = vunpack.c.l.b16 %v263
    %v1462 = vunpack.c.h.b16 %v263
    %v1463 = vunpack.c.l.b16 %v264
    %v1464 = vunpack.c.h.b16 %v264
    %v1465 = vunpack.c.l.b16 %v265
    %v1466 = vunpack.c.h.b16 %v265
    %v1467 = vunpack.c.l.b16 %v266
    %v1468 = vunpack.c.h.b16 %v266
    %v1469 = vunpack.c.l.b16 %v267
    %v1470 = vunpack.c.h.b16 %v267
    %v1471 = vunpack.c.l.b16 %v268
    %v1472 = vunpack.c.h.b16 %v268
    %v1473 = vunpack.c.l.b16 %v269
    %v1474 = vunpack.c.h.b16 %v269
    %v1475 = vunpack.c.l.b16 %v270
    %v1476 = vunpack.c.h.b16 %v270
    %v1477 = vunpack.c.l.b16 %v271
    %v1478 = vunpack.c.h.b16 %v271
    %v1479 = vunpack.c.l.b16 %v272
    %v1480 = vunpack.c.h.b16 %v272
    %v1481 = vunpack.c.l.b16 %v273
    %v1482 = vunpack.c.h.b16 %v273
    %v1483 = vunpack.c.l.b16 %v274
    %v1484 = vunpack.c.h.b16 %v274
    %v1485 = vunpack.c.l.b16 %v275
    %v1486 = vunpack.c.h.b16 %v275
    %v1487 = vunpack.c.l.b16 %v276
    %v1488 = vunpack.c.h.b16 %v276
    %v1489 = vunpack.c.l.b16 %v277
    %v1490 = vunpack.c.h.b16 %v277
    %v1491 = vunpack.c.l.b16 %v278
    %v1492 = vunpack.c.h.b16 %v278
    %v1493 = vunpack.c.l.b16 %v279
    %v1494 = vunpack.c.h.b16 %v279
    %v1495 = vunpack.c.l.b16 %v280
    %v1496 = vunpack.c.h.b16 %v280
    %v1497 = vunpack.c.l.b16 %v281
    %v1498 = vunpack.c.h.b16 %v281
    %v1499 = vunpack.c.l.b16 %v282
    %v1500 = vunpack.c.h.b16 %v282
    %v1501 = vunpack.c.l.b16 %v283
    %v1502 = vunpack.c.h.b16 %v283
    %v1503 = vunpack.c.l.b16 %v284
    %v1504 = vunpack.c.h.b16 %v284
    %v1505 = vunpack.c.l.b16 %v285
    %v1506 = vunpack.c.h.b16 %v285
    %v1507 = vunpack.c.l.b16 %v286
    %v1508 = vunpack.c.h.b16 %v286
    %v1509 = vunpack.c.l.b16 %v287
    %v1510 = vunpack.c.h.b16 %v287
    %v1511 = vunpack.c.l.b16 %v288
    %v1512 = vunpack.c.h.b16 %v288
    %v1513 = vunpack.c.l.b16 %v289
    %v1514 = vunpack.c.h.b16 %v289
    %v1515 = vunpack.c.l.b16 %v290
    %v1516 = vunpack.c.h.b16 %v290
    %v1517 = vunpack.c.l.b16 %v291
    %v1518 = vunpack.c.h.b16 %v291
    %v1519 = vunpack.c.l.b16 %v292
    %v1520 = vunpack.c.h.b16 %v292
    %v1521 = vunpack.c.l.b16 %v293
    %v1522 = vunpack.c.h.b16 %v293
    %v1523 = vunpack.c.l.b16 %v294
    %v1524 = vunpack.c.h.b16 %v294
    %v1525 = vunpack.c.l.b16 %v295
    %v1526 = vunpack.c.h.b16 %v295
    %v1527 = vunpack.c.l.b16 %v296
    %v1528 = vunpack.c.h.b16 %v296
    %v1529 = vunpack.c.l.b16 %v297
    %v1530 = vunpack.c.h.b16 %v297
    %v1531 = vunpack.c.l.b16 %v298
    %v1532 = vunpack.c.h.b16 %v298
    %v1533 = vunpack.c.l.b16 %v299
    %v1534 = vunpack.c.h.b16 %v299
    %v1535 = vunpack.c.l.b16 %v300
    %v1536 = vunpack.c.h.b16 %v300
    %v1537 = vunpack.c.l.b16 %v301
    %v1538 = vunpack.c.h.b16 %v301
    %v1539 = vunpack.c.l.b16 %v302
    %v1540 = vunpack.c.h.b16 %v302
    %v1541 = vunpack.c.l.b16 %v303
    %v1542 = vunpack.c.h.b16 %v303
    %v1543 = vunpack.c.l.b16 %v304
    %v1544 = vunpack.c.h.b16 %v304
    %v1545 = vunpack.c.l.b16 %v305
    %v1546 = vunpack.c.h.b16 %v305
    %v1547 = vunpack.c.l.b16 %v306
    %v1548 = vunpack.c.h.b16 %v306
    %v1549 = vunpack.c.l.b16 %v307
    %v1550 = vunpack.c.h.b16 %v307
    %v1551 = vunpack.c.l.b16 %v308
    %v1552 = vunpack.c.h.b16 %v308
    %v1553 = vunpack.c.l.b16 %v309
    %v1554 = vunpack.c.h.b16 %v309
    %v1555 = vunpack.c.l.b16 %v310
    %v1556 = vunpack.c.h.b16 %v310
    %v1557 = vunpack.c.l.b16 %v311
    %v1558 = vunpack.c.h.b16 %v311
    %v1559 = vunpack.c.l.b16 %v312
    %v1560 = vunpack.c.h.b16 %v312
    %v1561 = vunpack.c.l.b16 %v313
    %v1562 = vunpack.c.h.b16 %v313
    %v1563 = vunpack.c.l.b16 %v314
    %v1564 = vunpack.c.h.b16 %v314
    %v1565 = vunpack.c.l.b16 %v315
    %v1566 = vunpack.c.h.b16 %v315
    %v1567 = vunpack.c.l.b16 %v316
    %v1568 = vunpack.c.h.b16 %v316
    %v1569 = vunpack.c.l.b16 %v317
    %v1570 = vunpack.c.h.b16 %v317
    %v1571 = vunpack.c.l.b16 %v318
    %v1572 = vunpack.c.h.b16 %v318
    %v1573 = vunpack.c.l.b16 %v319
    %v1574 = vunpack.c.h.b16 %v319
    %v1575 = vunpack.c.l.b16 %v320
    %v1576 = vunpack.c.h.b16 %v320
    %v1577 = vunpack.c.l.b16 %v321
    %v1578 = vunpack.c.h.b16 %v321
    %v1579 = vunpack.c.l.b16 %v322
    %v1580 = vunpack.c.h.b16 %v322
    %v1581 = vunpack.c.l.b16 %v323
    %v1582 = vunpack.c.h.b16 %v323
    %v1583 = vunpack.c.l.b16 %v324
    %v1584 = vunpack.c.h.b16 %v324
    %v1585 = vunpack.c.l.b16 %v325
    %v1586 = vunpack.c.h.b16 %v325
    %v1587 = vunpack.c.l.b16 %v326
    %v1588 = vunpack.c.h.b16 %v326
    %v1589 = vunpack.c.l.b16 %v327
    %v1590 = vunpack.c.h.b16 %v327
    %v1591 = vunpack.c.l.b16 %v328
    %v1592 = vunpack.c.h.b16 %v328
    %v1593 = vunpack.c.l.b16 %v329
    %v1594 = vunpack.c.h.b16 %v329
    %v1595 = vunpack.c.l.b16 %v330
    %v1596 = vunpack.c.h.b16 %v330
    %v1597 = vunpack.c.l.b16 %v331
    %v1598 = vunpack.c.h.b16 %v331
    %v1599 = vunpack.c.l.b16 %v332
    %v1600 = vunpack.c.h.b16 %v332
    %v1601 = vunpack.c.l.b16 %v333
    %v1602 = vunpack.c.h.b16 %v333
    %v1603 = vunpack.c.l.b16 %v334
    %v1604 = vunpack.c.h.b16 %v334
    %v1605 = vunpack.c.l.b16 %v335
    %v1606 = vunpack.c.h.b16 %v335
    %v1607 = vunpack.c.l.b16 %v336
    %v1608 = vunpack.c.h.b16 %v336
    %v1609 = vunpack.c.l.b16 %v337
    %v1610 = vunpack.c.h.b16 %v337
    %v1611 = vunpack.c.l.b16 %v338
    %v1612 = vunpack.c.h.b16 %v338
    %v1613 = vunpack.c.l.b16 %v339
    %v1614 = vunpack.c.h.b16 %v339
    %v1615 = vunpack.c.l.b16 %v340
    %v1616 = vunpack.c.h.b16 %v340
    %v1617 = vunpack.c.l.b16 %v341
    %v1618 = vunpack.c.h.b16 %v341
    %v1619 = vunpack.c.l.b16 %v342
    %v1620 = vunpack.c.h.b16 %v342
    %v1621 = vunpack.c.l.b16 %v343
    %v1622 = vunpack.c.h.b16 %v343
    %v1623 = vunpack.c.l.b16 %v344
    %v1624 = vunpack.c.h.b16 %v344
    %v1625 = vunpack.c.l.b16 %v345
    %v1626 = vunpack.c.h.b16 %v345
    %v1627 = vunpack.c.l.b16 %v346
    %v1628 = vunpack.c.h.b16 %v346
    %v1629 = vunpack.c.l.b16 %v347
    %v1630 = vunpack.c.h.b16 %v347
    %v1631 = vunpack.c.l.b16 %v348
    %v1632 = vunpack.c.h.b16 %v348
    %v1633 = vunpack.c.l.b16 %v349
    %v1634 = vunpack.c.h.b16 %v349
    %v1635 = vunpack.c.l.b16 %v350
    %v1636 = vunpack.c.h.b16 %v350
    %v1637 = vunpack.c.l.b16 %v351
    %v1638 = vunpack.c.h.b16 %v351
    %v1639 = vunpack.c.l.b16 %v352
    %v1640 = vunpack.c.h.b16 %v352
    %v1641 = vunpack.c.l.b16 %v353
    %v1642 = vunpack.c.h.b16 %v353
    %v1643 = vunpack.c.l.b16 %v354
    %v1644 = vunpack.c.h.b16 %v354
    %v1645 = vunpack.c.l.b16 %v355
    %v1646 = vunpack.c.h.b16 %v355
    %v1647 = vunpack.c.l.b16 %v356
    %v1648 = vunpack.c.h.b16 %v356
    %v1649 = vunpack.c.l.b16 %v357
    %v1650 = vunpack.c.h.b16 %v357
    %v1651 = vunpack.c.l.b16 %v358
    %v1652 = vunpack.c.h.b16 %v358
    %v1653 = vunpack.c.l.b16 %v359
    %v1654 = vunpack.c.h.b16 %v359
    %v1655 = vunpack.c.l.b16 %v360
    %v1656 = vunpack.c.h.b16 %v360
    %v1657 = vunpack.c.l.b16 %v361
    %v1658 = vunpack.c.h.b16 %v361
    %v1659 = vunpack.c.l.b16 %v362
    %v1660 = vunpack.c.h.b16 %v362
    %v1661 = vunpack.c.l.b16 %v363
    %v1662 = vunpack.c.h.b16 %v363
    %v1663 = vunpack.c.l.b16 %v364
    %v1664 = vunpack.c.h.b16 %v364
    %v1665 = vunpack.c.l.b16 %v365
    %v1666 = vunpack.c.h.b16 %v365
    %v1667 = vunpack.c.l.b16 %v366
    %v1668 = vunpack.c.h.b16 %v366
    %v1669 = vunpack.c.l.b16 %v367
    %v1670 = vunpack.c.h.b16 %v367
    %v1671 = vunpack.c.l.b16 %v368
    %v1672 = vunpack.c.h.b16 %v368
    %v1673 = vunpack.c.l.b16 %v369
    %v1674 = vunpack.c.h.b16 %v369
    %v1675 = vunpack.c.l.b16 %v370
    %v1676 = vunpack.c.h.b16 %v370
    %v1677 = vunpack.c.l.b16 %v371
    %v1678 = vunpack.c.h.b16 %v371
    %v1679 = vunpack.c.l.b16 %v372
    %v1680 = vunpack.c.h.b16 %v372
    %v1681 = vunpack.c.l.b16 %v373
    %v1682 = vunpack.c.h.b16 %v373
    %v1683 = vunpack.c.l.b16 %v374
    %v1684 = vunpack.c.h.b16 %v374
    %v1685 = vunpack.c.l.b16 %v375
    %v1686 = vunpack.c.h.b16 %v375
    %v1687 = vunpack.c.l.b16 %v376
    %v1688 = vunpack.c.h.b16 %v376
    %v1689 = vunpack.c.l.b16 %v377
    %v1690 = vunpack.c.h.b16 %v377
    %v1691 = vunpack.c.l.b16 %v378
    %v1692 = vunpack.c.h.b16 %v378
    %v1693 = vunpack.c.l.b16 %v379
    %v1694 = vunpack.c.h.b16 %v379
    %v1695 = vunpack.c.l.b16 %v380
    %v1696 = vunpack.c.h.b16 %v380
    %v1697 = vunpack.c.l.b16 %v381
    %v1698 = vunpack.c.h.b16 %v381
    %v1699 = vunpack.c.l.b16 %v382
    %v1700 = vunpack.c.h.b16 %v382
    %v1701 = vunpack.c.l.b16 %v383
    %v1702 = vunpack.c.h.b16 %v383
    %v1703 = vunpack.c.l.b16 %v384
    %v1704 = vunpack.c.h.b16 %v384
    %v1705 = vunpack.c.l.b16 %v385
    %v1706 = vunpack.c.h.b16 %v385
    %v1707 = vunpack.c.l.b16 %v386
    %v1708 = vunpack.c.h.b16 %v386
    %v1709 = vunpack.c.l.b16 %v387
    %v1710 = vunpack.c.h.b16 %v387
    %v1711 = vunpack.c.l.b16 %v388
    %v1712 = vunpack.c.h.b16 %v388
    %v1713 = vunpack.c.l.b16 %v389
    %v1714 = vunpack.c.h.b16 %v389
    %v1715 = vunpack.c.l.b16 %v390
    %v1716 = vunpack.c.h.b16 %v390
    %v1717 = vunpack.c.l.b16 %v391
    %v1718 = vunpack.c.h.b16 %v391
    %v1719 = vunpack.c.l.b16 %v392
    %v1720 = vunpack.c.h.b16 %v392
    %v1721 = vunpack.c.l.b16 %v393
    %v1722 = vunpack.c.h.b16 %v393
    %v1723 = vunpack.c.l.b16 %v394
    %v1724 = vunpack.c.h.b16 %v394
    %v1725 = vunpack.c.l.b16 %v395
    %v1726 = vunpack.c.h.b16 %v395
    %v1727 = vunpack.c.l.b16 %v396
    %v1728 = vunpack.c.h.b16 %v396
    %v1729 = vunpack.c.l.b16 %v397
    %v1730 = vunpack.c.h.b16 %v397
    %v1731 = vunpack.c.l.b16 %v398
    %v1732 = vunpack.c.h.b16 %v398
    %v1733 = vunpack.c.l.b16 %v399
    %v1734 = vunpack.c.h.b16 %v399
    %v1735 = vunpack.c.l.b16 %v400
    %v1736 = vunpack.c.h.b16 %v400
    %v1737 = vunpack.c.l.b16 %v401
    %v1738 = vunpack.c.h.b16 %v401
    %v1739 = vunpack.c.l.b16 %v402
    %v1740 = vunpack.c.h.b16 %v402
    %v1741 = vunpack.c.l.b16 %v403
    %v1742 = vunpack.c.h.b16 %v403
    %v1743 = vunpack.c.l.b16 %v404
    %v1744 = vunpack.c.h.b16 %v404
    %v1745 = vunpack.c.l.b16 %v405
    %v1746 = vunpack.c.h.b16 %v405
    %v1747 = vunpack.c.l.b16 %v406
    %v1748 = vunpack.c.h.b16 %v406
    %v1749 = vunpack.c.l.b16 %v407
    %v1750 = vunpack.c.h.b16 %v407
    %v1751 = vunpack.c.l.b16 %v408
    %v1752 = vunpack.c.h.b16 %v408
    %v1753 = vunpack.c.l.b16 %v409
    %v1754 = vunpack.c.h.b16 %v409
    %v1755 = vunpack.c.l.b16 %v410
    %v1756 = vunpack.c.h.b16 %v410
    %v1757 = vunpack.c.l.b16 %v411
    %v1758 = vunpack.c.h.b16 %v411
    %v1759 = vunpack.c.l.b16 %v412
    %v1760 = vunpack.c.h.b16 %v412
    %v1761 = vunpack.c.l.b16 %v413
    %v1762 = vunpack.c.h.b16 %v413
    %v1763 = vunpack.c.l.b16 %v414
    %v1764 = vunpack.c.h.b16 %v414
    %v1765 = vunpack.c.l.b16 %v415
    %v1766 = vunpack.c.h.b16 %v415
    %v1767 = vunpack.c.l.b16 %v416
    %v1768 = vunpack.c.h.b16 %v416
    %v1769 = vunpack.c.l.b16 %v417
    %v1770 = vunpack.c.h.b16 %v417
    %v1771 = vunpack.c.l.b16 %v418
    %v1772 = vunpack.c.h.b16 %v418
    %v1773 = vunpack.c.l.b16 %v419
    %v1774 = vunpack.c.h.b16 %v419
    %v1775 = vunpack.c.l.b16 %v420
    %v1776 = vunpack.c.h.b16 %v420
    %v1777 = vunpack.c.l.b16 %v421
    %v1778 = vunpack.c.h.b16 %v421
    %v1779 = vunpack.c.l.b16 %v422
    %v1780 = vunpack.c.h.b16 %v422
    %v1781 = vunpack.c.l.b16 %v423
    %v1782 = vunpack.c.h.b16 %v423
    %v1783 = vunpack.c.l.b16 %v424
    %v1784 = vunpack.c.h.b16 %v424
    %v1785 = vunpack.c.l.b16 %v425
    %v1786 = vunpack.c.h.b16 %v425
    %v1787 = vunpack.c.l.b16 %v426
    %v1788 = vunpack.c.h.b16 %v426
    %v1789 = vunpack.c.l.b16 %v427
    %v1790 = vunpack.c.h.b16 %v427
    %v1791 = vunpack.c.l.b16 %v428
    %v1792 = vunpack.c.h.b16 %v428
    %v1793 = vunpack.c.l.b16 %v429
    %v1794 = vunpack.c.h.b16 %v429
    %v1795 = vunpack.c.l.b16 %v430
    %v1796 = vunpack.c.h.b16 %v430
    %v1797 = vunpack.c.l.b16 %v431
    %v1798 = vunpack.c.h.b16 %v431
    %v1799 = vunpack.c.l.b16 %v432
    %v1800 = vunpack.c.h.b16 %v432
    %v1801 = vunpack.c.l.b16 %v433
    %v1802 = vunpack.c.h.b16 %v433
    %v1803 = vunpack.c.l.b16 %v434
    %v1804 = vunpack.c.h.b16 %v434
    %v1805 = vunpack.c.l.b16 %v435
    %v1806 = vunpack.c.h.b16 %v435
    %v1807 = vunpack.c.l.b16 %v436
    %v1808 = vunpack.c.h.b16 %v436
    %v1809 = vunpack.c.l.b16 %v437
    %v1810 = vunpack.c.h.b16 %v437
    %v1811 = vunpack.c.l.b16 %v438
    %v1812 = vunpack.c.h.b16 %v438
    %v1813 = vunpack.c.l.b16 %v439
    %v1814 = vunpack.c.h.b16 %v439
    %v1815 = vunpack.c.l.b16 %v440
    %v1816 = vunpack.c.h.b16 %v440
    %v1817 = vunpack.c.l.b16 %v441
    %v1818 = vunpack.c.h.b16 %v441
    %v1819 = vunpack.c.l.b16 %v442
    %v1820 = vunpack.c.h.b16 %v442
    %v1821 = vunpack.c.l.b16 %v443
    %v1822 = vunpack.c.h.b16 %v443
    %v1823 = vunpack.c.l.b16 %v444
    %v1824 = vunpack.c.h.b16 %v444
    %v1825 = vunpack.c.l.b16 %v445
    %v1826 = vunpack.c.h.b16 %v445
    %v1827 = vunpack.c.l.b16 %v446
    %v1828 = vunpack.c.h.b16 %v446
    %v1829 = vunpack.c.l.b16 %v447
    %v1830 = vunpack.c.h.b16 %v447
    %v1831 = vunpack.c.l.b16 %v448
    %v1832 = vunpack.c.h.b16 %v448
    %v1833 = vunpack.c.l.b16 %v449
    %v1834 = vunpack.c.h.b16 %v449
    %v1835 = vunpack.c.l.b16 %v450
    %v1836 = vunpack.c.h.b16 %v450
    %v1837 = vunpack.c.l.b16 %v451
    %v1838 = vunpack.c.h.b16 %v451
    %v1839 = vunpack.c.l.b16 %v452
    %v1840 = vunpack.c.h.b16 %v452
    %v1841 = vunpack.c.l.b16 %v453
    %v1842 = vunpack.c.h.b16 %v453
    %v1843 = vunpack.c.l.b16 %v454
    %v1844 = vunpack.c.h.b16 %v454
    %v1845 = vunpack.c.l.b16 %v455
    %v1846 = vunpack.c.h.b16 %v455
    %v1847 = vunpack.c.l.b16 %v456
    %v1848 = vunpack.c.h.b16 %v456
    %v1849 = vunpack.c.l.b16 %v457
    %v1850 = vunpack.c.h.b16 %v457
    %v1851 = vunpack.c.l.b16 %v458
    %v1852 = vunpack.c.h.b16 %v458
    %v1853 = vunpack.c.l.b16 %v459
    %v1854 = vunpack.c.h.b16 %v459
    %v1855 = vunpack.c.l.b16 %v460
    %v1856 = vunpack.c.h.b16 %v460
    %v1857 = vunpack.c.l.b16 %v461
    %v1858 = vunpack.c.h.b16 %v461
    %v1859 = vunpack.c.l.b16 %v462
    %v1860 = vunpack.c.h.b16 %v462
    %v1861 = vunpack.c.l.b16 %v463
    %v1862 = vunpack.c.h.b16 %v463
    %v1863 = vunpack.c.l.b16 %v464
    %v1864 = vunpack.c.h.b16 %v464
    %v1865 = vunpack.c.l.b16 %v465
    %v1866 = vunpack.c.h.b16 %v465
    %v1867 = vunpack.c.l.b16 %v466
    %v1868 = vunpack.c.h.b16 %v466
    %v1869 = vunpack.c.l.b16 %v467
    %v1870 = vunpack.c.h.b16 %v467
    %v1871 = vunpack.c.l.b16 %v468
    %v1872 = vunpack.c.h.b16 %v468
    %v1873 = vunpack.c.l.b16 %v469
    %v1874 = vunpack.c.h.b16 %v469
    %v1875 = vunpack.c.l.b16 %v470
    %v1876 = vunpack.c.h.b16 %v470
    %v1877 = vunpack.c.l.b16 %v471
    %v1878 = vunpack.c.h.b16 %v471
    %v1879 = vunpack.c.l.b16 %v472
    %v1880 = vunpack.c.h.b16 %v472
    %v1881 = vunpack.c.l.b16 %v473
    %v1882 = vunpack.c.h.b16 %v473
    %v1883 = vunpack.c.l.b16 %v474
    %v1884 = vunpack.c.h.b16 %v474
    %v1885 = vunpack.c.l.b16 %v475
    %v1886 = vunpack.c.h.b16 %v475
    %v1887 = vunpack.c.l.b16 %v476
    %v1888 = vunpack.c.h.b16 %v476
    %v1889 = vunpack.c.l.b16 %v477
    %v1890 = vunpack.c.h.b16 %v477
    %v1891 = vunpack.c.l.b16 %v478
    %v1892 = vunpack.c.h.b16 %v478
    %v1893 = vunpack.c.l.b16 %v479
    %v1894 = vunpack.c.h.b16 %v479
    %v1895 = vunpack.c.l.b16 %v480
    %v1896 = vunpack.c.h.b16 %v480
    %v1897 = vunpack.c.l.b16 %v481
    %v1898 = vunpack.c.h.b16 %v481
    %v1899 = vunpack.c.l.b16 %v482
    %v1900 = vunpack.c.h.b16 %v482
    %v1901 = vunpack.c.l.b16 %v483
    %v1902 = vunpack.c.h.b16 %v483
    %v1903 = vunpack.c.l.b16 %v484
    %v1904 = vunpack.c.h.b16 %v484
    %v1905 = vunpack.c.l.b16 %v485
    %v1906 = vunpack.c.h.b16 %v485
    %v1907 = vunpack.c.l.b16 %v486
    %v1908 = vunpack.c.h.b16 %v486
    %v1909 = vunpack.c.l.b16 %v487
    %v1910 = vunpack.c.h.b16 %v487
    %v1911 = vunpack.c.l.b16 %v488
    %v1912 = vunpack.c.h.b16 %v488
    %v1913 = vunpack.c.l.b16 %v489
    %v1914 = vunpack.c.h.b16 %v489
    %v1915 = vunpack.c.l.b16 %v490
    %v1916 = vunpack.c.h.b16 %v490
    %v1917 = vunpack.c.l.b16 %v491
    %v1918 = vunpack.c.h.b16 %v491
    %v1919 = vunpack.c.l.b16 %v492
    %v1920 = vunpack.c.h.b16 %v492
    %v1921 = vunpack.c.l.b16 %v493
    %v1922 = vunpack.c.h.b16 %v493
    %v1923 = vunpack.c.l.b16 %v494
    %v1924 = vunpack.c.h.b16 %v494
    %v1925 = vunpack.c.l.b16 %v495
    %v1926 = vunpack.c.h.b16 %v495
    %v1927 = vunpack.c.l.b16 %v496
    %v1928 = vunpack.c.h.b16 %v496
    %v1929 = vunpack.c.l.b16 %v497
    %v1930 = vunpack.c.h.b16 %v497
    %v1931 = vunpack.c.l.b16 %v498
    %v1932 = vunpack.c.h.b16 %v498
    %v1933 = vunpack.c.l.b16 %v499
    %v1934 = vunpack.c.h.b16 %v499
    %v1935 = vunpack.c.l.b16 %v500
    %v1936 = vunpack.c.h.b16 %v500
    %v1937 = vunpack.c.l.b16 %v501
    %v1938 = vunpack.c.h.b16 %v501
    %v1939 = vunpack.c.l.b16 %v502
    %v1940 = vunpack.c.h.b16 %v502
    %v1941 = vunpack.c.l.b16 %v503
    %v1942 = vunpack.c.h.b16 %v503
    %v1943 = vunpack.c.l.b16 %v504
    %v1944 = vunpack.c.h.b16 %v504
    %v1945 = vunpack.c.l.b16 %v505
    %v1946 = vunpack.c.h.b16 %v505
    %v1947 = vunpack.c.l.b16 %v506
    %v1948 = vunpack.c.h.b16 %v506
    %v1949 = vunpack.c.l.b16 %v507
    %v1950 = vunpack.c.h.b16 %v507
    %v1951 = vunpack.c.l.b16 %v508
    %v1952 = vunpack.c.h.b16 %v508
    %v1953 = vunpack.c.l.b16 %v509
    %v1954 = vunpack.c.h.b16 %v509
    %v1955 = vunpack.c.l.b16 %v510
    %v1956 = vunpack.c.h.b16 %v510
    %v1957 = vunpack.c.l.b16 %v511
    %v1958 = vunpack.c.h.b16 %v511
    %v1959 = vunpack.c.l.b16 %v512
    %v1960 = vunpack.c.h.b16 %v512
    %v1961 = vunpack.c.l.b16 %v513
    %v1962 = vunpack.c.h.b16 %v513
    %v1963 = vunpack.c.l.b16 %v514
    %v1964 = vunpack.c.h.b16 %v514
    %v1965 = vunpack.c.l.b16 %v515
    %v1966 = vunpack.c.h.b16 %v515
    %v1967 = vunpack.c.l.b16 %v516
    %v1968 = vunpack.c.h.b16 %v516
    %v1969 = vunpack.c.l.b16 %v517
    %v1970 = vunpack.c.h.b16 %v517
    %v1971 = vunpack.c.l.b16 %v518
    %v1972 = vunpack.c.h.b16 %v518
    %v1973 = vunpack.c.l.b16 %v519
    %v1974 = vunpack.c.h.b16 %v519
    %v1975 = vunpack.c.l.b16 %v520
    %v1976 = vunpack.c.h.b16 %v520
    %v1977 = vunpack.c.l.b16 %v521
    %v1978 = vunpack.c.h.b16 %v521
    %v1979 = vunpack.c.l.b16 %v522
    %v1980 = vunpack.c.h.b16 %v522
    %v1981 = vunpack.c.l.b16 %v523
    %v1982 = vunpack.c.h.b16 %v523
    %v1983 = vunpack.c.l.b16 %v524
    %v1984 = vunpack.c.h.b16 %v524
    %v1985 = vunpack.c.l.b16 %v525
    %v1986 = vunpack.c.h.b16 %v525
    %v1987 = vunpack.c.l.b16 %v526
    %v1988 = vunpack.c.h.b16 %v526
    %v1989 = vunpack.c.l.b16 %v527
    %v1990 = vunpack.c.h.b16 %v527
    %v1991 = vunpack.c.l.b16 %v528
    %v1992 = vunpack.c.h.b16 %v528
    %v1993 = vunpack.c.l.b16 %v529
    %v1994 = vunpack.c.h.b16 %v529
    %v1995 = vunpack.c.l.b16 %v530
    %v1996 = vunpack.c.h.b16 %v530
    %v1997 = vunpack.c.l.b16 %v531
    %v1998 = vunpack.c.h.b16 %v531
    %v1999 = vunpack.c.l.b16 %v532
    %v2000 = vunpack.c.h.b16 %v532
    %v2001 = vunpack.c.l.b16 %v533
    %v2002 = vunpack.c.h.b16 %v533
    %v2003 = vunpack.c.l.b16 %v534
    %v2004 = vunpack.c.h.b16 %v534
    %v2005 = vunpack.c.l.b16 %v535
    %v2006 = vunpack.c.h.b16 %v535
    %v2007 = vunpack.c.l.b16 %v536
    %v2008 = vunpack.c.h.b16 %v536
    %v2009 = vunpack.c.l.b16 %v537
    %v2010 = vunpack.c.h.b16 %v537
    %v2011 = vunpack.c.l.b16 %v538
    %v2012 = vunpack.c.h.b16 %v538
    %v2013 = vunpack.c.l.b16 %v539
    %v2014 = vunpack.c.h.b16 %v539
    %v2015 = vunpack.c.l.b16 %v540
    %v2016 = vunpack.c.h.b16 %v540
    %v2017 = vunpack.c.l.b16 %v541
    %v2018 = vunpack.c.h.b16 %v541
    %v2019 = vunpack.c.l.b16 %v542
    %v2020 = vunpack.c.h.b16 %v542
    %v2021 = vunpack.c.l.b16 %v543
    %v2022 = vunpack.c.h.b16 %v543
    %v2023 = vunpack.c.l.b16 %v544
    %v2024 = vunpack.c.h.b16 %v544
    %v2025 = vunpack.c.l.b16 %v545
    %v2026 = vunpack.c.h.b16 %v545
    %v2027 = vunpack.c.l.b16 %v546
    %v2028 = vunpack.c.h.b16 %v546
    %v2029 = vunpack.c.l.b16 %v547
    %v2030 = vunpack.c.h.b16 %v547
    %v2031 = vunpack.c.l.b16 %v548
    %v2032 = vunpack.c.h.b16 %v548
    %v2033 = vunpack.c.l.b16 %v549
    %v2034 = vunpack.c.h.b16 %v549
    %v2035 = vunpack.c.l.b16 %v550
    %v2036 = vunpack.c.h.b16 %v550
    %v2037 = vunpack.c.l.b16 %v551
    %v2038 = vunpack.c.h.b16 %v551
    %v2039 = vunpack.c.l.b16 %v552
    %v2040 = vunpack.c.h.b16 %v552
    %v2041 = vunpack.c.l.b16 %v553
    %v2042 = vunpack.c.h.b16 %v553
    %v2043 = vunpack.c.l.b16 %v554
    %v2044 = vunpack.c.h.b16 %v554
    %v2045 = vunpack.c.l.b16 %v555
    %v2046 = vunpack.c.h.b16 %v555
    %v2047 = vunpack.c.l.b16 %v556
    %v2048 = vunpack.c.h.b16 %v556
    %v2049 = vunpack.c.l.b16 %v557
    %v2050 = vunpack.c.h.b16 %v557
    %v2051 = vunpack.c.l.b16 %v558
    %v2052 = vunpack.c.h.b16 %v558
    %v2053 = vunpack.c.l.b16 %v559
    %v2054 = vunpack.c.h.b16 %v559
    %v2055 = vunpack.c.l.b16 %v560
    %v2056 = vunpack.c.h.b16 %v560
    %v2057 = vunpack.c.l.b16 %v561
    %v2058 = vunpack.c.h.b16 %v561
    %v2059 = vunpack.c.l.b16 %v562
    %v2060 = vunpack.c.h.b16 %v562
    %v2061 = vunpack.c.l.b16 %v563
    %v2062 = vunpack.c.h.b16 %v563
    %v2063 = vunpack.c.l.b16 %v564
    %v2064 = vunpack.c.h.b16 %v564
    %v2065 = vunpack.c.l.b16 %v565
    %v2066 = vunpack.c.h.b16 %v565
    %v2067 = vunpack.c.l.b16 %v566
    %v2068 = vunpack.c.h.b16 %v566
    %v2069 = vunpack.c.l.b16 %v567
    %v2070 = vunpack.c.h.b16 %v567
    %v2071 = vunpack.c.l.b16 %v568
    %v2072 = vunpack.c.h.b16 %v568
    %v2073 = vunpack.c.l.b16 %v569
    %v2074 = vunpack.c.h.b16 %v569
    %v2075 = vunpack.c.l.b16 %v570
    %v2076 = vunpack.c.h.b16 %v570
    %v2077 = vunpack.c.l.b16 %v571
    %v2078 = vunpack.c.h.b16 %v571
    %v2079 = vunpack.c.l.b16 %v572
    %v2080 = vunpack.c.h.b16 %v572
    %v2081 = vunpack.c.l.b16 %v573
    %v2082 = vunpack.c.h.b16 %v573
    %v2083 = vunpack.c.l.b16 %v574
    %v2084 = vunpack.c.h.b16 %v574
    %v2085 = vunpack.c.l.b16 %v575
    %v2086 = vunpack.c.h.b16 %v575
    %v2087 = vunpack.c.l.b16 %v576
    %v2088 = vunpack.c.h.b16 %v576
    %v2089 = vunpack.c.l.b16 %v577
    %v2090 = vunpack.c.h.b16 %v577
    %v2091 = vunpack.c.l.b16 %v578
    %v2092 = vunpack.c.h.b16 %v578
    %v2093 = vunpack.c.l.b16 %v579
    %v2094 = vunpack.c.h.b16 %v579
    %v2095 = vunpack.c.l.b16 %v580
    %v2096 = vunpack.c.h.b16 %v580
    %v2097 = vunpack.c.l.b16 %v581
    %v2098 = vunpack.c.h.b16 %v581
    %v2099 = vunpack.c.l.b16 %v582
    %v2100 = vunpack.c.h.b16 %v582
    %v2101 = vunpack.c.l.b16 %v583
    %v2102 = vunpack.c.h.b16 %v583
    %v2103 = vunpack.c.l.b16 %v584
    %v2104 = vunpack.c.h.b16 %v584
    %v2105 = vunpack.c.l.b16 %v585
    %v2106 = vunpack.c.h.b16 %v585
    %v2107 = vunpack.c.l.b16 %v586
    %v2108 = vunpack.c.h.b16 %v586
    %v2109 = vunpack.c.l.b16 %v587
    %v2110 = vunpack.c.h.b16 %v587
    %v2111 = vunpack.c.l.b16 %v588
    %v2112 = vunpack.c.h.b16 %v588
    %v2113 = vunpack.c.l.b16 %v589
    %v2114 = vunpack.c.h.b16 %v589
    %v2115 = vunpack.c.l.b16 %v590
    %v2116 = vunpack.c.h.b16 %v590
    %v2117 = vpack.c.b16 %v1161, %v1157
    %v2118 = vpack.c.b16 %v1162, %v1158
    %v2119 = vpack.c.b16 %v1163, %v1159
    %v2120 = vpack.c.b16 %v1164, %v1160
    %v2121 = vpack.c.b16 %v1169, %v1165
    %v2122 = vpack.c.b16 %v1170, %v1166
    %v2123 = vpack.c.b16 %v1171, %v1167
    %v2124 = vpack.c.b16 %v1172, %v1168
    %v2125 = vpack.c.b16 %v1177, %v1173
    %v2126 = vpack.c.b16 %v1178, %v1174
    %v2127 = vpack.c.b16 %v1179, %v1175
    %v2128 = vpack.c.b16 %v1180, %v1176
    %v2129 = vpack.c.b16 %v1185, %v1181
    %v2130 = vpack.c.b16 %v1186, %v1182
    %v2131 = vpack.c.b16 %v1187, %v1183
    %v2132 = vpack.c.b16 %v1188, %v1184
    %v2133 = vpack.c.b16 %v1193, %v1189
    %v2134 = vpack.c.b16 %v1194, %v1190
    %v2135 = vpack.c.b16 %v1195, %v1191
    %v2136 = vpack.c.b16 %v1196, %v1192
    %v2137 = vpack.c.b16 %v1201, %v1197
    %v2138 = vpack.c.b16 %v1202, %v1198
    %v2139 = vpack.c.b16 %v1203, %v1199
    %v2140 = vpack.c.b16 %v1204, %v1200
    %v2141 = vpack.c.b16 %v1209, %v1205
    %v2142 = vpack.c.b16 %v1210, %v1206
    %v2143 = vpack.c.b16 %v1211, %v1207
    %v2144 = vpack.c.b16 %v1212, %v1208
    %v2145 = vpack.c.b16 %v1217, %v1213
    %v2146 = vpack.c.b16 %v1218, %v1214
    %v2147 = vpack.c.b16 %v1219, %v1215
    %v2148 = vpack.c.b16 %v1220, %v1216
    %v2149 = vpack.c.b16 %v1225, %v1221
    %v2150 = vpack.c.b16 %v1226, %v1222
    %v2151 = vpack.c.b16 %v1227, %v1223
    %v2152 = vpack.c.b16 %v1228, %v1224
    %v2153 = vpack.c.b16 %v1233, %v1229
    %v2154 = vpack.c.b16 %v1234, %v1230
    %v2155 = vpack.c.b16 %v1235, %v1231
    %v2156 = vpack.c.b16 %v1236, %v1232
    %v2157 = vpack.c.b16 %v1241, %v1237
    %v2158 = vpack.c.b16 %v1242, %v1238
    %v2159 = vpack.c.b16 %v1243, %v1239
    %v2160 = vpack.c.b16 %v1244, %v1240
    %v2161 = vpack.c.b16 %v1249, %v1245
    %v2162 = vpack.c.b16 %v1250, %v1246
    %v2163 = vpack.c.b16 %v1251, %v1247
    %v2164 = vpack.c.b16 %v1252, %v1248
    %v2165 = vpack.c.b16 %v1257, %v1253
    %v2166 = vpack.c.b16 %v1258, %v1254
    %v2167 = vpack.c.b16 %v1259, %v1255
    %v2168 = vpack.c.b16 %v1260, %v1256
    %v2169 = vpack.c.b16 %v1265, %v1261
    %v2170 = vpack.c.b16 %v1266, %v1262
    %v2171 = vpack.c.b16 %v1267, %v1263
    %v2172 = vpack.c.b16 %v1268, %v1264
    %v2173 = vpack.c.b16 %v1273, %v1269
    %v2174 = vpack.c.b16 %v1274, %v1270
    %v2175 = vpack.c.b16 %v1275, %v1271
    %v2176 = vpack.c.b16 %v1276, %v1272
    %v2177 = vpack.c.b16 %v1281, %v1277
    %v2178 = vpack.c.b16 %v1282, %v1278
    %v2179 = vpack.c.b16 %v1283, %v1279
    %v2180 = vpack.c.b16 %v1284, %v1280
    %v2181 = vpack.c.b16 %v1289, %v1285
    %v2182 = vpack.c.b16 %v1290, %v1286
    %v2183 = vpack.c.b16 %v1291, %v1287
    %v2184 = vpack.c.b16 %v1292, %v1288
    %v2185 = vpack.c.b16 %v1297, %v1293
    %v2186 = vpack.c.b16 %v1298, %v1294
    %v2187 = vpack.c.b16 %v1299, %v1295
    %v2188 = vpack.c.b16 %v1300, %v1296
    %v2189 = vpack.c.b16 %v1305, %v1301
    %v2190 = vpack.c.b16 %v1306, %v1302
    %v2191 = vpack.c.b16 %v1307, %v1303
    %v2192 = vpack.c.b16 %v1308, %v1304
    %v2193 = vpack.c.b16 %v1313, %v1309
    %v2194 = vpack.c.b16 %v1314, %v1310
    %v2195 = vpack.c.b16 %v1315, %v1311
    %v2196 = vpack.c.b16 %v1316, %v1312
    %v2197 = vpack.c.b16 %v1321, %v1317
    %v2198 = vpack.c.b16 %v1322, %v1318
    %v2199 = vpack.c.b16 %v1323, %v1319
    %v2200 = vpack.c.b16 %v1324, %v1320
    %v2201 = vpack.c.b16 %v1329, %v1325
    %v2202 = vpack.c.b16 %v1330, %v1326
    %v2203 = vpack.c.b16 %v1331, %v1327
    %v2204 = vpack.c.b16 %v1332, %v1328
    %v2205 = vpack.c.b16 %v1337, %v1333
    %v2206 = vpack.c.b16 %v1338, %v1334
    %v2207 = vpack.c.b16 %v1339, %v1335
    %v2208 = vpack.c.b16 %v1340, %v1336
    %v2209 = vpack.c.b16 %v1345, %v1341
    %v2210 = vpack.c.b16 %v1346, %v1342
    %v2211 = vpack.c.b16 %v1347, %v1343
    %v2212 = vpack.c.b16 %v1348, %v1344
    %v2213 = vpack.c.b16 %v1353, %v1349
    %v2214 = vpack.c.b16 %v1354, %v1350
    %v2215 = vpack.c.b16 %v1355, %v1351
    %v2216 = vpack.c.b16 %v1356, %v1352
    %v2217 = vpack.c.b16 %v1361, %v1357
    %v2218 = vpack.c.b16 %v1362, %v1358
    %v2219 = vpack.c.b16 %v1363, %v1359
    %v2220 = vpack.c.b16 %v1364, %v1360
    %v2221 = vpack.c.b16 %v1369, %v1365
    %v2222 = vpack.c.b16 %v1370, %v1366
    %v2223 = vpack.c.b16 %v1371, %v1367
    %v2224 = vpack.c.b16 %v1372, %v1368
    %v2225 = vpack.c.b16 %v1377, %v1373
    %v2226 = vpack.c.b16 %v1378, %v1374
    %v2227 = vpack.c.b16 %v1379, %v1375
    %v2228 = vpack.c.b16 %v1380, %v1376
    %v2229 = vpack.c.b16 %v1385, %v1381
    %v2230 = vpack.c.b16 %v1386, %v1382
    %v2231 = vpack.c.b16 %v1387, %v1383
    %v2232 = vpack.c.b16 %v1388, %v1384
    %v2233 = vpack.c.b16 %v1393, %v1389
    %v2234 = vpack.c.b16 %v1394, %v1390
    %v2235 = vpack.c.b16 %v1395, %v1391
    %v2236 = vpack.c.b16 %v1396, %v1392
    %v2237 = vpack.c.b16 %v1401, %v1397
    %v2238 = vpack.c.b16 %v1402, %v1398
    %v2239 = vpack.c.b16 %v1403, %v1399
    %v2240 = vpack.c.b16 %v1404, %v1400
    %v2241 = vpack.c.b16 %v1409, %v1405
    %v2242 = vpack.c.b16 %v1410, %v1406
    %v2243 = vpack.c.b16 %v1411, %v1407
    %v2244 = vpack.c.b16 %v1412, %v1408
    %v2245 = vpack.c.b16 %v1417, %v1413
    %v2246 = vpack.c.b16 %v1418, %v1414
    %v2247 = vpack.c.b16 %v1419, %v1415
    %v2248 = vpack.c.b16 %v1420, %v1416
    %v2249 = vpack.c.b16 %v1425, %v1421
    %v2250 = vpack.c.b16 %v1426, %v1422
    %v2251 = vpack.c.b16 %v1427, %v1423
    %v2252 = vpack.c.b16 %v1428, %v1424
    %v2253 = vpack.c.b16 %v1433, %v1429
    %v2254 = vpack.c.b16 %v1434, %v1430
    %v2255 = vpack.c.b16 %v1435, %v1431
    %v2256 = vpack.c.b16 %v1436, %v1432
    %v2257 = vpack.c.b16 %v1441, %v1437
    %v2258 = vpack.c.b16 %v1442, %v1438
    %v2259 = vpack.c.b16 %v1443, %v1439
    %v2260 = vpack.c.b16 %v1444, %v1440
    %v2261 = vpack.c.b16 %v1449, %v1445
    %v2262 = vpack.c.b16 %v1450, %v1446
    %v2263 = vpack.c.b16 %v1451, %v1447
    %v2264 = vpack.c.b16 %v1452, %v1448
    %v2265 = vpack.c.b16 %v1457, %v1453
    %v2266 = vpack.c.b16 %v1458, %v1454
    %v2267 = vpack.c.b16 %v1459, %v1455
    %v2268 = vpack.c.b16 %v1460, %v1456
    %v2269 = vpack.c.b16 %v1465, %v1461
    %v2270 = vpack.c.b16 %v1466, %v1462
    %v2271 = vpack.c.b16 %v1467, %v1463
    %v2272 = vpack.c.b16 %v1468, %v1464
    %v2273 = vpack.c.b16 %v1473, %v1469
    %v2274 = vpack.c.b16 %v1474, %v1470
    %v2275 = vpack.c.b16 %v1475, %v1471
    %v2276 = vpack.c.b16 %v1476, %v1472
    %v2277 = vpack.c.b16 %v1481, %v1477
    %v2278 = vpack.c.b16 %v1482, %v1478
    %v2279 = vpack.c.b16 %v1483, %v1479
    %v2280 = vpack.c.b16 %v1484, %v1480
    %v2281 = vpack.c.b16 %v1489, %v1485
    %v2282 = vpack.c.b16 %v1490, %v1486
    %v2283 = vpack.c.b16 %v1491, %v1487
    %v2284 = vpack.c.b16 %v1492, %v1488
    %v2285 = vpack.c.b16 %v1497, %v1493
    %v2286 = vpack.c.b16 %v1498, %v1494
    %v2287 = vpack.c.b16 %v1499, %v1495
    %v2288 = vpack.c.b16 %v1500, %v1496
    %v2289 = vpack.c.b16 %v1505, %v1501
    %v2290 = vpack.c.b16 %v1506, %v1502
    %v2291 = vpack.c.b16 %v1507, %v1503
    %v2292 = vpack.c.b16 %v1508, %v1504
    %v2293 = vpack.c.b16 %v1513, %v1509
    %v2294 = vpack.c.b16 %v1514, %v1510
    %v2295 = vpack.c.b16 %v1515, %v1511
    %v2296 = vpack.c.b16 %v1516, %v1512
    %v2297 = vpack.c.b16 %v1521, %v1517
    %v2298 = vpack.c.b16 %v1522, %v1518
    %v2299 = vpack.c.b16 %v1523, %v1519
    %v2300 = vpack.c.b16 %v1524, %v1520
    %v2301 = vpack.c.b16 %v1529, %v1525
    %v2302 = vpack.c.b16 %v1530, %v1526
    %v2303 = vpack.c.b16 %v1531, %v1527
    %v2304 = vpack.c.b16 %v1532, %v1528
    %v2305 = vpack.c.b16 %v1537, %v1533
    %v2306 = vpack.c.b16 %v1538, %v1534
    %v2307 = vpack.c.b16 %v1539, %v1535
    %v2308 = vpack.c.b16 %v1540, %v1536
    %v2309 = vpack.c.b16 %v1545, %v1541
    %v2310 = vpack.c.b16 %v1546, %v1542
    %v2311 = vpack.c.b16 %v1547, %v1543
    %v2312 = vpack.c.b16 %v1548, %v1544
    %v2313 = vpack.c.b16 %v1553, %v1549
    %v2314 = vpack.c.b16 %v1554, %v1550
    %v2315 = vpack.c.b16 %v1555, %v1551
    %v2316 = vpack.c.b16 %v1556, %v1552
    %v2317 = vpack.c.b16 %v1561, %v1557
    %v2318 = vpack.c.b16 %v1562, %v1558
    %v2319 = vpack.c.b16 %v1563, %v1559
    %v2320 = vpack.c.b16 %v1564, %v1560
    %v2321 = vpack.c.b16 %v1569, %v1565
    %v2322 = vpack.c.b16 %v1570, %v1566
    %v2323 = vpack.c.b16 %v1571, %v1567
    %v2324 = vpack.c.b16 %v1572, %v1568
    %v2325 = vpack.c.b16 %v1577, %v1573
    %v2326 = vpack.c.b16 %v1578, %v1574
    %v2327 = vpack.c.b16 %v1579, %v1575
    %v2328 = vpack.c.b16 %v1580, %v1576
    %v2329 = vpack.c.b16 %v1585, %v1581
    %v2330 = vpack.c.b16 %v1586, %v1582
    %v2331 = vpack.c.b16 %v1587, %v1583
    %v2332 = vpack.c.b16 %v1588, %v1584
    %v2333 = vpack.c.b16 %v1593, %v1589
    %v2334 = vpack.c.b16 %v1594, %v1590
    %v2335 = vpack.c.b16 %v1595, %v1591
    %v2336 = vpack.c.b16 %v1596, %v1592
    %v2337 = vpack.c.b16 %v1601, %v1597
    %v2338 = vpack.c.b16 %v1602, %v1598
    %v2339 = vpack.c.b16 %v1603, %v1599
    %v2340 = vpack.c.b16 %v1604, %v1600
    %v2341 = vpack.c.b16 %v1609, %v1605
    %v2342 = vpack.c.b16 %v1610, %v1606
    %v2343 = vpack.c.b16 %v1611, %v1607
    %v2344 = vpack.c.b16 %v1612, %v1608
    %v2345 = vpack.c.b16 %v1617, %v1613
    %v2346 = vpack.c.b16 %v1618, %v1614
    %v2347 = vpack.c.b16 %v1619, %v1615
    %v2348 = vpack.c.b16 %v1620, %v1616
    %v2349 = vpack.c.b16 %v1625, %v1621
    %v2350 = vpack.c.b16 %v1626, %v1622
    %v2351 = vpack.c.b16 %v1627, %v1623
    %v2352 = vpack.c.b16 %v1628, %v1624
    %v2353 = vpack.c.b16 %v1633, %v1629
    %v2354 = vpack.c.b16 %v1634, %v1630
    %v2355 = vpack.c.b16 %v1635, %v1631
    %v2356 = vpack.c.b16 %v1636, %v1632
    %v2357 = vpack.c.b16 %v1641, %v1637
    %v2358 = vpack.c.b16 %v1642, %v1638
    %v2359 = vpack.c.b16 %v1643, %v1639
    %v2360 = vpack.c.b16 %v1644, %v1640
    %v2361 = vpack.c.b16 %v1649, %v1645
    %v2362 = vpack.c.b16 %v1650, %v1646
    %v2363 = vpack.c.b16 %v1651, %v1647
    %v2364 = vpack.c.b16 %v1652, %v1648
    %v2365 = vpack.c.b16 %v1657, %v1653
    %v2366 = vpack.c.b16 %v1658, %v1654
    %v2367 = vpack.c.b16 %v1659, %v1655
    %v2368 = vpack.c.b16 %v1660, %v1656
    %v2369 = vpack.c.b16 %v1665, %v1661
    %v2370 = vpack.c.b16 %v1666, %v1662
    %v2371 = vpack.c.b16 %v1667, %v1663
    %v2372 = vpack.c.b16 %v1668, %v1664
    %v2373 = vpack.c.b16 %v1673, %v1669
    %v2374 = vpack.c.b16 %v1674, %v1670
    %v2375 = vpack.c.b16 %v1675, %v1671
    %v2376 = vpack.c.b16 %v1676, %v1672
    %v2377 = vpack.c.b16 %v1681, %v1677
    %v2378 = vpack.c.b16 %v1682, %v1678
    %v2379 = vpack.c.b16 %v1683, %v1679
    %v2380 = vpack.c.b16 %v1684, %v1680
    %v2381 = vpack.c.b16 %v1689, %v1685
    %v2382 = vpack.c.b16 %v1690, %v1686
    %v2383 = vpack.c.b16 %v1691, %v1687
    %v2384 = vpack.c.b16 %v1692, %v1688
    %v2385 = vpack.c.b16 %v1697, %v1693
    %v2386 = vpack.c.b16 %v1698, %v1694
    %v2387 = vpack.c.b16 %v1699, %v1695
    %v2388 = vpack.c.b16 %v1700, %v1696
    %v2389 = vpack.c.b16 %v1705, %v1701
    %v2390 = vpack.c.b16 %v1706, %v1702
    %v2391 = vpack.c.b16 %v1707, %v1703
    %v2392 = vpack.c.b16 %v1708, %v1704
    %v2393 = vpack.c.b16 %v1713, %v1709
    %v2394 = vpack.c.b16 %v1714, %v1710
    %v2395 = vpack.c.b16 %v1715, %v1711
    %v2396 = vpack.c.b16 %v1716, %v1712
    %v2397 = vpack.c.b16 %v1721, %v1717
    %v2398 = vpack.c.b16 %v1722, %v1718
    %v2399 = vpack.c.b16 %v1723, %v1719
    %v2400 = vpack.c.b16 %v1724, %v1720
    %v2401 = vpack.c.b16 %v1729, %v1725
    %v2402 = vpack.c.b16 %v1730, %v1726
    %v2403 = vpack.c.b16 %v1731, %v1727
    %v2404 = vpack.c.b16 %v1732, %v1728
    %v2405 = vpack.c.b16 %v1737, %v1733
    %v2406 = vpack.c.b16 %v1738, %v1734
    %v2407 = vpack.c.b16 %v1739, %v1735
    %v2408 = vpack.c.b16 %v1740, %v1736
    %v2409 = vpack.c.b16 %v1745, %v1741
    %v2410 = vpack.c.b16 %v1746, %v1742
    %v2411 = vpack.c.b16 %v1747, %v1743
    %v2412 = vpack.c.b16 %v1748, %v1744
    %v2413 = vpack.c.b16 %v1753, %v1749
    %v2414 = vpack.c.b16 %v1754, %v1750
    %v2415 = vpack.c.b16 %v1755, %v1751
    %v2416 = vpack.c.b16 %v1756, %v1752
    %v2417 = vpack.c.b16 %v1761, %v1757
    %v2418 = vpack.c.b16 %v1762, %v1758
    %v2419 = vpack.c.b16 %v1763, %v1759
    %v2420 = vpack.c.b16 %v1764, %v1760
    %v2421 = vpack.c.b16 %v1769, %v1765
    %v2422 = vpack.c.b16 %v1770, %v1766
    %v2423 = vpack.c.b16 %v1771, %v1767
    %v2424 = vpack.c.b16 %v1772, %v1768
    %v2425 = vpack.c.b16 %v1777, %v1773
    %v2426 = vpack.c.b16 %v1778, %v1774
    %v2427 = vpack.c.b16 %v1779, %v1775
    %v2428 = vpack.c.b16 %v1780, %v1776
    %v2429 = vpack.c.b16 %v1785, %v1781
    %v2430 = vpack.c.b16 %v1786, %v1782
    %v2431 = vpack.c.b16 %v1787, %v1783
    %v2432 = vpack.c.b16 %v1788, %v1784
    %v2433 = vpack.c.b16 %v1793, %v1789
    %v2434 = vpack.c.b16 %v1794, %v1790
    %v2435 = vpack.c.b16 %v1795, %v1791
    %v2436 = vpack.c.b16 %v1796, %v1792
    %v2437 = vpack.c.b16 %v1801, %v1797
    %v2438 = vpack.c.b16 %v1802, %v1798
    %v2439 = vpack.c.b16 %v1803, %v1799
    %v2440 = vpack.c.b16 %v1804, %v1800
    %v2441 = vpack.c.b16 %v1809, %v1805
    %v2442 = vpack.c.b16 %v1810, %v1806
    %v2443 = vpack.c.b16 %v1811, %v1807
    %v2444 = vpack.c.b16 %v1812, %v1808
    %v2445 = vpack.c.b16 %v1817, %v1813
    %v2446 = vpack.c.b16 %v1818, %v1814
    %v2447 = vpack.c.b16 %v1819, %v1815
    %v2448 = vpack.c.b16 %v1820, %v1816
    %v2449 = vpack.c.b16 %v1825, %v1821
    %v2450 = vpack.c.b16 %v1826, %v1822
    %v2451 = vpack.c.b16 %v1827, %v1823
    %v2452 = vpack.c.b16 %v1828, %v1824
    %v2453 = vpack.c.b16 %v1833, %v1829
    %v2454 = vpack.c.b16 %v1834, %v1830
    %v2455 = vpack.c.b16 %v1835, %v1831
    %v2456 = vpack.c.b16 %v1836, %v1832
    %v2457 = vpack.c.b16 %v1841, %v1837
    %v2458 = vpack.c.b16 %v1842, %v1838
    %v2459 = vpack.c.b16 %v1843, %v1839
    %v2460 = vpack.c.b16 %v1844, %v1840
    %v2461 = vpack.c.b16 %v1849, %v1845
    %v2462 = vpack.c.b16 %v1850, %v1846
    %v2463 = vpack.c.b16 %v1851, %v1847
    %v2464 = vpack.c.b16 %v1852, %v1848
    %v2465 = vpack.c.b16 %v1857, %v1853
    %v2466 = vpack.c.b16 %v1858, %v1854
    %v2467 = vpack.c.b16 %v1859, %v1855
    %v2468 = vpack.c.b16 %v1860, %v1856
    %v2469 = vpack.c.b16 %v1865, %v1861
    %v2470 = vpack.c.b16 %v1866, %v1862
    %v2471 = vpack.c.b16 %v1867, %v1863
    %v2472 = vpack.c.b16 %v1868, %v1864
    %v2473 = vpack.c.b16 %v1873, %v1869
    %v2474 = vpack.c.b16 %v1874, %v1870
    %v2475 = vpack.c.b16 %v1875, %v1871
    %v2476 = vpack.c.b16 %v1876, %v1872
    %v2477 = vpack.c.b16 %v1881, %v1877
    %v2478 = vpack.c.b16 %v1882, %v1878
    %v2479 = vpack.c.b16 %v1883, %v1879
    %v2480 = vpack.c.b16 %v1884, %v1880
    %v2481 = vpack.c.b16 %v1889, %v1885
    %v2482 = vpack.c.b16 %v1890, %v1886
    %v2483 = vpack.c.b16 %v1891, %v1887
    %v2484 = vpack.c.b16 %v1892, %v1888
    %v2485 = vpack.c.b16 %v1897, %v1893
    %v2486 = vpack.c.b16 %v1898, %v1894
    %v2487 = vpack.c.b16 %v1899, %v1895
    %v2488 = vpack.c.b16 %v1900, %v1896
    %v2489 = vpack.c.b16 %v1905, %v1901
    %v2490 = vpack.c.b16 %v1906, %v1902
    %v2491 = vpack.c.b16 %v1907, %v1903
    %v2492 = vpack.c.b16 %v1908, %v1904
    %v2493 = vpack.c.b16 %v1913, %v1909
    %v2494 = vpack.c.b16 %v1914, %v1910
    %v2495 = vpack.c.b16 %v1915, %v1911
    %v2496 = vpack.c.b16 %v1916, %v1912
    %v2497 = vpack.c.b16 %v1921, %v1917
    %v2498 = vpack.c.b16 %v1922, %v1918
    %v2499 = vpack.c.b16 %v1923, %v1919
    %v2500 = vpack.c.b16 %v1924, %v1920
    %v2501 = vpack.c.b16 %v1929, %v1925
    %v2502 = vpack.c.b16 %v1930, %v1926
    %v2503 = vpack.c.b16 %v1931, %v1927
    %v2504 = vpack.c.b16 %v1932, %v1928
    %v2505 = vpack.c.b16 %v1937, %v1933
    %v2506 = vpack.c.b16 %v1938, %v1934
    %v2507 = vpack.c.b16 %v1939, %v1935
    %v2508 = vpack.c.b16 %v1940, %v1936
    %v2509 = vpack.c.b16 %v1945, %v1941
    %v2510 = vpack.c.b16 %v1946, %v1942
    %v2511 = vpack.c.b16 %v1947, %v1943
    %v2512 = vpack.c.b16 %v1948, %v1944
    %v2513 = vpack.c.b16 %v1953, %v1949
    %v2514 = vpack.c.b16 %v1954, %v1950
    %v2515 = vpack.c.b16 %v1955, %v1951
    %v2516 = vpack.c.b16 %v1956, %v1952
    %v2517 = vpack.c.b16 %v1961, %v1957
    %v2518 = vpack.c.b16 %v1962, %v1958
    %v2519 = vpack.c.b16 %v1963, %v1959
    %v2520 = vpack.c.b16 %v1964, %v1960
    %v2521 = vpack.c.b16 %v1969, %v1965
    %v2522 = vpack.c.b16 %v1970, %v1966
    %v2523 = vpack.c.b16 %v1971, %v1967
    %v2524 = vpack.c.b16 %v1972, %v1968
    %v2525 = vpack.c.b16 %v1977, %v1973
    %v2526 = vpack.c.b16 %v1978, %v1974
    %v2527 = vpack.c.b16 %v1979, %v1975
    %v2528 = vpack.c.b16 %v1980, %v1976
    %v2529 = vpack.c.b16 %v1985, %v1981
    %v2530 = vpack.c.b16 %v1986, %v1982
    %v2531 = vpack.c.b16 %v1987, %v1983
    %v2532 = vpack.c.b16 %v1988, %v1984
    %v2533 = vpack.c.b16 %v1993, %v1989
    %v2534 = vpack.c.b16 %v1994, %v1990
    %v2535 = vpack.c.b16 %v1995, %v1991
    %v2536 = vpack.c.b16 %v1996, %v1992
    %v2537 = vpack.c.b16 %v2001, %v1997
    %v2538 = vpack.c.b16 %v2002, %v1998
    %v2539 = vpack.c.b16 %v2003, %v1999
    %v2540 = vpack.c.b16 %v2004, %v2000
    %v2541 = vpack.c.b16 %v2009, %v2005
    %v2542 = vpack.c.b16 %v2010, %v2006
    %v2543 = vpack.c.b16 %v2011, %v2007
    %v2544 = vpack.c.b16 %v2012, %v2008
    %v2545 = vpack.c.b16 %v2017, %v2013
    %v2546 = vpack.c.b16 %v2018, %v2014
    %v2547 = vpack.c.b16 %v2019, %v2015
    %v2548 = vpack.c.b16 %v2020, %v2016
    %v2549 = vpack.c.b16 %v2025, %v2021
    %v2550 = vpack.c.b16 %v2026, %v2022
    %v2551 = vpack.c.b16 %v2027, %v2023
    %v2552 = vpack.c.b16 %v2028, %v2024
    %v2553 = vpack.c.b16 %v2033, %v2029
    %v2554 = vpack.c.b16 %v2034, %v2030
    %v2555 = vpack.c.b16 %v2035, %v2031
    %v2556 = vpack.c.b16 %v2036, %v2032
    %v2557 = vpack.c.b16 %v2041, %v2037
    %v2558 = vpack.c.b16 %v2042, %v2038
    %v2559 = vpack.c.b16 %v2043, %v2039
    %v2560 = vpack.c.b16 %v2044, %v2040
    %v2561 = vpack.c.b16 %v2049, %v2045
    %v2562 = vpack.c.b16 %v2050, %v2046
    %v2563 = vpack.c.b16 %v2051, %v2047
    %v2564 = vpack.c.b16 %v2052, %v2048
    %v2565 = vpack.c.b16 %v2057, %v2053
    %v2566 = vpack.c.b16 %v2058, %v2054
    %v2567 = vpack.c.b16 %v2059, %v2055
    %v2568 = vpack.c.b16 %v2060, %v2056
    %v2569 = vpack.c.b16 %v2065, %v2061
    %v2570 = vpack.c.b16 %v2066, %v2062
    %v2571 = vpack.c.b16 %v2067, %v2063
    %v2572 = vpack.c.b16 %v2068, %v2064
    %v2573 = vpack.c.b16 %v2073, %v2069
    %v2574 = vpack.c.b16 %v2074, %v2070
    %v2575 = vpack.c.b16 %v2075, %v2071
    %v2576 = vpack.c.b16 %v2076, %v2072
    %v2577 = vpack.c.b16 %v2081, %v2077
    %v2578 = vpack.c.b16 %v2082, %v2078
    %v2579 = vpack.c.b16 %v2083, %v2079
    %v2580 = vpack.c.b16 %v2084, %v2080
    %v2581 = vpack.c.b16 %v2089, %v2085
    %v2582 = vpack.c.b16 %v2090, %v2086
    %v2583 = vpack.c.b16 %v2091, %v2087
    %v2584 = vpack.c.b16 %v2092, %v2088
    %v2585 = vpack.c.b16 %v2097, %v2093
    %v2586 = vpack.c.b16 %v2098, %v2094
    %v2587 = vpack.c.b16 %v2099, %v2095
    %v2588 = vpack.c.b16 %v2100, %v2096
    %v2589 = vpack.c.b16 %v2105, %v2101
    %v2590 = vpack.c.b16 %v2106, %v2102
    %v2591 = vpack.c.b16 %v2107, %v2103
    %v2592 = vpack.c.b16 %v2108, %v2104
    %v2593 = vpack.c.b16 %v2113, %v2109
    %v2594 = vpack.c.b16 %v2114, %v2110
    %v2595 = vpack.c.b16 %v2115, %v2111
    %v2596 = vpack.c.b16 %v2116, %v2112
    %3077 = vmatpush.bf16.msra.mxu0 %v2145
    %3078 = vmatpush.bf16.msra.mxu0 %v2141
    %3079 = vmatpush.bf16.msra.mxu0 %v2137
    %3080 = vmatpush.bf16.msra.mxu0 %v2133
    %3081 = vmatpush.bf16.msra.mxu0 %v2129
    %3082 = vmatpush.bf16.msra.mxu0 %v2125
    %3083 = vmatpush.bf16.msra.mxu0 %v2121
    %3084 = vmatpush.bf16.msra.mxu0 %v2117
    %3085 = vmatmul.bf16.gmra.mxu0 %v647
    %v3086 = vpop.f32.mrf.mxu0
    %v3087 = vadd.f32 %v593, %v3086
    %v3088 = vpop.f32.mrf.mxu0
    %v3089 = vadd.f32 %v593, %v3088
    %3090 = vdwg.mxu0
    %3091 = vmatpush.bf16.msra.mxu0 %v2177
    %3092 = vmatpush.bf16.msra.mxu0 %v2173
    %3093 = vmatpush.bf16.msra.mxu0 %v2169
    %3094 = vmatpush.bf16.msra.mxu0 %v2165
    %3095 = vmatpush.bf16.msra.mxu0 %v2161
    %3096 = vmatpush.bf16.msra.mxu0 %v2157
    %3097 = vmatpush.bf16.msra.mxu0 %v2153
    %3098 = vmatpush.bf16.msra.mxu0 %v2149
    %3099 = vmatmul.bf16.gmra.mxu0 %v648
    %v3100 = vpop.f32.mrf.mxu0
    %v3101 = vadd.f32 %v3087, %v3100
    %v3102 = vpop.f32.mrf.mxu0
    %v3103 = vadd.f32 %v3089, %v3102
    %3104 = vdwg.mxu0
    %3105 = vmatpush.bf16.msra.mxu0 %v2209
    %3106 = vmatpush.bf16.msra.mxu0 %v2205
    %3107 = vmatpush.bf16.msra.mxu0 %v2201
    %3108 = vmatpush.bf16.msra.mxu0 %v2197
    %3109 = vmatpush.bf16.msra.mxu0 %v2193
    %3110 = vmatpush.bf16.msra.mxu0 %v2189
    %3111 = vmatpush.bf16.msra.mxu0 %v2185
    %3112 = vmatpush.bf16.msra.mxu0 %v2181
    %3113 = vmatmul.bf16.gmra.mxu0 %v649
    %v3114 = vpop.f32.mrf.mxu0
    %v3115 = vadd.f32 %v3101, %v3114
    %v3116 = vpop.f32.mrf.mxu0
    %v3117 = vadd.f32 %v3103, %v3116
    %3118 = vdwg.mxu0
    %3119 = vmatpush.bf16.msra.mxu0 %v2241
    %3120 = vmatpush.bf16.msra.mxu0 %v2237
    %3121 = vmatpush.bf16.msra.mxu0 %v2233
    %3122 = vmatpush.bf16.msra.mxu0 %v2229
    %3123 = vmatpush.bf16.msra.mxu0 %v2225
    %3124 = vmatpush.bf16.msra.mxu0 %v2221
    %3125 = vmatpush.bf16.msra.mxu0 %v2217
    %3126 = vmatpush.bf16.msra.mxu0 %v2213
    %3127 = vmatmul.bf16.gmra.mxu0 %v650
    %v3128 = vpop.f32.mrf.mxu0
    %v3129 = vadd.f32 %v3115, %v3128
    %v3130 = vpop.f32.mrf.mxu0
    %v3131 = vadd.f32 %v3117, %v3130
    %3132 = vdwg.mxu0
    %3133 = vmatpush.bf16.msra.mxu0 %v2273
    %3134 = vmatpush.bf16.msra.mxu0 %v2269
    %3135 = vmatpush.bf16.msra.mxu0 %v2265
    %3136 = vmatpush.bf16.msra.mxu0 %v2261
    %3137 = vmatpush.bf16.msra.mxu0 %v2257
    %3138 = vmatpush.bf16.msra.mxu0 %v2253
    %3139 = vmatpush.bf16.msra.mxu0 %v2249
    %3140 = vmatpush.bf16.msra.mxu0 %v2245
    %3141 = vmatmul.bf16.gmra.mxu0 %v651
    %v3142 = vpop.f32.mrf.mxu0
    %v3143 = vadd.f32 %v3129, %v3142
    %v3144 = vpop.f32.mrf.mxu0
    %v3145 = vadd.f32 %v3131, %v3144
    %3146 = vdwg.mxu0
    %3147 = vmatpush.bf16.msra.mxu0 %v2305
    %3148 = vmatpush.bf16.msra.mxu0 %v2301
    %3149 = vmatpush.bf16.msra.mxu0 %v2297
    %3150 = vmatpush.bf16.msra.mxu0 %v2293
    %3151 = vmatpush.bf16.msra.mxu0 %v2289
    %3152 = vmatpush.bf16.msra.mxu0 %v2285
    %3153 = vmatpush.bf16.msra.mxu0 %v2281
    %3154 = vmatpush.bf16.msra.mxu0 %v2277
    %3155 = vmatmul.bf16.gmra.mxu0 %v652
    %v3156 = vpop.f32.mrf.mxu0
    %v3157 = vadd.f32 %v3143, %v3156
    %v3158 = vpop.f32.mrf.mxu0
    %v3159 = vadd.f32 %v3145, %v3158
    %3160 = vdwg.mxu0
    %3161 = vmatpush.bf16.msra.mxu0 %v2337
    %3162 = vmatpush.bf16.msra.mxu0 %v2333
    %3163 = vmatpush.bf16.msra.mxu0 %v2329
    %3164 = vmatpush.bf16.msra.mxu0 %v2325
    %3165 = vmatpush.bf16.msra.mxu0 %v2321
    %3166 = vmatpush.bf16.msra.mxu0 %v2317
    %3167 = vmatpush.bf16.msra.mxu0 %v2313
    %3168 = vmatpush.bf16.msra.mxu0 %v2309
    %3169 = vmatmul.bf16.gmra.mxu0 %v653
    %v3170 = vpop.f32.mrf.mxu0
    %v3171 = vadd.f32 %v3157, %v3170
    %v3172 = vpop.f32.mrf.mxu0
    %v3173 = vadd.f32 %v3159, %v3172
    %3174 = vdwg.mxu0
    %3175 = vmatpush.bf16.msra.mxu0 %v2369
    %3176 = vmatpush.bf16.msra.mxu0 %v2365
    %3177 = vmatpush.bf16.msra.mxu0 %v2361
    %3178 = vmatpush.bf16.msra.mxu0 %v2357
    %3179 = vmatpush.bf16.msra.mxu0 %v2353
    %3180 = vmatpush.bf16.msra.mxu0 %v2349
    %3181 = vmatpush.bf16.msra.mxu0 %v2345
    %3182 = vmatpush.bf16.msra.mxu0 %v2341
    %3183 = vmatmul.bf16.gmra.mxu0 %v654
    %v3184 = vpop.f32.mrf.mxu0
    %v3185 = vadd.f32 %v3171, %v3184
    %v3186 = vpop.f32.mrf.mxu0
    %v3187 = vadd.f32 %v3173, %v3186
    %3188 = vdwg.mxu0
    %3189 = vmatpush.bf16.msra.mxu0 %v2401
    %3190 = vmatpush.bf16.msra.mxu0 %v2397
    %3191 = vmatpush.bf16.msra.mxu0 %v2393
    %3192 = vmatpush.bf16.msra.mxu0 %v2389
    %3193 = vmatpush.bf16.msra.mxu0 %v2385
    %3194 = vmatpush.bf16.msra.mxu0 %v2381
    %3195 = vmatpush.bf16.msra.mxu0 %v2377
    %3196 = vmatpush.bf16.msra.mxu0 %v2373
    %3197 = vmatmul.bf16.gmra.mxu0 %v655
    %v3198 = vpop.f32.mrf.mxu0
    %v3199 = vadd.f32 %v3185, %v3198
    %v3200 = vpop.f32.mrf.mxu0
    %v3201 = vadd.f32 %v3187, %v3200
    %3202 = vdwg.mxu0
    %3203 = vmatpush.bf16.msra.mxu0 %v2433
    %3204 = vmatpush.bf16.msra.mxu0 %v2429
    %3205 = vmatpush.bf16.msra.mxu0 %v2425
    %3206 = vmatpush.bf16.msra.mxu0 %v2421
    %3207 = vmatpush.bf16.msra.mxu0 %v2417
    %3208 = vmatpush.bf16.msra.mxu0 %v2413
    %3209 = vmatpush.bf16.msra.mxu0 %v2409
    %3210 = vmatpush.bf16.msra.mxu0 %v2405
    %3211 = vmatmul.bf16.gmra.mxu0 %v656
    %v3212 = vpop.f32.mrf.mxu0
    %v3213 = vadd.f32 %v3199, %v3212
    %v3214 = vpop.f32.mrf.mxu0
    %v3215 = vadd.f32 %v3201, %v3214
    %3216 = vdwg.mxu0
    %3217 = vmatpush.bf16.msra.mxu0 %v2465
    %3218 = vmatpush.bf16.msra.mxu0 %v2461
    %3219 = vmatpush.bf16.msra.mxu0 %v2457
    %3220 = vmatpush.bf16.msra.mxu0 %v2453
    %3221 = vmatpush.bf16.msra.mxu0 %v2449
    %3222 = vmatpush.bf16.msra.mxu0 %v2445
    %3223 = vmatpush.bf16.msra.mxu0 %v2441
    %3224 = vmatpush.bf16.msra.mxu0 %v2437
    %3225 = vmatmul.bf16.gmra.mxu0 %v657
    %v3226 = vpop.f32.mrf.mxu0
    %v3227 = vadd.f32 %v3213, %v3226
    %v3228 = vpop.f32.mrf.mxu0
    %v3229 = vadd.f32 %v3215, %v3228
    %3230 = vdwg.mxu0
    %3231 = vmatpush.bf16.msra.mxu0 %v2497
    %3232 = vmatpush.bf16.msra.mxu0 %v2493
    %3233 = vmatpush.bf16.msra.mxu0 %v2489
    %3234 = vmatpush.bf16.msra.mxu0 %v2485
    %3235 = vmatpush.bf16.msra.mxu0 %v2481
    %3236 = vmatpush.bf16.msra.mxu0 %v2477
    %3237 = vmatpush.bf16.msra.mxu0 %v2473
    %3238 = vmatpush.bf16.msra.mxu0 %v2469
    %3239 = vmatmul.bf16.gmra.mxu0 %v658
    %v3240 = vpop.f32.mrf.mxu0
    %v3241 = vadd.f32 %v3227, %v3240
    %v3242 = vpop.f32.mrf.mxu0
    %v3243 = vadd.f32 %v3229, %v3242
    %3244 = vdwg.mxu0
    %3245 = vmatpush.bf16.msra.mxu0 %v2529
    %3246 = vmatpush.bf16.msra.mxu0 %v2525
    %3247 = vmatpush.bf16.msra.mxu0 %v2521
    %3248 = vmatpush.bf16.msra.mxu0 %v2517
    %3249 = vmatpush.bf16.msra.mxu0 %v2513
    %3250 = vmatpush.bf16.msra.mxu0 %v2509
    %3251 = vmatpush.bf16.msra.mxu0 %v2505
    %3252 = vmatpush.bf16.msra.mxu0 %v2501
    %3253 = vmatmul.bf16.gmra.mxu0 %v659
    %v3254 = vpop.f32.mrf.mxu0
    %v3255 = vadd.f32 %v3241, %v3254
    %v3256 = vpop.f32.mrf.mxu0
    %v3257 = vadd.f32 %v3243, %v3256
    %3258 = vdwg.mxu0
    %3259 = vmatpush.bf16.msra.mxu0 %v2561
    %3260 = vmatpush.bf16.msra.mxu0 %v2557
    %3261 = vmatpush.bf16.msra.mxu0 %v2553
    %3262 = vmatpush.bf16.msra.mxu0 %v2549
    %3263 = vmatpush.bf16.msra.mxu0 %v2545
    %3264 = vmatpush.bf16.msra.mxu0 %v2541
    %3265 = vmatpush.bf16.msra.mxu0 %v2537
    %3266 = vmatpush.bf16.msra.mxu0 %v2533
    %3267 = vmatmul.bf16.gmra.mxu0 %v660
    %v3268 = vpop.f32.mrf.mxu0
    %v3269 = vadd.f32 %v3255, %v3268
    %v3270 = vpop.f32.mrf.mxu0
    %v3271 = vadd.f32 %v3257, %v3270
    %3272 = vdwg.mxu0
    %3273 = vmatpush.bf16.msra.mxu0 %v2593
    %3274 = vmatpush.bf16.msra.mxu0 %v2589
    %3275 = vmatpush.bf16.msra.mxu0 %v2585
    %3276 = vmatpush.bf16.msra.mxu0 %v2581
    %3277 = vmatpush.bf16.msra.mxu0 %v2577
    %3278 = vmatpush.bf16.msra.mxu0 %v2573
    %3279 = vmatpush.bf16.msra.mxu0 %v2569
    %3280 = vmatpush.bf16.msra.mxu0 %v2565
    %3281 = vmatmul.bf16.gmra.mxu0 %v661
    %v3282 = vpop.f32.mrf.mxu0
    %v3283 = vadd.f32 %v3269, %v3282
    %v3284 = vpop.f32.mrf.mxu0
    %v3285 = vadd.f32 %v3271, %v3284
    %3286 = vdwg.mxu0
    %3287 = vmatpush.bf16.msra.mxu0 %v2146
    %3288 = vmatpush.bf16.msra.mxu0 %v2142
    %3289 = vmatpush.bf16.msra.mxu0 %v2138
    %3290 = vmatpush.bf16.msra.mxu0 %v2134
    %3291 = vmatpush.bf16.msra.mxu0 %v2130
    %3292 = vmatpush.bf16.msra.mxu0 %v2126
    %3293 = vmatpush.bf16.msra.mxu0 %v2122
    %3294 = vmatpush.bf16.msra.mxu0 %v2118
    %3295 = vmatmul.bf16.gmra.mxu0 %v647
    %v3296 = vpop.f32.mrf.mxu0
    %v3297 = vadd.f32 %v594, %v3296
    %v3298 = vpop.f32.mrf.mxu0
    %v3299 = vadd.f32 %v594, %v3298
    %3300 = vdwg.mxu0
    %3301 = vmatpush.bf16.msra.mxu0 %v2178
    %3302 = vmatpush.bf16.msra.mxu0 %v2174
    %3303 = vmatpush.bf16.msra.mxu0 %v2170
    %3304 = vmatpush.bf16.msra.mxu0 %v2166
    %3305 = vmatpush.bf16.msra.mxu0 %v2162
    %3306 = vmatpush.bf16.msra.mxu0 %v2158
    %3307 = vmatpush.bf16.msra.mxu0 %v2154
    %3308 = vmatpush.bf16.msra.mxu0 %v2150
    %3309 = vmatmul.bf16.gmra.mxu0 %v648
    %v3310 = vpop.f32.mrf.mxu0
    %v3311 = vadd.f32 %v3297, %v3310
    %v3312 = vpop.f32.mrf.mxu0
    %v3313 = vadd.f32 %v3299, %v3312
    %3314 = vdwg.mxu0
    %3315 = vmatpush.bf16.msra.mxu0 %v2210
    %3316 = vmatpush.bf16.msra.mxu0 %v2206
    %3317 = vmatpush.bf16.msra.mxu0 %v2202
    %3318 = vmatpush.bf16.msra.mxu0 %v2198
    %3319 = vmatpush.bf16.msra.mxu0 %v2194
    %3320 = vmatpush.bf16.msra.mxu0 %v2190
    %3321 = vmatpush.bf16.msra.mxu0 %v2186
    %3322 = vmatpush.bf16.msra.mxu0 %v2182
    %3323 = vmatmul.bf16.gmra.mxu0 %v649
    %v3324 = vpop.f32.mrf.mxu0
    %v3325 = vadd.f32 %v3311, %v3324
    %v3326 = vpop.f32.mrf.mxu0
    %v3327 = vadd.f32 %v3313, %v3326
    %3328 = vdwg.mxu0
    %3329 = vmatpush.bf16.msra.mxu0 %v2242
    %3330 = vmatpush.bf16.msra.mxu0 %v2238
    %3331 = vmatpush.bf16.msra.mxu0 %v2234
    %3332 = vmatpush.bf16.msra.mxu0 %v2230
    %3333 = vmatpush.bf16.msra.mxu0 %v2226
    %3334 = vmatpush.bf16.msra.mxu0 %v2222
    %3335 = vmatpush.bf16.msra.mxu0 %v2218
    %3336 = vmatpush.bf16.msra.mxu0 %v2214
    %3337 = vmatmul.bf16.gmra.mxu0 %v650
    %v3338 = vpop.f32.mrf.mxu0
    %v3339 = vadd.f32 %v3325, %v3338
    %v3340 = vpop.f32.mrf.mxu0
    %v3341 = vadd.f32 %v3327, %v3340
    %3342 = vdwg.mxu0
    %3343 = vmatpush.bf16.msra.mxu0 %v2274
    %3344 = vmatpush.bf16.msra.mxu0 %v2270
    %3345 = vmatpush.bf16.msra.mxu0 %v2266
    %3346 = vmatpush.bf16.msra.mxu0 %v2262
    %3347 = vmatpush.bf16.msra.mxu0 %v2258
    %3348 = vmatpush.bf16.msra.mxu0 %v2254
    %3349 = vmatpush.bf16.msra.mxu0 %v2250
    %3350 = vmatpush.bf16.msra.mxu0 %v2246
    %3351 = vmatmul.bf16.gmra.mxu0 %v651
    %v3352 = vpop.f32.mrf.mxu0
    %v3353 = vadd.f32 %v3339, %v3352
    %v3354 = vpop.f32.mrf.mxu0
    %v3355 = vadd.f32 %v3341, %v3354
    %3356 = vdwg.mxu0
    %3357 = vmatpush.bf16.msra.mxu0 %v2306
    %3358 = vmatpush.bf16.msra.mxu0 %v2302
    %3359 = vmatpush.bf16.msra.mxu0 %v2298
    %3360 = vmatpush.bf16.msra.mxu0 %v2294
    %3361 = vmatpush.bf16.msra.mxu0 %v2290
    %3362 = vmatpush.bf16.msra.mxu0 %v2286
    %3363 = vmatpush.bf16.msra.mxu0 %v2282
    %3364 = vmatpush.bf16.msra.mxu0 %v2278
    %3365 = vmatmul.bf16.gmra.mxu0 %v652
    %v3366 = vpop.f32.mrf.mxu0
    %v3367 = vadd.f32 %v3353, %v3366
    %v3368 = vpop.f32.mrf.mxu0
    %v3369 = vadd.f32 %v3355, %v3368
    %3370 = vdwg.mxu0
    %3371 = vmatpush.bf16.msra.mxu0 %v2338
    %3372 = vmatpush.bf16.msra.mxu0 %v2334
    %3373 = vmatpush.bf16.msra.mxu0 %v2330
    %3374 = vmatpush.bf16.msra.mxu0 %v2326
    %3375 = vmatpush.bf16.msra.mxu0 %v2322
    %3376 = vmatpush.bf16.msra.mxu0 %v2318
    %3377 = vmatpush.bf16.msra.mxu0 %v2314
    %3378 = vmatpush.bf16.msra.mxu0 %v2310
    %3379 = vmatmul.bf16.gmra.mxu0 %v653
    %v3380 = vpop.f32.mrf.mxu0
    %v3381 = vadd.f32 %v3367, %v3380
    %v3382 = vpop.f32.mrf.mxu0
    %v3383 = vadd.f32 %v3369, %v3382
    %3384 = vdwg.mxu0
    %3385 = vmatpush.bf16.msra.mxu0 %v2370
    %3386 = vmatpush.bf16.msra.mxu0 %v2366
    %3387 = vmatpush.bf16.msra.mxu0 %v2362
    %3388 = vmatpush.bf16.msra.mxu0 %v2358
    %3389 = vmatpush.bf16.msra.mxu0 %v2354
    %3390 = vmatpush.bf16.msra.mxu0 %v2350
    %3391 = vmatpush.bf16.msra.mxu0 %v2346
    %3392 = vmatpush.bf16.msra.mxu0 %v2342
    %3393 = vmatmul.bf16.gmra.mxu0 %v654
    %v3394 = vpop.f32.mrf.mxu0
    %v3395 = vadd.f32 %v3381, %v3394
    %v3396 = vpop.f32.mrf.mxu0
    %v3397 = vadd.f32 %v3383, %v3396
    %3398 = vdwg.mxu0
    %3399 = vmatpush.bf16.msra.mxu0 %v2402
    %3400 = vmatpush.bf16.msra.mxu0 %v2398
    %3401 = vmatpush.bf16.msra.mxu0 %v2394
    %3402 = vmatpush.bf16.msra.mxu0 %v2390
    %3403 = vmatpush.bf16.msra.mxu0 %v2386
    %3404 = vmatpush.bf16.msra.mxu0 %v2382
    %3405 = vmatpush.bf16.msra.mxu0 %v2378
    %3406 = vmatpush.bf16.msra.mxu0 %v2374
    %3407 = vmatmul.bf16.gmra.mxu0 %v655
    %v3408 = vpop.f32.mrf.mxu0
    %v3409 = vadd.f32 %v3395, %v3408
    %v3410 = vpop.f32.mrf.mxu0
    %v3411 = vadd.f32 %v3397, %v3410
    %3412 = vdwg.mxu0
    %3413 = vmatpush.bf16.msra.mxu0 %v2434
    %3414 = vmatpush.bf16.msra.mxu0 %v2430
    %3415 = vmatpush.bf16.msra.mxu0 %v2426
    %3416 = vmatpush.bf16.msra.mxu0 %v2422
    %3417 = vmatpush.bf16.msra.mxu0 %v2418
    %3418 = vmatpush.bf16.msra.mxu0 %v2414
    %3419 = vmatpush.bf16.msra.mxu0 %v2410
    %3420 = vmatpush.bf16.msra.mxu0 %v2406
    %3421 = vmatmul.bf16.gmra.mxu0 %v656
    %v3422 = vpop.f32.mrf.mxu0
    %v3423 = vadd.f32 %v3409, %v3422
    %v3424 = vpop.f32.mrf.mxu0
    %v3425 = vadd.f32 %v3411, %v3424
    %3426 = vdwg.mxu0
    %3427 = vmatpush.bf16.msra.mxu0 %v2466
    %3428 = vmatpush.bf16.msra.mxu0 %v2462
    %3429 = vmatpush.bf16.msra.mxu0 %v2458
    %3430 = vmatpush.bf16.msra.mxu0 %v2454
    %3431 = vmatpush.bf16.msra.mxu0 %v2450
    %3432 = vmatpush.bf16.msra.mxu0 %v2446
    %3433 = vmatpush.bf16.msra.mxu0 %v2442
    %3434 = vmatpush.bf16.msra.mxu0 %v2438
    %3435 = vmatmul.bf16.gmra.mxu0 %v657
    %v3436 = vpop.f32.mrf.mxu0
    %v3437 = vadd.f32 %v3423, %v3436
    %v3438 = vpop.f32.mrf.mxu0
    %v3439 = vadd.f32 %v3425, %v3438
    %3440 = vdwg.mxu0
    %3441 = vmatpush.bf16.msra.mxu0 %v2498
    %3442 = vmatpush.bf16.msra.mxu0 %v2494
    %3443 = vmatpush.bf16.msra.mxu0 %v2490
    %3444 = vmatpush.bf16.msra.mxu0 %v2486
    %3445 = vmatpush.bf16.msra.mxu0 %v2482
    %3446 = vmatpush.bf16.msra.mxu0 %v2478
    %3447 = vmatpush.bf16.msra.mxu0 %v2474
    %3448 = vmatpush.bf16.msra.mxu0 %v2470
    %3449 = vmatmul.bf16.gmra.mxu0 %v658
    %v3450 = vpop.f32.mrf.mxu0
    %v3451 = vadd.f32 %v3437, %v3450
    %v3452 = vpop.f32.mrf.mxu0
    %v3453 = vadd.f32 %v3439, %v3452
    %3454 = vdwg.mxu0
    %3455 = vmatpush.bf16.msra.mxu0 %v2530
    %3456 = vmatpush.bf16.msra.mxu0 %v2526
    %3457 = vmatpush.bf16.msra.mxu0 %v2522
    %3458 = vmatpush.bf16.msra.mxu0 %v2518
    %3459 = vmatpush.bf16.msra.mxu0 %v2514
    %3460 = vmatpush.bf16.msra.mxu0 %v2510
    %3461 = vmatpush.bf16.msra.mxu0 %v2506
    %3462 = vmatpush.bf16.msra.mxu0 %v2502
    %3463 = vmatmul.bf16.gmra.mxu0 %v659
    %v3464 = vpop.f32.mrf.mxu0
    %v3465 = vadd.f32 %v3451, %v3464
    %v3466 = vpop.f32.mrf.mxu0
    %v3467 = vadd.f32 %v3453, %v3466
    %3468 = vdwg.mxu0
    %3469 = vmatpush.bf16.msra.mxu0 %v2562
    %3470 = vmatpush.bf16.msra.mxu0 %v2558
    %3471 = vmatpush.bf16.msra.mxu0 %v2554
    %3472 = vmatpush.bf16.msra.mxu0 %v2550
    %3473 = vmatpush.bf16.msra.mxu0 %v2546
    %3474 = vmatpush.bf16.msra.mxu0 %v2542
    %3475 = vmatpush.bf16.msra.mxu0 %v2538
    %3476 = vmatpush.bf16.msra.mxu0 %v2534
    %3477 = vmatmul.bf16.gmra.mxu0 %v660
    %v3478 = vpop.f32.mrf.mxu0
    %v3479 = vadd.f32 %v3465, %v3478
    %v3480 = vpop.f32.mrf.mxu0
    %v3481 = vadd.f32 %v3467, %v3480
    %3482 = vdwg.mxu0
    %3483 = vmatpush.bf16.msra.mxu0 %v2594
    %3484 = vmatpush.bf16.msra.mxu0 %v2590
    %3485 = vmatpush.bf16.msra.mxu0 %v2586
    %3486 = vmatpush.bf16.msra.mxu0 %v2582
    %3487 = vmatpush.bf16.msra.mxu0 %v2578
    %3488 = vmatpush.bf16.msra.mxu0 %v2574
    %3489 = vmatpush.bf16.msra.mxu0 %v2570
    %3490 = vmatpush.bf16.msra.mxu0 %v2566
    %3491 = vmatmul.bf16.gmra.mxu0 %v661
    %v3492 = vpop.f32.mrf.mxu0
    %v3493 = vadd.f32 %v3479, %v3492
    %v3494 = vpop.f32.mrf.mxu0
    %v3495 = vadd.f32 %v3481, %v3494
    %3496 = vdwg.mxu0
    %3497 = vmatpush.bf16.msra.mxu0 %v2147
    %3498 = vmatpush.bf16.msra.mxu0 %v2143
    %3499 = vmatpush.bf16.msra.mxu0 %v2139
    %3500 = vmatpush.bf16.msra.mxu0 %v2135
    %3501 = vmatpush.bf16.msra.mxu0 %v2131
    %3502 = vmatpush.bf16.msra.mxu0 %v2127
    %3503 = vmatpush.bf16.msra.mxu0 %v2123
    %3504 = vmatpush.bf16.msra.mxu0 %v2119
    %3505 = vmatmul.bf16.gmra.mxu0 %v647
    %v3506 = vpop.f32.mrf.mxu0
    %v3507 = vadd.f32 %v595, %v3506
    %v3508 = vpop.f32.mrf.mxu0
    %v3509 = vadd.f32 %v595, %v3508
    %3510 = vdwg.mxu0
    %3511 = vmatpush.bf16.msra.mxu0 %v2179
    %3512 = vmatpush.bf16.msra.mxu0 %v2175
    %3513 = vmatpush.bf16.msra.mxu0 %v2171
    %3514 = vmatpush.bf16.msra.mxu0 %v2167
    %3515 = vmatpush.bf16.msra.mxu0 %v2163
    %3516 = vmatpush.bf16.msra.mxu0 %v2159
    %3517 = vmatpush.bf16.msra.mxu0 %v2155
    %3518 = vmatpush.bf16.msra.mxu0 %v2151
    %3519 = vmatmul.bf16.gmra.mxu0 %v648
    %v3520 = vpop.f32.mrf.mxu0
    %v3521 = vadd.f32 %v3507, %v3520
    %v3522 = vpop.f32.mrf.mxu0
    %v3523 = vadd.f32 %v3509, %v3522
    %3524 = vdwg.mxu0
    %3525 = vmatpush.bf16.msra.mxu0 %v2211
    %3526 = vmatpush.bf16.msra.mxu0 %v2207
    %3527 = vmatpush.bf16.msra.mxu0 %v2203
    %3528 = vmatpush.bf16.msra.mxu0 %v2199
    %3529 = vmatpush.bf16.msra.mxu0 %v2195
    %3530 = vmatpush.bf16.msra.mxu0 %v2191
    %3531 = vmatpush.bf16.msra.mxu0 %v2187
    %3532 = vmatpush.bf16.msra.mxu0 %v2183
    %3533 = vmatmul.bf16.gmra.mxu0 %v649
    %v3534 = vpop.f32.mrf.mxu0
    %v3535 = vadd.f32 %v3521, %v3534
    %v3536 = vpop.f32.mrf.mxu0
    %v3537 = vadd.f32 %v3523, %v3536
    %3538 = vdwg.mxu0
    %3539 = vmatpush.bf16.msra.mxu0 %v2243
    %3540 = vmatpush.bf16.msra.mxu0 %v2239
    %3541 = vmatpush.bf16.msra.mxu0 %v2235
    %3542 = vmatpush.bf16.msra.mxu0 %v2231
    %3543 = vmatpush.bf16.msra.mxu0 %v2227
    %3544 = vmatpush.bf16.msra.mxu0 %v2223
    %3545 = vmatpush.bf16.msra.mxu0 %v2219
    %3546 = vmatpush.bf16.msra.mxu0 %v2215
    %3547 = vmatmul.bf16.gmra.mxu0 %v650
    %v3548 = vpop.f32.mrf.mxu0
    %v3549 = vadd.f32 %v3535, %v3548
    %v3550 = vpop.f32.mrf.mxu0
    %v3551 = vadd.f32 %v3537, %v3550
    %3552 = vdwg.mxu0
    %3553 = vmatpush.bf16.msra.mxu0 %v2275
    %3554 = vmatpush.bf16.msra.mxu0 %v2271
    %3555 = vmatpush.bf16.msra.mxu0 %v2267
    %3556 = vmatpush.bf16.msra.mxu0 %v2263
    %3557 = vmatpush.bf16.msra.mxu0 %v2259
    %3558 = vmatpush.bf16.msra.mxu0 %v2255
    %3559 = vmatpush.bf16.msra.mxu0 %v2251
    %3560 = vmatpush.bf16.msra.mxu0 %v2247
    %3561 = vmatmul.bf16.gmra.mxu0 %v651
    %v3562 = vpop.f32.mrf.mxu0
    %v3563 = vadd.f32 %v3549, %v3562
    %v3564 = vpop.f32.mrf.mxu0
    %v3565 = vadd.f32 %v3551, %v3564
    %3566 = vdwg.mxu0
    %3567 = vmatpush.bf16.msra.mxu0 %v2307
    %3568 = vmatpush.bf16.msra.mxu0 %v2303
    %3569 = vmatpush.bf16.msra.mxu0 %v2299
    %3570 = vmatpush.bf16.msra.mxu0 %v2295
    %3571 = vmatpush.bf16.msra.mxu0 %v2291
    %3572 = vmatpush.bf16.msra.mxu0 %v2287
    %3573 = vmatpush.bf16.msra.mxu0 %v2283
    %3574 = vmatpush.bf16.msra.mxu0 %v2279
    %3575 = vmatmul.bf16.gmra.mxu0 %v652
    %v3576 = vpop.f32.mrf.mxu0
    %v3577 = vadd.f32 %v3563, %v3576
    %v3578 = vpop.f32.mrf.mxu0
    %v3579 = vadd.f32 %v3565, %v3578
    %3580 = vdwg.mxu0
    %3581 = vmatpush.bf16.msra.mxu0 %v2339
    %3582 = vmatpush.bf16.msra.mxu0 %v2335
    %3583 = vmatpush.bf16.msra.mxu0 %v2331
    %3584 = vmatpush.bf16.msra.mxu0 %v2327
    %3585 = vmatpush.bf16.msra.mxu0 %v2323
    %3586 = vmatpush.bf16.msra.mxu0 %v2319
    %3587 = vmatpush.bf16.msra.mxu0 %v2315
    %3588 = vmatpush.bf16.msra.mxu0 %v2311
    %3589 = vmatmul.bf16.gmra.mxu0 %v653
    %v3590 = vpop.f32.mrf.mxu0
    %v3591 = vadd.f32 %v3577, %v3590
    %v3592 = vpop.f32.mrf.mxu0
    %v3593 = vadd.f32 %v3579, %v3592
    %3594 = vdwg.mxu0
    %3595 = vmatpush.bf16.msra.mxu0 %v2371
    %3596 = vmatpush.bf16.msra.mxu0 %v2367
    %3597 = vmatpush.bf16.msra.mxu0 %v2363
    %3598 = vmatpush.bf16.msra.mxu0 %v2359
    %3599 = vmatpush.bf16.msra.mxu0 %v2355
    %3600 = vmatpush.bf16.msra.mxu0 %v2351
    %3601 = vmatpush.bf16.msra.mxu0 %v2347
    %3602 = vmatpush.bf16.msra.mxu0 %v2343
    %3603 = vmatmul.bf16.gmra.mxu0 %v654
    %v3604 = vpop.f32.mrf.mxu0
    %v3605 = vadd.f32 %v3591, %v3604
    %v3606 = vpop.f32.mrf.mxu0
    %v3607 = vadd.f32 %v3593, %v3606
    %3608 = vdwg.mxu0
    %3609 = vmatpush.bf16.msra.mxu0 %v2403
    %3610 = vmatpush.bf16.msra.mxu0 %v2399
    %3611 = vmatpush.bf16.msra.mxu0 %v2395
    %3612 = vmatpush.bf16.msra.mxu0 %v2391
    %3613 = vmatpush.bf16.msra.mxu0 %v2387
    %3614 = vmatpush.bf16.msra.mxu0 %v2383
    %3615 = vmatpush.bf16.msra.mxu0 %v2379
    %3616 = vmatpush.bf16.msra.mxu0 %v2375
    %3617 = vmatmul.bf16.gmra.mxu0 %v655
    %v3618 = vpop.f32.mrf.mxu0
    %v3619 = vadd.f32 %v3605, %v3618
    %v3620 = vpop.f32.mrf.mxu0
    %v3621 = vadd.f32 %v3607, %v3620
    %3622 = vdwg.mxu0
    %3623 = vmatpush.bf16.msra.mxu0 %v2435
    %3624 = vmatpush.bf16.msra.mxu0 %v2431
    %3625 = vmatpush.bf16.msra.mxu0 %v2427
    %3626 = vmatpush.bf16.msra.mxu0 %v2423
    %3627 = vmatpush.bf16.msra.mxu0 %v2419
    %3628 = vmatpush.bf16.msra.mxu0 %v2415
    %3629 = vmatpush.bf16.msra.mxu0 %v2411
    %3630 = vmatpush.bf16.msra.mxu0 %v2407
    %3631 = vmatmul.bf16.gmra.mxu0 %v656
    %v3632 = vpop.f32.mrf.mxu0
    %v3633 = vadd.f32 %v3619, %v3632
    %v3634 = vpop.f32.mrf.mxu0
    %v3635 = vadd.f32 %v3621, %v3634
    %3636 = vdwg.mxu0
    %3637 = vmatpush.bf16.msra.mxu0 %v2467
    %3638 = vmatpush.bf16.msra.mxu0 %v2463
    %3639 = vmatpush.bf16.msra.mxu0 %v2459
    %3640 = vmatpush.bf16.msra.mxu0 %v2455
    %3641 = vmatpush.bf16.msra.mxu0 %v2451
    %3642 = vmatpush.bf16.msra.mxu0 %v2447
    %3643 = vmatpush.bf16.msra.mxu0 %v2443
    %3644 = vmatpush.bf16.msra.mxu0 %v2439
    %3645 = vmatmul.bf16.gmra.mxu0 %v657
    %v3646 = vpop.f32.mrf.mxu0
    %v3647 = vadd.f32 %v3633, %v3646
    %v3648 = vpop.f32.mrf.mxu0
    %v3649 = vadd.f32 %v3635, %v3648
    %3650 = vdwg.mxu0
    %3651 = vmatpush.bf16.msra.mxu0 %v2499
    %3652 = vmatpush.bf16.msra.mxu0 %v2495
    %3653 = vmatpush.bf16.msra.mxu0 %v2491
    %3654 = vmatpush.bf16.msra.mxu0 %v2487
    %3655 = vmatpush.bf16.msra.mxu0 %v2483
    %3656 = vmatpush.bf16.msra.mxu0 %v2479
    %3657 = vmatpush.bf16.msra.mxu0 %v2475
    %3658 = vmatpush.bf16.msra.mxu0 %v2471
    %3659 = vmatmul.bf16.gmra.mxu0 %v658
    %v3660 = vpop.f32.mrf.mxu0
    %v3661 = vadd.f32 %v3647, %v3660
    %v3662 = vpop.f32.mrf.mxu0
    %v3663 = vadd.f32 %v3649, %v3662
    %3664 = vdwg.mxu0
    %3665 = vmatpush.bf16.msra.mxu0 %v2531
    %3666 = vmatpush.bf16.msra.mxu0 %v2527
    %3667 = vmatpush.bf16.msra.mxu0 %v2523
    %3668 = vmatpush.bf16.msra.mxu0 %v2519
    %3669 = vmatpush.bf16.msra.mxu0 %v2515
    %3670 = vmatpush.bf16.msra.mxu0 %v2511
    %3671 = vmatpush.bf16.msra.mxu0 %v2507
    %3672 = vmatpush.bf16.msra.mxu0 %v2503
    %3673 = vmatmul.bf16.gmra.mxu0 %v659
    %v3674 = vpop.f32.mrf.mxu0
    %v3675 = vadd.f32 %v3661, %v3674
    %v3676 = vpop.f32.mrf.mxu0
    %v3677 = vadd.f32 %v3663, %v3676
    %3678 = vdwg.mxu0
    %3679 = vmatpush.bf16.msra.mxu0 %v2563
    %3680 = vmatpush.bf16.msra.mxu0 %v2559
    %3681 = vmatpush.bf16.msra.mxu0 %v2555
    %3682 = vmatpush.bf16.msra.mxu0 %v2551
    %3683 = vmatpush.bf16.msra.mxu0 %v2547
    %3684 = vmatpush.bf16.msra.mxu0 %v2543
    %3685 = vmatpush.bf16.msra.mxu0 %v2539
    %3686 = vmatpush.bf16.msra.mxu0 %v2535
    %3687 = vmatmul.bf16.gmra.mxu0 %v660
    %v3688 = vpop.f32.mrf.mxu0
    %v3689 = vadd.f32 %v3675, %v3688
    %v3690 = vpop.f32.mrf.mxu0
    %v3691 = vadd.f32 %v3677, %v3690
    %3692 = vdwg.mxu0
    %3693 = vmatpush.bf16.msra.mxu0 %v2595
    %3694 = vmatpush.bf16.msra.mxu0 %v2591
    %3695 = vmatpush.bf16.msra.mxu0 %v2587
    %3696 = vmatpush.bf16.msra.mxu0 %v2583
    %3697 = vmatpush.bf16.msra.mxu0 %v2579
    %3698 = vmatpush.bf16.msra.mxu0 %v2575
    %3699 = vmatpush.bf16.msra.mxu0 %v2571
    %3700 = vmatpush.bf16.msra.mxu0 %v2567
    %3701 = vmatmul.bf16.gmra.mxu0 %v661
    %v3702 = vpop.f32.mrf.mxu0
    %v3703 = vadd.f32 %v3689, %v3702
    %v3704 = vpop.f32.mrf.mxu0
    %v3705 = vadd.f32 %v3691, %v3704
    %3706 = vdwg.mxu0
    %3707 = vmatpush.bf16.msra.mxu0 %v2148
    %3708 = vmatpush.bf16.msra.mxu0 %v2144
    %3709 = vmatpush.bf16.msra.mxu0 %v2140
    %3710 = vmatpush.bf16.msra.mxu0 %v2136
    %3711 = vmatpush.bf16.msra.mxu0 %v2132
    %3712 = vmatpush.bf16.msra.mxu0 %v2128
    %3713 = vmatpush.bf16.msra.mxu0 %v2124
    %3714 = vmatpush.bf16.msra.mxu0 %v2120
    %3715 = vmatmul.bf16.gmra.mxu0 %v647
    %v3716 = vpop.f32.mrf.mxu0
    %v3717 = vadd.f32 %v596, %v3716
    %v3718 = vpop.f32.mrf.mxu0
    %v3719 = vadd.f32 %v596, %v3718
    %3720 = vdwg.mxu0
    %3721 = vmatpush.bf16.msra.mxu0 %v2180
    %3722 = vmatpush.bf16.msra.mxu0 %v2176
    %3723 = vmatpush.bf16.msra.mxu0 %v2172
    %3724 = vmatpush.bf16.msra.mxu0 %v2168
    %3725 = vmatpush.bf16.msra.mxu0 %v2164
    %3726 = vmatpush.bf16.msra.mxu0 %v2160
    %3727 = vmatpush.bf16.msra.mxu0 %v2156
    %3728 = vmatpush.bf16.msra.mxu0 %v2152
    %3729 = vmatmul.bf16.gmra.mxu0 %v648
    %v3730 = vpop.f32.mrf.mxu0
    %v3731 = vadd.f32 %v3717, %v3730
    %v3732 = vpop.f32.mrf.mxu0
    %v3733 = vadd.f32 %v3719, %v3732
    %3734 = vdwg.mxu0
    %3735 = vmatpush.bf16.msra.mxu0 %v2212
    %3736 = vmatpush.bf16.msra.mxu0 %v2208
    %3737 = vmatpush.bf16.msra.mxu0 %v2204
    %3738 = vmatpush.bf16.msra.mxu0 %v2200
    %3739 = vmatpush.bf16.msra.mxu0 %v2196
    %3740 = vmatpush.bf16.msra.mxu0 %v2192
    %3741 = vmatpush.bf16.msra.mxu0 %v2188
    %3742 = vmatpush.bf16.msra.mxu0 %v2184
    %3743 = vmatmul.bf16.gmra.mxu0 %v649
    %v3744 = vpop.f32.mrf.mxu0
    %v3745 = vadd.f32 %v3731, %v3744
    %v3746 = vpop.f32.mrf.mxu0
    %v3747 = vadd.f32 %v3733, %v3746
    %3748 = vdwg.mxu0
    %3749 = vmatpush.bf16.msra.mxu0 %v2244
    %3750 = vmatpush.bf16.msra.mxu0 %v2240
    %3751 = vmatpush.bf16.msra.mxu0 %v2236
    %3752 = vmatpush.bf16.msra.mxu0 %v2232
    %3753 = vmatpush.bf16.msra.mxu0 %v2228
    %3754 = vmatpush.bf16.msra.mxu0 %v2224
    %3755 = vmatpush.bf16.msra.mxu0 %v2220
    %3756 = vmatpush.bf16.msra.mxu0 %v2216
    %3757 = vmatmul.bf16.gmra.mxu0 %v650
    %v3758 = vpop.f32.mrf.mxu0
    %v3759 = vadd.f32 %v3745, %v3758
    %v3760 = vpop.f32.mrf.mxu0
    %v3761 = vadd.f32 %v3747, %v3760
    %3762 = vdwg.mxu0
    %3763 = vmatpush.bf16.msra.mxu0 %v2276
    %3764 = vmatpush.bf16.msra.mxu0 %v2272
    %3765 = vmatpush.bf16.msra.mxu0 %v2268
    %3766 = vmatpush.bf16.msra.mxu0 %v2264
    %3767 = vmatpush.bf16.msra.mxu0 %v2260
    %3768 = vmatpush.bf16.msra.mxu0 %v2256
    %3769 = vmatpush.bf16.msra.mxu0 %v2252
    %3770 = vmatpush.bf16.msra.mxu0 %v2248
    %3771 = vmatmul.bf16.gmra.mxu0 %v651
    %v3772 = vpop.f32.mrf.mxu0
    %v3773 = vadd.f32 %v3759, %v3772
    %v3774 = vpop.f32.mrf.mxu0
    %v3775 = vadd.f32 %v3761, %v3774
    %3776 = vdwg.mxu0
    %3777 = vmatpush.bf16.msra.mxu0 %v2308
    %3778 = vmatpush.bf16.msra.mxu0 %v2304
    %3779 = vmatpush.bf16.msra.mxu0 %v2300
    %3780 = vmatpush.bf16.msra.mxu0 %v2296
    %3781 = vmatpush.bf16.msra.mxu0 %v2292
    %3782 = vmatpush.bf16.msra.mxu0 %v2288
    %3783 = vmatpush.bf16.msra.mxu0 %v2284
    %3784 = vmatpush.bf16.msra.mxu0 %v2280
    %3785 = vmatmul.bf16.gmra.mxu0 %v652
    %v3786 = vpop.f32.mrf.mxu0
    %v3787 = vadd.f32 %v3773, %v3786
    %v3788 = vpop.f32.mrf.mxu0
    %v3789 = vadd.f32 %v3775, %v3788
    %3790 = vdwg.mxu0
    %3791 = vmatpush.bf16.msra.mxu0 %v2340
    %3792 = vmatpush.bf16.msra.mxu0 %v2336
    %3793 = vmatpush.bf16.msra.mxu0 %v2332
    %3794 = vmatpush.bf16.msra.mxu0 %v2328
    %3795 = vmatpush.bf16.msra.mxu0 %v2324
    %3796 = vmatpush.bf16.msra.mxu0 %v2320
    %3797 = vmatpush.bf16.msra.mxu0 %v2316
    %3798 = vmatpush.bf16.msra.mxu0 %v2312
    %3799 = vmatmul.bf16.gmra.mxu0 %v653
    %v3800 = vpop.f32.mrf.mxu0
    %v3801 = vadd.f32 %v3787, %v3800
    %v3802 = vpop.f32.mrf.mxu0
    %v3803 = vadd.f32 %v3789, %v3802
    %3804 = vdwg.mxu0
    %3805 = vmatpush.bf16.msra.mxu0 %v2372
    %3806 = vmatpush.bf16.msra.mxu0 %v2368
    %3807 = vmatpush.bf16.msra.mxu0 %v2364
    %3808 = vmatpush.bf16.msra.mxu0 %v2360
    %3809 = vmatpush.bf16.msra.mxu0 %v2356
    %3810 = vmatpush.bf16.msra.mxu0 %v2352
    %3811 = vmatpush.bf16.msra.mxu0 %v2348
    %3812 = vmatpush.bf16.msra.mxu0 %v2344
    %3813 = vmatmul.bf16.gmra.mxu0 %v654
    %v3814 = vpop.f32.mrf.mxu0
    %v3815 = vadd.f32 %v3801, %v3814
    %v3816 = vpop.f32.mrf.mxu0
    %v3817 = vadd.f32 %v3803, %v3816
    %3818 = vdwg.mxu0
    %3819 = vmatpush.bf16.msra.mxu0 %v2404
    %3820 = vmatpush.bf16.msra.mxu0 %v2400
    %3821 = vmatpush.bf16.msra.mxu0 %v2396
    %3822 = vmatpush.bf16.msra.mxu0 %v2392
    %3823 = vmatpush.bf16.msra.mxu0 %v2388
    %3824 = vmatpush.bf16.msra.mxu0 %v2384
    %3825 = vmatpush.bf16.msra.mxu0 %v2380
    %3826 = vmatpush.bf16.msra.mxu0 %v2376
    %3827 = vmatmul.bf16.gmra.mxu0 %v655
    %v3828 = vpop.f32.mrf.mxu0
    %v3829 = vadd.f32 %v3815, %v3828
    %v3830 = vpop.f32.mrf.mxu0
    %v3831 = vadd.f32 %v3817, %v3830
    %3832 = vdwg.mxu0
    %3833 = vmatpush.bf16.msra.mxu0 %v2436
    %3834 = vmatpush.bf16.msra.mxu0 %v2432
    %3835 = vmatpush.bf16.msra.mxu0 %v2428
    %3836 = vmatpush.bf16.msra.mxu0 %v2424
    %3837 = vmatpush.bf16.msra.mxu0 %v2420
    %3838 = vmatpush.bf16.msra.mxu0 %v2416
    %3839 = vmatpush.bf16.msra.mxu0 %v2412
    %3840 = vmatpush.bf16.msra.mxu0 %v2408
    %3841 = vmatmul.bf16.gmra.mxu0 %v656
    %v3842 = vpop.f32.mrf.mxu0
    %v3843 = vadd.f32 %v3829, %v3842
    %v3844 = vpop.f32.mrf.mxu0
    %v3845 = vadd.f32 %v3831, %v3844
    %3846 = vdwg.mxu0
    %3847 = vmatpush.bf16.msra.mxu0 %v2468
    %3848 = vmatpush.bf16.msra.mxu0 %v2464
    %3849 = vmatpush.bf16.msra.mxu0 %v2460
    %3850 = vmatpush.bf16.msra.mxu0 %v2456
    %3851 = vmatpush.bf16.msra.mxu0 %v2452
    %3852 = vmatpush.bf16.msra.mxu0 %v2448
    %3853 = vmatpush.bf16.msra.mxu0 %v2444
    %3854 = vmatpush.bf16.msra.mxu0 %v2440
    %3855 = vmatmul.bf16.gmra.mxu0 %v657
    %v3856 = vpop.f32.mrf.mxu0
    %v3857 = vadd.f32 %v3843, %v3856
    %v3858 = vpop.f32.mrf.mxu0
    %v3859 = vadd.f32 %v3845, %v3858
    %3860 = vdwg.mxu0
    %3861 = vmatpush.bf16.msra.mxu0 %v2500
    %3862 = vmatpush.bf16.msra.mxu0 %v2496
    %3863 = vmatpush.bf16.msra.mxu0 %v2492
    %3864 = vmatpush.bf16.msra.mxu0 %v2488
    %3865 = vmatpush.bf16.msra.mxu0 %v2484
    %3866 = vmatpush.bf16.msra.mxu0 %v2480
    %3867 = vmatpush.bf16.msra.mxu0 %v2476
    %3868 = vmatpush.bf16.msra.mxu0 %v2472
    %3869 = vmatmul.bf16.gmra.mxu0 %v658
    %v3870 = vpop.f32.mrf.mxu0
    %v3871 = vadd.f32 %v3857, %v3870
    %v3872 = vpop.f32.mrf.mxu0
    %v3873 = vadd.f32 %v3859, %v3872
    %3874 = vdwg.mxu0
    %3875 = vmatpush.bf16.msra.mxu0 %v2532
    %3876 = vmatpush.bf16.msra.mxu0 %v2528
    %3877 = vmatpush.bf16.msra.mxu0 %v2524
    %3878 = vmatpush.bf16.msra.mxu0 %v2520
    %3879 = vmatpush.bf16.msra.mxu0 %v2516
    %3880 = vmatpush.bf16.msra.mxu0 %v2512
    %3881 = vmatpush.bf16.msra.mxu0 %v2508
    %3882 = vmatpush.bf16.msra.mxu0 %v2504
    %3883 = vmatmul.bf16.gmra.mxu0 %v659
    %v3884 = vpop.f32.mrf.mxu0
    %v3885 = vadd.f32 %v3871, %v3884
    %v3886 = vpop.f32.mrf.mxu0
    %v3887 = vadd.f32 %v3873, %v3886
    %3888 = vdwg.mxu0
    %3889 = vmatpush.bf16.msra.mxu0 %v2564
    %3890 = vmatpush.bf16.msra.mxu0 %v2560
    %3891 = vmatpush.bf16.msra.mxu0 %v2556
    %3892 = vmatpush.bf16.msra.mxu0 %v2552
    %3893 = vmatpush.bf16.msra.mxu0 %v2548
    %3894 = vmatpush.bf16.msra.mxu0 %v2544
    %3895 = vmatpush.bf16.msra.mxu0 %v2540
    %3896 = vmatpush.bf16.msra.mxu0 %v2536
    %3897 = vmatmul.bf16.gmra.mxu0 %v660
    %v3898 = vpop.f32.mrf.mxu0
    %v3899 = vadd.f32 %v3885, %v3898
    %v3900 = vpop.f32.mrf.mxu0
    %v3901 = vadd.f32 %v3887, %v3900
    %3902 = vdwg.mxu0
    %3903 = vmatpush.bf16.msra.mxu0 %v2596
    %3904 = vmatpush.bf16.msra.mxu0 %v2592
    %3905 = vmatpush.bf16.msra.mxu0 %v2588
    %3906 = vmatpush.bf16.msra.mxu0 %v2584
    %3907 = vmatpush.bf16.msra.mxu0 %v2580
    %3908 = vmatpush.bf16.msra.mxu0 %v2576
    %3909 = vmatpush.bf16.msra.mxu0 %v2572
    %3910 = vmatpush.bf16.msra.mxu0 %v2568
    %3911 = vmatmul.bf16.gmra.mxu0 %v661
    %v3912 = vpop.f32.mrf.mxu0
    %v3913 = vadd.f32 %v3899, %v3912
    %v3914 = vpop.f32.mrf.mxu0
    %v3915 = vadd.f32 %v3901, %v3914
    %3916 = vdwg.mxu0
    %v3917 = vmax.f32 %v3283, 0.0
    %v3918 = vmax.f32 %v3493, 0.0
    %v3919 = vmax.f32 %v3703, 0.0
    %v3920 = vmax.f32 %v3913, 0.0
    %v3921 = vmax.f32 %v3285, 0.0
    %v3922 = vmax.f32 %v3495, 0.0
    %v3923 = vmax.f32 %v3705, 0.0
    %v3924 = vmax.f32 %v3915, 0.0
    %v3925 = vpack.c.bf16 %v3921, %v3917
    %v3926 = vpack.c.bf16 %v3922, %v3918
    %v3927 = vpack.c.bf16 %v3923, %v3919
    %v3928 = vpack.c.bf16 %v3924, %v3920
    %v3929 = vld [vmem:[#allocation8] sm:$0xf]
    %v3930 = vld [vmem:[#allocation8 + $0x4] sm:$0xf]
    %v3931 = vld [vmem:[#allocation8 + $0x8] sm:$0xf]
    %v3932 = vld [vmem:[#allocation8 + $0xc] sm:$0xf]
    %v3933 = vld [vmem:[#allocation8 + $0x10] sm:$0xf]
    %v3934 = vld [vmem:[#allocation8 + $0x14] sm:$0xf]
    %v3935 = vld [vmem:[#allocation8 + $0x18] sm:$0xf]
    %v3936 = vld [vmem:[#allocation8 + $0x1c] sm:$0xf]
    %v3937 = vld [vmem:[#allocation8 + $0x20] sm:$0xf]
    %v3938 = vld [vmem:[#allocation8 + $0x24] sm:$0xf]
    %v3939 = vld [vmem:[#allocation8 + $0x28] sm:$0xf]
    %v3940 = vld [vmem:[#allocation8 + $0x2c] sm:$0xf]
    %v3941 = vld [vmem:[#allocation8 + $0x30] sm:$0xf]
    %v3942 = vld [vmem:[#allocation8 + $0x34] sm:$0xf]
    %v3943 = vld [vmem:[#allocation8 + $0x38] sm:$0xf]
    %v3944 = vld [vmem:[#allocation8 + $0x3c] sm:$0xf]
    %v3945 = vld [vmem:[#allocation8 + $0x40] sm:$0xf]
    %v3946 = vld [vmem:[#allocation8 + $0x44] sm:$0xf]
    %v3947 = vld [vmem:[#allocation8 + $0x48] sm:$0xf]
    %v3948 = vld [vmem:[#allocation8 + $0x4c] sm:$0xf]
    %v3949 = vld [vmem:[#allocation8 + $0x50] sm:$0xf]
    %v3950 = vld [vmem:[#allocation8 + $0x54] sm:$0xf]
    %v3951 = vld [vmem:[#allocation8 + $0x58] sm:$0xf]
    %v3952 = vld [vmem:[#allocation8 + $0x5c] sm:$0xf]
    %v3953 = vld [vmem:[#allocation8 + $0x60] sm:$0xf]
    %v3954 = vld [vmem:[#allocation8 + $0x64] sm:$0xf]
    %v3955 = vld [vmem:[#allocation8 + $0x68] sm:$0xf]
    %v3956 = vld [vmem:[#allocation8 + $0x6c] sm:$0xf]
    %v3957 = vld [vmem:[#allocation8 + $0x70] sm:$0xf]
    %v3958 = vld [vmem:[#allocation8 + $0x74] sm:$0xf]
    %v3959 = vld [vmem:[#allocation8 + $0x78] sm:$0xf]
    %v3960 = vld [vmem:[#allocation8 + $0x7c] sm:$0xf]
    %v3961 = vld [vmem:[#allocation8 + $0x80] sm:$0xf]
    %v3962 = vld [vmem:[#allocation8 + $0x84] sm:$0xf]
    %v3963 = vld [vmem:[#allocation8 + $0x88] sm:$0xf]
    %v3964 = vld [vmem:[#allocation8 + $0x8c] sm:$0xf]
    %v3965 = vld [vmem:[#allocation8 + $0x90] sm:$0xf]
    %v3966 = vld [vmem:[#allocation8 + $0x94] sm:$0xf]
    %v3967 = vld [vmem:[#allocation8 + $0x98] sm:$0xf]
    %v3968 = vld [vmem:[#allocation8 + $0x9c] sm:$0xf]
    %v3969 = vld [vmem:[#allocation8 + $0xa0] sm:$0xf]
    %v3970 = vld [vmem:[#allocation8 + $0xa4] sm:$0xf]
    %v3971 = vld [vmem:[#allocation8 + $0xa8] sm:$0xf]
    %v3972 = vld [vmem:[#allocation8 + $0xac] sm:$0xf]
    %v3973 = vld [vmem:[#allocation8 + $0xb0] sm:$0xf]
    %v3974 = vld [vmem:[#allocation8 + $0xb4] sm:$0xf]
    %v3975 = vld [vmem:[#allocation8 + $0xb8] sm:$0xf]
    %v3976 = vld [vmem:[#allocation8 + $0xbc] sm:$0xf]
    %v3977 = vld [vmem:[#allocation8 + $0xc0] sm:$0xf]
    %v3978 = vld [vmem:[#allocation8 + $0xc4] sm:$0xf]
    %v3979 = vld [vmem:[#allocation8 + $0xc8] sm:$0xf]
    %v3980 = vld [vmem:[#allocation8 + $0xcc] sm:$0xf]
    %v3981 = vld [vmem:[#allocation8 + $0xd0] sm:$0xf]
    %v3982 = vld [vmem:[#allocation8 + $0xd4] sm:$0xf]
    %v3983 = vld [vmem:[#allocation8 + $0xd8] sm:$0xf]
    %v3984 = vld [vmem:[#allocation8 + $0xdc] sm:$0xf]
    %v3985 = vld [vmem:[#allocation8 + $0xe0] sm:$0xf]
    %v3986 = vld [vmem:[#allocation8 + $0xe4] sm:$0xf]
    %v3987 = vld [vmem:[#allocation8 + $0xe8] sm:$0xf]
    %v3988 = vld [vmem:[#allocation8 + $0xec] sm:$0xf]
    %v3989 = vld [vmem:[#allocation8 + $0xf0] sm:$0xf]
    %v3990 = vld [vmem:[#allocation8 + $0xf4] sm:$0xf]
    %v3991 = vld [vmem:[#allocation8 + $0xf8] sm:$0xf]
    %v3992 = vld [vmem:[#allocation8 + $0xfc] sm:$0xf]
    %v3993 = vld [vmem:[#allocation10] sm:$0x1]
    %v3995 = vperm.slane %v3993, 0
    %v4061 = vunpack.c.l.b16 %v3929
    %v4062 = vunpack.c.l.b16 %v3930
    %v4063 = vunpack.c.l.b16 %v3931
    %v4064 = vunpack.c.l.b16 %v3932
    %v4065 = vunpack.c.l.b16 %v3933
    %v4066 = vunpack.c.l.b16 %v3934
    %v4067 = vunpack.c.l.b16 %v3935
    %v4068 = vunpack.c.l.b16 %v3936
    %v4069 = vunpack.c.l.b16 %v3937
    %v4070 = vunpack.c.l.b16 %v3938
    %v4071 = vunpack.c.l.b16 %v3939
    %v4072 = vunpack.c.l.b16 %v3940
    %v4073 = vunpack.c.l.b16 %v3941
    %v4074 = vunpack.c.l.b16 %v3942
    %v4075 = vunpack.c.l.b16 %v3943
    %v4076 = vunpack.c.l.b16 %v3944
    %v4077 = vunpack.c.l.b16 %v3945
    %v4078 = vunpack.c.l.b16 %v3946
    %v4079 = vunpack.c.l.b16 %v3947
    %v4080 = vunpack.c.l.b16 %v3948
    %v4081 = vunpack.c.l.b16 %v3949
    %v4082 = vunpack.c.l.b16 %v3950
    %v4083 = vunpack.c.l.b16 %v3951
    %v4084 = vunpack.c.l.b16 %v3952
    %v4085 = vunpack.c.l.b16 %v3953
    %v4086 = vunpack.c.l.b16 %v3954
    %v4087 = vunpack.c.l.b16 %v3955
    %v4088 = vunpack.c.l.b16 %v3956
    %v4089 = vunpack.c.l.b16 %v3957
    %v4090 = vunpack.c.l.b16 %v3958
    %v4091 = vunpack.c.l.b16 %v3959
    %v4092 = vunpack.c.l.b16 %v3960
    %v4093 = vunpack.c.l.b16 %v3961
    %v4094 = vunpack.c.l.b16 %v3962
    %v4095 = vunpack.c.l.b16 %v3963
    %v4096 = vunpack.c.l.b16 %v3964
    %v4097 = vunpack.c.l.b16 %v3965
    %v4098 = vunpack.c.l.b16 %v3966
    %v4099 = vunpack.c.l.b16 %v3967
    %v4100 = vunpack.c.l.b16 %v3968
    %v4101 = vunpack.c.l.b16 %v3969
    %v4102 = vunpack.c.l.b16 %v3970
    %v4103 = vunpack.c.l.b16 %v3971
    %v4104 = vunpack.c.l.b16 %v3972
    %v4105 = vunpack.c.l.b16 %v3973
    %v4106 = vunpack.c.l.b16 %v3974
    %v4107 = vunpack.c.l.b16 %v3975
    %v4108 = vunpack.c.l.b16 %v3976
    %v4109 = vunpack.c.l.b16 %v3977
    %v4110 = vunpack.c.l.b16 %v3978
    %v4111 = vunpack.c.l.b16 %v3979
    %v4112 = vunpack.c.l.b16 %v3980
    %v4113 = vunpack.c.l.b16 %v3981
    %v4114 = vunpack.c.l.b16 %v3982
    %v4115 = vunpack.c.l.b16 %v3983
    %v4116 = vunpack.c.l.b16 %v3984
    %v4117 = vunpack.c.l.b16 %v3985
    %v4118 = vunpack.c.l.b16 %v3986
    %v4119 = vunpack.c.l.b16 %v3987
    %v4120 = vunpack.c.l.b16 %v3988
    %v4121 = vunpack.c.l.b16 %v3989
    %v4122 = vunpack.c.l.b16 %v3990
    %v4123 = vunpack.c.l.b16 %v3991
    %v4124 = vunpack.c.l.b16 %v3992
    %v4125 = vpack.c.b16 %v4062, %v4061
    %v4126 = vpack.c.b16 %v4064, %v4063
    %v4127 = vpack.c.b16 %v4066, %v4065
    %v4128 = vpack.c.b16 %v4068, %v4067
    %v4129 = vpack.c.b16 %v4070, %v4069
    %v4130 = vpack.c.b16 %v4072, %v4071
    %v4131 = vpack.c.b16 %v4074, %v4073
    %v4132 = vpack.c.b16 %v4076, %v4075
    %v4133 = vpack.c.b16 %v4078, %v4077
    %v4134 = vpack.c.b16 %v4080, %v4079
    %v4135 = vpack.c.b16 %v4082, %v4081
    %v4136 = vpack.c.b16 %v4084, %v4083
    %v4137 = vpack.c.b16 %v4086, %v4085
    %v4138 = vpack.c.b16 %v4088, %v4087
    %v4139 = vpack.c.b16 %v4090, %v4089
    %v4140 = vpack.c.b16 %v4092, %v4091
    %v4141 = vpack.c.b16 %v4094, %v4093
    %v4142 = vpack.c.b16 %v4096, %v4095
    %v4143 = vpack.c.b16 %v4098, %v4097
    %v4144 = vpack.c.b16 %v4100, %v4099
    %v4145 = vpack.c.b16 %v4102, %v4101
    %v4146 = vpack.c.b16 %v4104, %v4103
    %v4147 = vpack.c.b16 %v4106, %v4105
    %v4148 = vpack.c.b16 %v4108, %v4107
    %v4149 = vpack.c.b16 %v4110, %v4109
    %v4150 = vpack.c.b16 %v4112, %v4111
    %v4151 = vpack.c.b16 %v4114, %v4113
    %v4152 = vpack.c.b16 %v4116, %v4115
    %v4153 = vpack.c.b16 %v4118, %v4117
    %v4154 = vpack.c.b16 %v4120, %v4119
    %v4155 = vpack.c.b16 %v4122, %v4121
    %v4156 = vpack.c.b16 %v4124, %v4123
    %4189 = vmatpush.bf16.msra.mxu0 %v4132
    %4190 = vmatpush.bf16.msra.mxu0 %v4131
    %4191 = vmatpush.bf16.msra.mxu0 %v4130
    %4192 = vmatpush.bf16.msra.mxu0 %v4129
    %4193 = vmatpush.bf16.msra.mxu0 %v4128
    %4194 = vmatpush.bf16.msra.mxu0 %v4127
    %4195 = vmatpush.bf16.msra.mxu0 %v4126
    %4196 = vmatpush.bf16.msra.mxu0 %v4125
    %4197 = vmatmul.bf16.gmra.mxu0 %v3925
    %v4198 = vpop.f32.mrf.mxu0
    %v4199 = vadd.f32 %v3995, %v4198
    %v4200 = vpop.f32.mrf.mxu0
    %v4201 = vadd.f32 %v3995, %v4200
    %4202 = vdwg.mxu0
    %4203 = vmatpush.bf16.msra.mxu0 %v4140
    %4204 = vmatpush.bf16.msra.mxu0 %v4139
    %4205 = vmatpush.bf16.msra.mxu0 %v4138
    %4206 = vmatpush.bf16.msra.mxu0 %v4137
    %4207 = vmatpush.bf16.msra.mxu0 %v4136
    %4208 = vmatpush.bf16.msra.mxu0 %v4135
    %4209 = vmatpush.bf16.msra.mxu0 %v4134
    %4210 = vmatpush.bf16.msra.mxu0 %v4133
    %4211 = vmatmul.bf16.gmra.mxu0 %v3926
    %v4212 = vpop.f32.mrf.mxu0
    %v4213 = vadd.f32 %v4199, %v4212
    %v4214 = vpop.f32.mrf.mxu0
    %v4215 = vadd.f32 %v4201, %v4214
    %4216 = vdwg.mxu0
    %4217 = vmatpush.bf16.msra.mxu0 %v4148
    %4218 = vmatpush.bf16.msra.mxu0 %v4147
    %4219 = vmatpush.bf16.msra.mxu0 %v4146
    %4220 = vmatpush.bf16.msra.mxu0 %v4145
    %4221 = vmatpush.bf16.msra.mxu0 %v4144
    %4222 = vmatpush.bf16.msra.mxu0 %v4143
    %4223 = vmatpush.bf16.msra.mxu0 %v4142
    %4224 = vmatpush.bf16.msra.mxu0 %v4141
    %4225 = vmatmul.bf16.gmra.mxu0 %v3927
    %v4226 = vpop.f32.mrf.mxu0
    %v4227 = vadd.f32 %v4213, %v4226
    %v4228 = vpop.f32.mrf.mxu0
    %v4229 = vadd.f32 %v4215, %v4228
    %4230 = vdwg.mxu0
    %4231 = vmatpush.bf16.msra.mxu0 %v4156
    %4232 = vmatpush.bf16.msra.mxu0 %v4155
    %4233 = vmatpush.bf16.msra.mxu0 %v4154
    %4234 = vmatpush.bf16.msra.mxu0 %v4153
    %4235 = vmatpush.bf16.msra.mxu0 %v4152
    %4236 = vmatpush.bf16.msra.mxu0 %v4151
    %4237 = vmatpush.bf16.msra.mxu0 %v4150
    %4238 = vmatpush.bf16.msra.mxu0 %v4149
    %4239 = vmatmul.bf16.gmra.mxu0 %v3928
    %v4240 = vpop.f32.mrf.mxu0
    %v4241 = vadd.f32 %v4227, %v4240
    %v4242 = vpop.f32.mrf.mxu0
    %v4243 = vadd.f32 %v4229, %v4242
    %4244 = vdwg.mxu0
    %4245 = vst [vmem:[#allocation11] sm:$0xff] %v4241
    %4246 = vst [vmem:[#allocation11 + $0x8] sm:$0xff] %v4243
    // Predicated region
    $region42: #{tpu_custom_call.1} parent=1 // pred_check
      _
    $region43: #{tpu_custom_call.1} parent=1 // pred_check_branch
      %4248 = sbr.rel (0) target = $region45
    $region44: #{tpu_custom_call.1} parent=1 // pred_region
      %4250 = vsyncadd [#allocation4], 0
      %s4251 = sshll.u32 [#allocation11], 4
      %s4252 = int_to_ptr.vmem [resolvable:$true] %s4251
      %s4253 = sshll.u32 %s5, 4
      %s4254 = int_to_ptr.hbm [resolvable:$true] %s4253
      %4259 = dma.vmem_to_hbm [thread:$0]  %s4252, 256, %s4254, [#allocation4], 128, 128, 8
    $region45: #{tpu_custom_call.1} parent=1 // pred_fallthru
      _
    // Predicated region
    $region46: #{tpu_custom_call.1} parent=1 // pred_check
      _
    $region47: #{tpu_custom_call.1} parent=1 // pred_check_branch
      %4261 = sbr.rel (0) target = $region49
    $region48: #{tpu_custom_call.1} parent=1 // pred_region
      %4263 = dma.done [#allocation4], 256
    $region49: #{tpu_custom_call.1} parent=1 // pred_fallthru
      _
    %4264 = vsyncpa [#allocation3], 1
    %4265 = vsyncpa [#allocation6], 1
    %4266 = vsyncpa [#allocation9], 1
    %4267 = vsyncpa [#allocation4], 1

</llo_original>
